<compile_context>
chip_gen: v7x
topology: tpu7x:2x2x1
jax: 0.10.0
libtpu: 0.0.40
codegen_flags: <defaults>
</compile_context>

<pallas_src>
import functools

import jax
import jax.numpy as jnp
import numpy as np
from jax.experimental import pallas as pl
from jax.experimental.pallas import tpu as pltpu


BN_EPS = 1e-5
LANE = 128


def _round_up(x, m):
    return (x + m - 1) // m * m


def gin_fused_kernel(adj_ref,                      # [N_pad, TILE_SRC] bf16
                     h0_ref,                       # [TILE_SRC, F_PAD] f32 input feats
                     eps_ref,                      # [1, F_PAD] f32 (per-layer eps, broadcast)
                     w1_ref, g1_ref, be1_ref,      # MLP hidden Linear + its BN
                     w2_ref, g2_ref, be2_ref,      # MLP output Linear + ApplyNodeFunc BN
                     g3_ref, be3_ref,              # GIN outer BN
                     out_ref,                      # [N_pad, F_PAD] f32 (this layer's h)
                     h_scr, acc_scr,               # VMEM scratch [N_pad, F_PAD] f32
                     *, n_real, tile_src):
    layer = pl.program_id(0)
    s = pl.program_id(1)
    n_src_tiles = pl.num_programs(1)
    n_pad = h_scr.shape[0]

    # ---- reset the aggregation accumulator at the start of every layer ------
    @pl.when(s == 0)
    def _():
        acc_scr[...] = jnp.zeros_like(acc_scr)

    start = pl.multiple_of(s * tile_src, tile_src)

    # ---- layer 0: stream the input feature tiles into the resident h scratch
    @pl.when(layer == 0)
    def _():
        h_scr[pl.ds(start, tile_src), :] = h0_ref[...]

    # ---- GINConv sum-pooling: acc += adj[:, src_tile] @ h[src_tile]  (MXU) --
    # adj is exact 0/1 in bf16, so the upcast is exact and the matmul is a
    # full-precision f32 aggregation (matches the PyTorch forward).
    acc_scr[...] += jnp.dot(adj_ref[...].astype(jnp.float32),
                            h_scr[pl.ds(start, tile_src), :],
                            preferred_element_type=jnp.float32)

    # ---- last src tile: finish the layer (MLP + 3x BN/ReLU) over ALL nodes --
    @pl.when(s == n_src_tiles - 1)
    def _():
        pre = (1.0 + eps_ref[...]) * h_scr[...] + acc_scr[...]

        # BatchNorm statistics over *real* nodes only: padded node rows are
        # masked out of the sums and we divide by n_real.
        inv_n = 1.0 / n_real
        if n_real < n_pad:
            row_mask = jax.lax.broadcasted_iota(jnp.int32, (n_pad, 1), 0) < n_real
        else:
            row_mask = None

        def bn_relu(x, gamma, beta):
            xs = x if row_mask is None else jnp.where(row_mask, x, 0.0)
            mean = jnp.sum(xs, axis=0, keepdims=True) * inv_n
            var = jnp.maximum(
                jnp.sum(xs * xs, axis=0, keepdims=True) * inv_n - mean * mean, 0.0)
            y = (x - mean) * jax.lax.rsqrt(var + BN_EPS) * gamma + beta
            return jnp.maximum(y, 0.0)

        # MLP hidden layer: Linear -> BN -> ReLU.  (Linear bias folded away: a
        # constant per-feature bias is cancelled by BN's mean subtraction.)
        z1 = jnp.dot(pre, w1_ref[...], preferred_element_type=jnp.float32)
        h1 = bn_relu(z1, g1_ref[...], be1_ref[...])

        # MLP output Linear (bias folded into the following BN), then
        # ApplyNodeFunc: BN -> ReLU, then GIN outer batch_norms[i] -> ReLU.
        z2 = jnp.dot(h1, w2_ref[...], preferred_element_type=jnp.float32)
        h2 = bn_relu(z2, g2_ref[...], be2_ref[...])
        h3 = bn_relu(h2, g3_ref[...], be3_ref[...])

        out_ref[...] = h3
        h_scr[...] = h3          # becomes the next GIN layer's input features


def gin_forward(adj, feat, layer_params, n_hidden):
    """GIN.forward: all GIN layers fused in one pipelined pallas_call.

    adj:  [N, N] float, adj[dst, src] = 1.0 for an edge src -> dst
    feat: [N, in_feats]
    returns z: [N, (n_layers - 1) * n_hidden]
    """
    n_real = adj.shape[0]
    in_feats = feat.shape[1]
    n_gin_layers = len(layer_params)
    f_pad = _round_up(max(in_feats, n_hidden), LANE)

    # src-axis tile for streaming adj through VMEM (multiple of 128 lanes).
    tile_src = LANE if n_real <= 1024 else 4 * LANE
    n_pad = _round_up(n_real, tile_src)

    # --- pad graph + features (zero rows/cols; masked out of BN statistics) --
    adj_p = jnp.zeros((n_pad, n_pad), jnp.bfloat16)
    adj_p = adj_p.at[:n_real, :n_real].set(adj.astype(jnp.bfloat16))
    feat_p = jnp.zeros((n_pad, f_pad), jnp.float32)
    feat_p = feat_p.at[:n_real, :in_feats].set(feat.astype(jnp.float32))

    # --- stack per-layer parameters, zero-padded to 128-lane width -----------
    def pad_w(w):
        w = jnp.asarray(w, jnp.float32)
        return jnp.zeros((f_pad, f_pad), jnp.float32).at[:w.shape[0], :w.shape[1]].set(w)

    def pad_vec(v, fill):
        v = jnp.asarray(v, jnp.float32).reshape(-1)
        return jnp.full((1, f_pad), fill, jnp.float32).at[0, :v.shape[0]].set(v)

    eps_all = jnp.stack([
        jnp.broadcast_to(jnp.asarray(p["eps"], jnp.float32).reshape(1, 1), (1, f_pad))
        for p in layer_params])
    w1_all = jnp.stack([pad_w(p["w1"]) for p in layer_params])
    w2_all = jnp.stack([pad_w(p["w2"]) for p in layer_params])
    g1_all = jnp.stack([pad_vec(p["g1"], 1.0) for p in layer_params])
    be1_all = jnp.stack([pad_vec(p["be1"], 0.0) for p in layer_params])
    g2_all = jnp.stack([pad_vec(p["g2"], 1.0) for p in layer_params])
    be2_all = jnp.stack([pad_vec(p["be2"], 0.0) for p in layer_params])
    g3_all = jnp.stack([pad_vec(p["g3"], 1.0) for p in layer_params])
    be3_all = jnp.stack([pad_vec(p["be3"], 0.0) for p in layer_params])

    n_src_tiles = n_pad // tile_src
    grid = (n_gin_layers, n_src_tiles)

    def per_layer_spec(*tail):
        # one layer's parameters, resident for all src steps of that layer
        return pl.BlockSpec((None, *tail), lambda l, s: (l, 0, 0))

    # VMEM budget estimate (double-buffered tiles + resident scratch) with an
    # explicit limit (above v5e's 16 MiB scoped default, within v7x's 64 MiB).
    est = (2 * n_pad * tile_src * 2        # adj tiles (bf16), double-buffered
           + 2 * tile_src * f_pad * 4      # feature tiles (f32)
           + 2 * n_pad * f_pad * 4         # output block
           + 2 * n_pad * f_pad * 4         # h / acc scratch
           + 2 * 2 * f_pad * f_pad * 4     # w1, w2
           + 2 * 7 * f_pad * 4)            # eps + BN gammas/betas
    vmem_limit = int(min(max(2 * est, 32 * 2**20), 64 * 2**20))

    kernel = functools.partial(gin_fused_kernel, n_real=n_real, tile_src=tile_src)

    out = pl.pallas_call(
        kernel,
        out_shape=jax.ShapeDtypeStruct((n_gin_layers, n_pad, f_pad), jnp.float32),
        grid_spec=pltpu.PrefetchScalarGridSpec(
            num_scalar_prefetch=0,
            grid=grid,
            in_specs=[
                pl.BlockSpec((n_pad, tile_src), lambda l, s: (0, s)),   # adj
                pl.BlockSpec((tile_src, f_pad), lambda l, s: (s, 0)),   # input feats
                per_layer_spec(1, f_pad),                               # eps
                per_layer_spec(f_pad, f_pad),                           # w1
                per_layer_spec(1, f_pad),                               # g1
                per_layer_spec(1, f_pad),                               # be1
                per_layer_spec(f_pad, f_pad),                           # w2
                per_layer_spec(1, f_pad),                               # g2
                per_layer_spec(1, f_pad),                               # be2
                per_layer_spec(1, f_pad),                               # g3
                per_layer_spec(1, f_pad),                               # be3
            ],
            out_specs=pl.BlockSpec((None, n_pad, f_pad), lambda l, s: (l, 0, 0)),
            scratch_shapes=[pltpu.VMEM((n_pad, f_pad), jnp.float32),   # current h
                            pltpu.VMEM((n_pad, f_pad), jnp.float32)],  # agg accumulator
        ),
        compiler_params=pltpu.CompilerParams(
            dimension_semantics=("arbitrary", "arbitrary"),
            vmem_limit_bytes=vmem_limit),
    )(adj_p, feat_p, eps_all,
      w1_all, g1_all, be1_all,
      w2_all, g2_all, be2_all,
      g3_all, be3_all)

    # strip node / lane padding and concat the per-layer hidden reps
    return jnp.concatenate(
        [out[i, :n_real, :n_hidden] for i in range(n_gin_layers)], axis=1)


def gin_reference(adj, feat, layer_params, n_hidden):
    """Pure-JAX reference of the same forward pass (training-mode BN)."""
    hi = jax.lax.Precision.HIGHEST

    def bn_relu(x, gamma, beta):
        mean = jnp.mean(x, axis=0, keepdims=True)
        var = jnp.maximum(jnp.mean(x * x, axis=0, keepdims=True) - mean * mean, 0.0)
        y = (x - mean) * jax.lax.rsqrt(var + BN_EPS) * gamma.reshape(1, -1) + beta.reshape(1, -1)
        return jnp.maximum(y, 0.0)

    adj_f = adj.astype(jnp.float32)
    h = feat.astype(jnp.float32)
    outs = []
    for p in layer_params:
        agg = jnp.dot(adj_f, h, precision=hi)
        pre = (1.0 + jnp.asarray(p["eps"], jnp.float32).reshape(())) * h + agg
        h1 = bn_relu(jnp.dot(pre, p["w1"], precision=hi), p["g1"], p["be1"])
        h2 = bn_relu(jnp.dot(h1, p["w2"], precision=hi), p["g2"], p["be2"])
        h = bn_relu(h2, p["g3"], p["be3"])
        outs.append(h)
    return jnp.concatenate(outs, axis=1)


def make_layer_params(key, in_dim, hidden_dim):
    """Deterministic synthetic parameters for one GIN layer (num_mlp_layers=2).

    Linear biases are omitted: each Linear is immediately followed by a
    BatchNorm whose mean subtraction cancels any constant per-feature bias, so
    the forward output is mathematically identical without them.
    """
    k1, k2 = jax.random.split(key, 2)
    lim1 = 1.0 / jnp.sqrt(in_dim)
    lim2 = 1.0 / jnp.sqrt(hidden_dim)
    return {
        "eps": jnp.zeros((1, 1), jnp.float32),  # GINConv init_eps = 0 (learn_eps)
        "w1": jax.random.uniform(k1, (in_dim, hidden_dim), jnp.float32, -lim1, lim1),
        "g1": jnp.ones((1, hidden_dim), jnp.float32),
        "be1": jnp.zeros((1, hidden_dim), jnp.float32),
        "w2": jax.random.uniform(k2, (hidden_dim, hidden_dim), jnp.float32, -lim2, lim2),
        "g2": jnp.ones((1, hidden_dim), jnp.float32),
        "be2": jnp.zeros((1, hidden_dim), jnp.float32),
        "g3": jnp.ones((1, hidden_dim), jnp.float32),
        "be3": jnp.zeros((1, hidden_dim), jnp.float32),
    }


if __name__ == "__main__":
    # Small, deterministic example consistent with GIN(in_feats, n_hidden, ...).
    N = 300          # deliberately NOT a multiple of 128: exercises padding + BN masking
    in_feats = 32
    n_hidden = 32
    n_layers = 3     # -> 2 GIN layers; output z is [N, 2 * n_hidden]

    key = jax.random.PRNGKey(0)
    k_adj, k_feat, k_p0, k_p1 = jax.random.split(key, 4)

    # Dense adjacency (adj[dst, src] = 1.0 if edge src->dst), ~5% density.
    adj = (jax.random.uniform(k_adj, (N, N)) < 0.05).astype(jnp.float32)
    h = jax.random.normal(k_feat, (N, in_feats), jnp.float32)

    layer_params = [
        make_layer_params(k_p0, in_feats, n_hidden),   # layer 0: in_feats -> n_hidden
        make_layer_params(k_p1, n_hidden, n_hidden),   # layer 1: n_hidden -> n_hidden
    ]

    z = gin_forward(adj, h, layer_params, n_hidden)
    jax.block_until_ready(z)

    z_ref = gin_reference(adj, h, layer_params, n_hidden)
    jax.block_until_ready(z_ref)

    assert z.shape == (N, (n_layers - 1) * n_hidden)
    assert bool(jnp.all(jnp.isfinite(z)))
    np.testing.assert_allclose(np.asarray(z), np.asarray(z_ref), rtol=2e-3, atol=2e-3)
    print("KERNEL_OK")
</pallas_src>

<mosaic_0001>
module attributes {stable_mosaic.version = 11 : i64} {
  func.func @gin_fused_kernel(%arg0: i32, %arg1: i32, %arg2: memref<384x128xbf16, #tpu.memory_space<vmem>>, %arg3: memref<128x128xf32, #tpu.memory_space<vmem>>, %arg4: memref<1x1x128xf32, #tpu.memory_space<vmem>>, %arg5: memref<1x128x128xf32, #tpu.memory_space<vmem>>, %arg6: memref<1x1x128xf32, #tpu.memory_space<vmem>>, %arg7: memref<1x1x128xf32, #tpu.memory_space<vmem>>, %arg8: memref<1x128x128xf32, #tpu.memory_space<vmem>>, %arg9: memref<1x1x128xf32, #tpu.memory_space<vmem>>, %arg10: memref<1x1x128xf32, #tpu.memory_space<vmem>>, %arg11: memref<1x1x128xf32, #tpu.memory_space<vmem>>, %arg12: memref<1x1x128xf32, #tpu.memory_space<vmem>>, %arg13: memref<1x384x128xf32, #tpu.memory_space<vmem>>, %arg14: memref<384x128xf32, #tpu.memory_space<vmem>>, %arg15: memref<384x128xf32, #tpu.memory_space<vmem>>) attributes {dimension_semantics = [#tpu.dimension_semantics<arbitrary>, #tpu.dimension_semantics<arbitrary>], iteration_bounds = array<i64: 2, 3>, scalar_prefetch = 0 : i64, scratch_operands = 2 : i64, tpu.core_type = #tpu.core_type<tc>, window_params = [{transform_indices = @transform_0, window_bounds = array<i64: 384, 128>}, {transform_indices = @transform_1, window_bounds = array<i64: 128, 128>}, {transform_indices = @transform_2, window_bounds = array<i64: 1, 1, 128>}, {transform_indices = @transform_3, window_bounds = array<i64: 1, 128, 128>}, {transform_indices = @transform_4, window_bounds = array<i64: 1, 1, 128>}, {transform_indices = @transform_5, window_bounds = array<i64: 1, 1, 128>}, {transform_indices = @transform_6, window_bounds = array<i64: 1, 128, 128>}, {transform_indices = @transform_7, window_bounds = array<i64: 1, 1, 128>}, {transform_indices = @transform_8, window_bounds = array<i64: 1, 1, 128>}, {transform_indices = @transform_9, window_bounds = array<i64: 1, 1, 128>}, {transform_indices = @transform_10, window_bounds = array<i64: 1, 1, 128>}, {transform_indices = @transform_11, window_bounds = array<i64: 1, 384, 128>}]} {
    %c0_i32 = arith.constant 0 : i32
    %0 = arith.cmpi eq, %arg1, %c0_i32 : i32
    %1 = arith.extui %0 : i1 to i32
    %c0_i32_0 = arith.constant 0 : i32
    %2 = arith.cmpi ne, %1, %c0_i32_0 : i32
    scf.if %2 {
      %cst_10 = arith.constant 0.000000e+00 : f32
      %19 = vector.broadcast %cst_10 : f32 to vector<384x128xf32>
      %c0_11 = arith.constant 0 : index
      %c0_12 = arith.constant 0 : index
      %20 = vector.load %arg15[%c0_11, %c0_12] : memref<384x128xf32, #tpu.memory_space<vmem>>, vector<384x128xf32>
      tpu.vector_store %arg15[%c0_11, %c0_12], %19 {strides = array<i32>} : memref<384x128xf32, #tpu.memory_space<vmem>>, vector<384x128xf32>,
    } else {
    }
    %c128_i32 = arith.constant 128 : i32
    %3 = arith.muli %arg1, %c128_i32 : i32
    %4 = tpu.assume_multiple %3, 128 : i32
    %c0_i32_1 = arith.constant 0 : i32
    %5 = arith.cmpi eq, %arg0, %c0_i32_1 : i32
    %6 = arith.extui %5 : i1 to i32
    %c0_i32_2 = arith.constant 0 : i32
    %7 = arith.cmpi ne, %6, %c0_i32_2 : i32
    scf.if %7 {
      %c0_10 = arith.constant 0 : index
      %c0_11 = arith.constant 0 : index
      %19 = vector.load %arg3[%c0_10, %c0_11] : memref<128x128xf32, #tpu.memory_space<vmem>>, vector<128x128xf32>
      %20 = arith.index_cast %4 : i32 to index
      %c0_12 = arith.constant 0 : index
      %21 = vector.load %arg14[%20, %c0_12] : memref<384x128xf32, #tpu.memory_space<vmem>>, vector<128x128xf32>
      tpu.vector_store %arg14[%20, %c0_12], %19 {strides = array<i32>} : memref<384x128xf32, #tpu.memory_space<vmem>>, vector<128x128xf32>,
    } else {
    }
    %c0 = arith.constant 0 : index
    %c0_3 = arith.constant 0 : index
    %8 = vector.load %arg15[%c0, %c0_3] : memref<384x128xf32, #tpu.memory_space<vmem>>, vector<384x128xf32>
    %c0_4 = arith.constant 0 : index
    %c0_5 = arith.constant 0 : index
    %9 = vector.load %arg2[%c0_4, %c0_5] : memref<384x128xbf16, #tpu.memory_space<vmem>>, vector<384x128xbf16>
    %10 = arith.extf %9 : vector<384x128xbf16> to vector<384x128xf32>
    %11 = arith.index_cast %4 : i32 to index
    %c0_6 = arith.constant 0 : index
    %12 = vector.load %arg14[%11, %c0_6] : memref<384x128xf32, #tpu.memory_space<vmem>>, vector<128x128xf32>
    %cst = arith.constant dense<0.000000e+00> : vector<384x128xf32>
    %13 = tpu.matmul %10, %12, %cst {dimension_numbers = #tpu.dot_dimension_numbers<[1], [0], [0], [1], [0, 0, 1, 1], [], []>} : vector<384x128xf32>, vector<128x128xf32>, vector<384x128xf32> -> vector<384x128xf32>
    %14 = arith.addf %8, %13 : vector<384x128xf32>
    %c0_7 = arith.constant 0 : index
    %c0_8 = arith.constant 0 : index
    %15 = vector.load %arg15[%c0_7, %c0_8] : memref<384x128xf32, #tpu.memory_space<vmem>>, vector<384x128xf32>
    tpu.vector_store %arg15[%c0_7, %c0_8], %14 {strides = array<i32>} : memref<384x128xf32, #tpu.memory_space<vmem>>, vector<384x128xf32>,
    %c2_i32 = arith.constant 2 : i32
    %16 = arith.cmpi eq, %arg1, %c2_i32 : i32
    %17 = arith.extui %16 : i1 to i32
    %c0_i32_9 = arith.constant 0 : i32
    %18 = arith.cmpi ne, %17, %c0_i32_9 : i32
    scf.if %18 {
      %c0_10 = arith.constant 0 : index
      %c0_11 = arith.constant 0 : index
      %c0_12 = arith.constant 0 : index
      %19 = vector.load %arg4[%c0_10, %c0_11, %c0_12] : memref<1x1x128xf32, #tpu.memory_space<vmem>>, vector<1x1x128xf32>
      %20 = vector.shape_cast %19 : vector<1x1x128xf32> to vector<1x128xf32>
      %cst_13 = arith.constant 1.000000e+00 : f32
      %21 = vector.broadcast %cst_13 : f32 to vector<1x128xf32>
      %22 = arith.addf %21, %20 : vector<1x128xf32>
      %c0_14 = arith.constant 0 : index
      %c0_15 = arith.constant 0 : index
      %23 = vector.load %arg14[%c0_14, %c0_15] : memref<384x128xf32, #tpu.memory_space<vmem>>, vector<384x128xf32>
      %24 = vector.broadcast %22 : vector<1x128xf32> to vector<384x128xf32>
      %25 = arith.mulf %24, %23 : vector<384x128xf32>
      %c0_16 = arith.constant 0 : index
      %c0_17 = arith.constant 0 : index
      %26 = vector.load %arg15[%c0_16, %c0_17] : memref<384x128xf32, #tpu.memory_space<vmem>>, vector<384x128xf32>
      %27 = arith.addf %25, %26 : vector<384x128xf32>
      %28 = tpu.iota {dimensions = array<i32: 0>} : vector<384x1xi32>
      %c300_i32 = arith.constant 300 : i32
      %29 = vector.broadcast %c300_i32 : i32 to vector<384x1xi32>
      %30 = arith.cmpi slt, %28, %29 : vector<384x1xi32>
      %c0_18 = arith.constant 0 : index
      %c0_19 = arith.constant 0 : index
      %c0_20 = arith.constant 0 : index
      %31 = vector.load %arg5[%c0_18, %c0_19, %c0_20] : memref<1x128x128xf32, #tpu.memory_space<vmem>>, vector<1x128x128xf32>
      %32 = vector.shape_cast %31 : vector<1x128x128xf32> to vector<128x128xf32>
      %cst_21 = arith.constant dense<0.000000e+00> : vector<384x128xf32>
      %33 = tpu.matmul %27, %32, %cst_21 {dimension_numbers = #tpu.dot_dimension_numbers<[1], [0], [0], [1], [0, 0, 1, 1], [], []>} : vector<384x128xf32>, vector<128x128xf32>, vector<384x128xf32> -> vector<384x128xf32>
      %c0_22 = arith.constant 0 : index
      %c0_23 = arith.constant 0 : index
      %c0_24 = arith.constant 0 : index
      %34 = vector.load %arg6[%c0_22, %c0_23, %c0_24] : memref<1x1x128xf32, #tpu.memory_space<vmem>>, vector<1x1x128xf32>
      %35 = vector.shape_cast %34 : vector<1x1x128xf32> to vector<1x128xf32>
      %c0_25 = arith.constant 0 : index
      %c0_26 = arith.constant 0 : index
      %c0_27 = arith.constant 0 : index
      %36 = vector.load %arg7[%c0_25, %c0_26, %c0_27] : memref<1x1x128xf32, #tpu.memory_space<vmem>>, vector<1x1x128xf32>
      %37 = vector.shape_cast %36 : vector<1x1x128xf32> to vector<1x128xf32>
      %cst_28 = arith.constant 0.000000e+00 : f32
      %38 = vector.shape_cast %30 : vector<384x1xi1> to vector<384x1xi1>
      %39 = vector.broadcast %38 : vector<384x1xi1> to vector<384x128xi1>
      %40 = vector.broadcast %cst_28 : f32 to vector<384x128xf32>
      %41 = arith.select %39, %33, %40 : vector<384x128xi1>, vector<384x128xf32>
      %cst_29 = arith.constant dense<0.000000e+00> : vector<128xf32>
      %42 = vector.multi_reduction <add>, %41, %cst_29 [0] : vector<384x128xf32> to vector<128xf32>
      %43 = vector.shape_cast %42 : vector<128xf32> to vector<1x128xf32>
      %cst_30 = arith.constant 0.00333333341 : f32
      %44 = vector.broadcast %cst_30 : f32 to vector<1x128xf32>
      %45 = arith.mulf %43, %44 : vector<1x128xf32>
      %46 = arith.mulf %41, %41 : vector<384x128xf32>
      %cst_31 = arith.constant dense<0.000000e+00> : vector<128xf32>
      %47 = vector.multi_reduction <add>, %46, %cst_31 [0] : vector<384x128xf32> to vector<128xf32>
      %48 = vector.shape_cast %47 : vector<128xf32> to vector<1x128xf32>
      %cst_32 = arith.constant 0.00333333341 : f32
      %49 = vector.broadcast %cst_32 : f32 to vector<1x128xf32>
      %50 = arith.mulf %48, %49 : vector<1x128xf32>
      %51 = arith.mulf %45, %45 : vector<1x128xf32>
      %52 = arith.subf %50, %51 : vector<1x128xf32>
      %cst_33 = arith.constant 0.000000e+00 : f32
      %53 = vector.broadcast %cst_33 : f32 to vector<1x128xf32>
      %54 = arith.maximumf %52, %53 : vector<1x128xf32>
      %55 = vector.broadcast %45 : vector<1x128xf32> to vector<384x128xf32>
      %56 = arith.subf %33, %55 : vector<384x128xf32>
      %cst_34 = arith.constant 9.99999974E-6 : f32
      %57 = vector.broadcast %cst_34 : f32 to vector<1x128xf32>
      %58 = arith.addf %54, %57 : vector<1x128xf32>
      %59 = math.rsqrt %58 : vector<1x128xf32>
      %60 = vector.broadcast %59 : vector<1x128xf32> to vector<384x128xf32>
      %61 = arith.mulf %56, %60 : vector<384x128xf32>
      %62 = vector.broadcast %35 : vector<1x128xf32> to vector<384x128xf32>
      %63 = arith.mulf %61, %62 : vector<384x128xf32>
      %64 = vector.broadcast %37 : vector<1x128xf32> to vector<384x128xf32>
      %65 = arith.addf %63, %64 : vector<384x128xf32>
      %cst_35 = arith.constant 0.000000e+00 : f32
      %66 = vector.broadcast %cst_35 : f32 to vector<384x128xf32>
      %67 = arith.maximumf %65, %66 : vector<384x128xf32>
      %c0_36 = arith.constant 0 : index
      %c0_37 = arith.constant 0 : index
      %c0_38 = arith.constant 0 : index
      %68 = vector.load %arg8[%c0_36, %c0_37, %c0_38] : memref<1x128x128xf32, #tpu.memory_space<vmem>>, vector<1x128x128xf32>
      %69 = vector.shape_cast %68 : vector<1x128x128xf32> to vector<128x128xf32>
      %cst_39 = arith.constant dense<0.000000e+00> : vector<384x128xf32>
      %70 = tpu.matmul %67, %69, %cst_39 {dimension_numbers = #tpu.dot_dimension_numbers<[1], [0], [0], [1], [0, 0, 1, 1], [], []>} : vector<384x128xf32>, vector<128x128xf32>, vector<384x128xf32> -> vector<384x128xf32>
      %c0_40 = arith.constant 0 : index
      %c0_41 = arith.constant 0 : index
      %c0_42 = arith.constant 0 : index
      %71 = vector.load %arg9[%c0_40, %c0_41, %c0_42] : memref<1x1x128xf32, #tpu.memory_space<vmem>>, vector<1x1x128xf32>
      %72 = vector.shape_cast %71 : vector<1x1x128xf32> to vector<1x128xf32>
      %c0_43 = arith.constant 0 : index
      %c0_44 = arith.constant 0 : index
      %c0_45 = arith.constant 0 : index
      %73 = vector.load %arg10[%c0_43, %c0_44, %c0_45] : memref<1x1x128xf32, #tpu.memory_space<vmem>>, vector<1x1x128xf32>
      %74 = vector.shape_cast %73 : vector<1x1x128xf32> to vector<1x128xf32>
      %cst_46 = arith.constant 0.000000e+00 : f32
      %75 = vector.shape_cast %30 : vector<384x1xi1> to vector<384x1xi1>
      %76 = vector.broadcast %75 : vector<384x1xi1> to vector<384x128xi1>
      %77 = vector.broadcast %cst_46 : f32 to vector<384x128xf32>
      %78 = arith.select %76, %70, %77 : vector<384x128xi1>, vector<384x128xf32>
      %cst_47 = arith.constant dense<0.000000e+00> : vector<128xf32>
      %79 = vector.multi_reduction <add>, %78, %cst_47 [0] : vector<384x128xf32> to vector<128xf32>
      %80 = vector.shape_cast %79 : vector<128xf32> to vector<1x128xf32>
      %cst_48 = arith.constant 0.00333333341 : f32
      %81 = vector.broadcast %cst_48 : f32 to vector<1x128xf32>
      %82 = arith.mulf %80, %81 : vector<1x128xf32>
      %83 = arith.mulf %78, %78 : vector<384x128xf32>
      %cst_49 = arith.constant dense<0.000000e+00> : vector<128xf32>
      %84 = vector.multi_reduction <add>, %83, %cst_49 [0] : vector<384x128xf32> to vector<128xf32>
      %85 = vector.shape_cast %84 : vector<128xf32> to vector<1x128xf32>
      %cst_50 = arith.constant 0.00333333341 : f32
      %86 = vector.broadcast %cst_50 : f32 to vector<1x128xf32>
      %87 = arith.mulf %85, %86 : vector<1x128xf32>
      %88 = arith.mulf %82, %82 : vector<1x128xf32>
      %89 = arith.subf %87, %88 : vector<1x128xf32>
      %cst_51 = arith.constant 0.000000e+00 : f32
      %90 = vector.broadcast %cst_51 : f32 to vector<1x128xf32>
      %91 = arith.maximumf %89, %90 : vector<1x128xf32>
      %92 = vector.broadcast %82 : vector<1x128xf32> to vector<384x128xf32>
      %93 = arith.subf %70, %92 : vector<384x128xf32>
      %cst_52 = arith.constant 9.99999974E-6 : f32
      %94 = vector.broadcast %cst_52 : f32 to vector<1x128xf32>
      %95 = arith.addf %91, %94 : vector<1x128xf32>
      %96 = math.rsqrt %95 : vector<1x128xf32>
      %97 = vector.broadcast %96 : vector<1x128xf32> to vector<384x128xf32>
      %98 = arith.mulf %93, %97 : vector<384x128xf32>
      %99 = vector.broadcast %72 : vector<1x128xf32> to vector<384x128xf32>
      %100 = arith.mulf %98, %99 : vector<384x128xf32>
      %101 = vector.broadcast %74 : vector<1x128xf32> to vector<384x128xf32>
      %102 = arith.addf %100, %101 : vector<384x128xf32>
      %cst_53 = arith.constant 0.000000e+00 : f32
      %103 = vector.broadcast %cst_53 : f32 to vector<384x128xf32>
      %104 = arith.maximumf %102, %103 : vector<384x128xf32>
      %c0_54 = arith.constant 0 : index
      %c0_55 = arith.constant 0 : index
      %c0_56 = arith.constant 0 : index
      %105 = vector.load %arg11[%c0_54, %c0_55, %c0_56] : memref<1x1x128xf32, #tpu.memory_space<vmem>>, vector<1x1x128xf32>
      %106 = vector.shape_cast %105 : vector<1x1x128xf32> to vector<1x128xf32>
      %c0_57 = arith.constant 0 : index
      %c0_58 = arith.constant 0 : index
      %c0_59 = arith.constant 0 : index
      %107 = vector.load %arg12[%c0_57, %c0_58, %c0_59] : memref<1x1x128xf32, #tpu.memory_space<vmem>>, vector<1x1x128xf32>
      %108 = vector.shape_cast %107 : vector<1x1x128xf32> to vector<1x128xf32>
      %cst_60 = arith.constant 0.000000e+00 : f32
      %109 = vector.shape_cast %30 : vector<384x1xi1> to vector<384x1xi1>
      %110 = vector.broadcast %109 : vector<384x1xi1> to vector<384x128xi1>
      %111 = vector.broadcast %cst_60 : f32 to vector<384x128xf32>
      %112 = arith.select %110, %104, %111 : vector<384x128xi1>, vector<384x128xf32>
      %cst_61 = arith.constant dense<0.000000e+00> : vector<128xf32>
      %113 = vector.multi_reduction <add>, %112, %cst_61 [0] : vector<384x128xf32> to vector<128xf32>
      %114 = vector.shape_cast %113 : vector<128xf32> to vector<1x128xf32>
      %cst_62 = arith.constant 0.00333333341 : f32
      %115 = vector.broadcast %cst_62 : f32 to vector<1x128xf32>
      %116 = arith.mulf %114, %115 : vector<1x128xf32>
      %117 = arith.mulf %112, %112 : vector<384x128xf32>
      %cst_63 = arith.constant dense<0.000000e+00> : vector<128xf32>
      %118 = vector.multi_reduction <add>, %117, %cst_63 [0] : vector<384x128xf32> to vector<128xf32>
      %119 = vector.shape_cast %118 : vector<128xf32> to vector<1x128xf32>
      %cst_64 = arith.constant 0.00333333341 : f32
      %120 = vector.broadcast %cst_64 : f32 to vector<1x128xf32>
      %121 = arith.mulf %119, %120 : vector<1x128xf32>
      %122 = arith.mulf %116, %116 : vector<1x128xf32>
      %123 = arith.subf %121, %122 : vector<1x128xf32>
      %cst_65 = arith.constant 0.000000e+00 : f32
      %124 = vector.broadcast %cst_65 : f32 to vector<1x128xf32>
      %125 = arith.maximumf %123, %124 : vector<1x128xf32>
      %126 = vector.broadcast %116 : vector<1x128xf32> to vector<384x128xf32>
      %127 = arith.subf %104, %126 : vector<384x128xf32>
      %cst_66 = arith.constant 9.99999974E-6 : f32
      %128 = vector.broadcast %cst_66 : f32 to vector<1x128xf32>
      %129 = arith.addf %125, %128 : vector<1x128xf32>
      %130 = math.rsqrt %129 : vector<1x128xf32>
      %131 = vector.broadcast %130 : vector<1x128xf32> to vector<384x128xf32>
      %132 = arith.mulf %127, %131 : vector<384x128xf32>
      %133 = vector.broadcast %106 : vector<1x128xf32> to vector<384x128xf32>
      %134 = arith.mulf %132, %133 : vector<384x128xf32>
      %135 = vector.broadcast %108 : vector<1x128xf32> to vector<384x128xf32>
      %136 = arith.addf %134, %135 : vector<384x128xf32>
      %cst_67 = arith.constant 0.000000e+00 : f32
      %137 = vector.broadcast %cst_67 : f32 to vector<384x128xf32>
      %138 = arith.maximumf %136, %137 : vector<384x128xf32>
      %c0_68 = arith.constant 0 : index
      %c0_69 = arith.constant 0 : index
      %c0_70 = arith.constant 0 : index
      %139 = vector.load %arg13[%c0_68, %c0_69, %c0_70] : memref<1x384x128xf32, #tpu.memory_space<vmem>>, vector<1x384x128xf32>
      %140 = vector.shape_cast %139 : vector<1x384x128xf32> to vector<384x128xf32>
      %141 = vector.shape_cast %138 : vector<384x128xf32> to vector<1x384x128xf32>
      tpu.vector_store %arg13[%c0_68, %c0_69, %c0_70], %141 {strides = array<i32>} : memref<1x384x128xf32, #tpu.memory_space<vmem>>, vector<1x384x128xf32>,
      %c0_71 = arith.constant 0 : index
      %c0_72 = arith.constant 0 : index
      %142 = vector.load %arg14[%c0_71, %c0_72] : memref<384x128xf32, #tpu.memory_space<vmem>>, vector<384x128xf32>
      tpu.vector_store %arg14[%c0_71, %c0_72], %138 {strides = array<i32>} : memref<384x128xf32, #tpu.memory_space<vmem>>, vector<384x128xf32>,
    } else {
    }
    return
  }
  func.func @transform_0(%arg0: i32, %arg1: i32) -> (i32, i32) {
    %c0_i32 = arith.constant 0 : i32
    %c0_i32_0 = arith.constant 0 : i32
    return %c0_i32, %arg1 : i32, i32
  }
  func.func @transform_1(%arg0: i32, %arg1: i32) -> (i32, i32) {
    %c0_i32 = arith.constant 0 : i32
    %c0_i32_0 = arith.constant 0 : i32
    return %arg1, %c0_i32 : i32, i32
  }
  func.func @transform_2(%arg0: i32, %arg1: i32) -> (i32, i32, i32) {
    %c0_i32 = arith.constant 0 : i32
    %c0_i32_0 = arith.constant 0 : i32
    %c0_i32_1 = arith.constant 0 : i32
    return %arg0, %c0_i32, %c0_i32_0 : i32, i32, i32
  }
  func.func @transform_3(%arg0: i32, %arg1: i32) -> (i32, i32, i32) {
    %c0_i32 = arith.constant 0 : i32
    %c0_i32_0 = arith.constant 0 : i32
    %c0_i32_1 = arith.constant 0 : i32
    return %arg0, %c0_i32, %c0_i32_0 : i32, i32, i32
  }
  func.func @transform_4(%arg0: i32, %arg1: i32) -> (i32, i32, i32) {
    %c0_i32 = arith.constant 0 : i32
    %c0_i32_0 = arith.constant 0 : i32
    %c0_i32_1 = arith.constant 0 : i32
    return %arg0, %c0_i32, %c0_i32_0 : i32, i32, i32
  }
  func.func @transform_5(%arg0: i32, %arg1: i32) -> (i32, i32, i32) {
    %c0_i32 = arith.constant 0 : i32
    %c0_i32_0 = arith.constant 0 : i32
    %c0_i32_1 = arith.constant 0 : i32
    return %arg0, %c0_i32, %c0_i32_0 : i32, i32, i32
  }
  func.func @transform_6(%arg0: i32, %arg1: i32) -> (i32, i32, i32) {
    %c0_i32 = arith.constant 0 : i32
    %c0_i32_0 = arith.constant 0 : i32
    %c0_i32_1 = arith.constant 0 : i32
    return %arg0, %c0_i32, %c0_i32_0 : i32, i32, i32
  }
  func.func @transform_7(%arg0: i32, %arg1: i32) -> (i32, i32, i32) {
    %c0_i32 = arith.constant 0 : i32
    %c0_i32_0 = arith.constant 0 : i32
    %c0_i32_1 = arith.constant 0 : i32
    return %arg0, %c0_i32, %c0_i32_0 : i32, i32, i32
  }
  func.func @transform_8(%arg0: i32, %arg1: i32) -> (i32, i32, i32) {
    %c0_i32 = arith.constant 0 : i32
    %c0_i32_0 = arith.constant 0 : i32
    %c0_i32_1 = arith.constant 0 : i32
    return %arg0, %c0_i32, %c0_i32_0 : i32, i32, i32
  }
  func.func @transform_9(%arg0: i32, %arg1: i32) -> (i32, i32, i32) {
    %c0_i32 = arith.constant 0 : i32
    %c0_i32_0 = arith.constant 0 : i32
    %c0_i32_1 = arith.constant 0 : i32
    return %arg0, %c0_i32, %c0_i32_0 : i32, i32, i32
  }
  func.func @transform_10(%arg0: i32, %arg1: i32) -> (i32, i32, i32) {
    %c0_i32 = arith.constant 0 : i32
    %c0_i32_0 = arith.constant 0 : i32
    %c0_i32_1 = arith.constant 0 : i32
    return %arg0, %c0_i32, %c0_i32_0 : i32, i32, i32
  }
  func.func @transform_11(%arg0: i32, %arg1: i32) -> (i32, i32, i32) {
    %c0_i32 = arith.constant 0 : i32
    %c0_i32_0 = arith.constant 0 : i32
    %c0_i32_1 = arith.constant 0 : i32
    return %arg0, %c0_i32, %c0_i32_0 : i32, i32, i32
  }
}

</mosaic_0001>

<llo_original>
// kernel: tpu_custom_call.1
$region0: #{tpu_custom_call.1}
  #allocation0 [shape = 'u32[]', space=smem, size = 0x4, offset = 0x4, fixed_abs, tag = 'smem constant byte address 0x4 - core index']
  #allocation1 [shape = 'u32[144,128]{1,0:T(1,128)}', space=vmem, size = 0x12000, scoped, tag = 'internal scratch']
  #allocation2 [shape = 'f32[384,128]{1,0:T(8,128)}', space=vmem, size = 0x30000, scoped, tag = 'scratch operand']
  #allocation3 [shape = 'f32[384,128]{1,0:T(8,128)}', space=vmem, size = 0x30000, scoped, tag = 'scratch operand']
  %s0 = inlined_call_operand.hbm [shape: bf16[384,384], index: 0, kind: input, shape index: {}]
  %s1 = inlined_call_operand.hbm [shape: f32[384,128], index: 1, kind: input, shape index: {}]
  %s2 = inlined_call_operand.vmem [shape: f32[2,1,128], index: 2, kind: input, shape index: {}]
  %s3 = inlined_call_operand.hbm [shape: f32[2,128,128], index: 3, kind: input, shape index: {}]
  %s4 = inlined_call_operand.vmem [shape: f32[2,1,128], index: 4, kind: input, shape index: {}]
  %s5 = inlined_call_operand.vmem [shape: f32[2,1,128], index: 5, kind: input, shape index: {}]
  %s6 = inlined_call_operand.hbm [shape: f32[2,128,128], index: 6, kind: input, shape index: {}]
  %s7 = inlined_call_operand.vmem [shape: f32[2,1,128], index: 7, kind: input, shape index: {}]
  %s8 = inlined_call_operand.vmem [shape: f32[2,1,128], index: 8, kind: input, shape index: {}]
  %s9 = inlined_call_operand.vmem [shape: f32[2,1,128], index: 9, kind: input, shape index: {}]
  %s10 = inlined_call_operand.vmem [shape: f32[2,1,128], index: 10, kind: input, shape index: {}]
  %s11 = inlined_call_operand.hbm [shape: f32[2,384,128], index: 11, kind: output, shape index: {}]
  %s12 = sld [smem:[#allocation0]]
  $region105: #{tpu_custom_call.1} parent=0
    _
  %s14 = ssub.s32 1, %s12
  %s15 = scalar_select 0, %s14, %s12
  $region1: #{tpu_custom_call.1} parent=0
    #allocation4 [shape = 'u8[196608]{0}', space=vmem, size = 0x30000, scoped, tag = 'input window, operand 0']
    #allocation5 [shape = 's32[2]{0}', space=sflag, size = 0x8, scoped, tag = 'scoped memory for tpu_custom_call.1']
    #allocation6 [shape = 's32[2]{0}', space=sflag, size = 0x8, scoped, tag = 'scoped memory for tpu_custom_call.1']
    #allocation7 [shape = 'u8[131072]{0}', space=vmem, size = 0x20000, scoped, tag = 'input window, operand 1']
    #allocation8 [shape = 's32[2]{0}', space=sflag, size = 0x8, scoped, tag = 'scoped memory for tpu_custom_call.1']
    #allocation9 [shape = 'u8[131072]{0}', space=vmem, size = 0x20000, scoped, tag = 'input window, operand 3']
    #allocation10 [shape = 'u8[131072]{0}', space=vmem, size = 0x20000, scoped, tag = 'input window, operand 6']
    #allocation11 [shape = 's32[2]{0}', space=sflag, size = 0x8, scoped, tag = 'scoped memory for tpu_custom_call.1']
    #allocation12 [shape = 'u8[393216]{0}', space=vmem, size = 0x60000, scoped, tag = 'output window, operand 0']
    %16 = vsyncpa [#allocation5], 0
    %s17 = scalar_lea.sflag [#allocation5], 1
    %18 = vsyncpa %s17, 0
    %19 = vsyncpa [#allocation8], 0
    %s20 = scalar_lea.sflag [#allocation8], 1
    %21 = vsyncpa %s20, 0
    %22 = vsyncpa [#allocation11], 0
    %s23 = scalar_lea.sflag [#allocation11], 1
    %24 = vsyncpa %s23, 0
    %25 = vsyncpa [#allocation6], 0
    %s26 = scalar_lea.sflag [#allocation6], 1
    %27 = vsyncpa %s26, 0
    loop: start=0, step=1, limit=8
    $region2: #{tpu_custom_call.1} parent=1 // loop_pre_header
      _
    $region3: #{tpu_custom_call.1} parent=1 // loop_header
      %s29 = sphi 0, %s33
      %p30 = scmp.ge.s32.totalorder %s29, 8
      %s36 = sphi 0, %s48
      %s37 = sphi 0, %s44
      %s38 = sphi 0, %s36
      %s39 = sphi 0, %s37
      %s40 = sphi 0, %s38
      %s41 = sphi 0, %s39
      %s51 = sphi 0, %s53
      %s54 = sphi 0, %s51
      %s55 = sphi 0, %s54
      %s71 = sphi 0, %s55
      %s77 = sphi 0, %s79
      %s80 = sphi 0, %s77
      %s81 = sphi 0, %s80
      %s97 = sphi 0, %s81
      %s103 = sphi 0, %s105
      %s106 = sphi 0, %s103
      %s107 = sphi 0, %s106
      %s123 = sphi 0, %s107
      %s129 = sphi 0, %s131
      %s132 = sphi 0, %s129
      %s133 = sphi 0, %s132
      %s149 = sphi 0, %s133
      %s155 = sphi 0, %s157
      %s158 = sphi 0, %s155
      %s159 = sphi 0, %s158
      %s175 = sphi 0, %s159
      %s181 = sphi 0, %s183
      %s184 = sphi 0, %s181
      %s185 = sphi 0, %s184
      %s201 = sphi 0, %s185
      %s207 = sphi 0, %s209
      %s210 = sphi 0, %s207
      %s211 = sphi 0, %s210
      %s227 = sphi 0, %s211
      %s233 = sphi 0, %s235
      %s236 = sphi 0, %s233
      %s237 = sphi 0, %s236
      %s253 = sphi 0, %s237
      %s259 = sphi 0, %s261
      %s262 = sphi 0, %s259
      %s263 = sphi 0, %s262
      %s279 = sphi 0, %s263
      %s285 = sphi 0, %s287
      %s288 = sphi 0, %s285
      %s289 = sphi 0, %s288
      %s305 = sphi 0, %s289
      %s311 = sphi 0, %s313
      %s314 = sphi 0, %s311
      %s315 = sphi 0, %s314
      %s331 = sphi 0, %s315
      %s337 = sphi 0, %s339
      %s340 = sphi 0, %s337
      %s341 = sphi 0, %s340
      %s357 = sphi 0, %s341
    $region4: #{tpu_custom_call.1} parent=1 // loop_header_branch
      %32 = sbr.rel (%p30) target = $region8
    $region5: #{tpu_custom_call.1} parent=1 // loop_body
      %s34 = ssub.s32 %s29, 1
      %s35 = ssub.s32 %s29, 2
      %s42 = sadd.s32 1, %s37
      %p43 = scmp.ge.s32.totalorder %s42, 3
      %s44 = scalar_select %p43, 0, %s42
      %s45 = sadd.s32 1, %s36
      %s46 = scalar_select %p43, %s45, %s36
      %p47 = scmp.ge.s32.totalorder %s46, 2
      %s48 = scalar_select %p47, 0, %s46
      %s49 = ssub.s32 %s37, %s44
      %p50 = scmp.eq.s32.totalorder %s49, 0
      %s52 = sadd.s32 %s51, 1
      %s53 = scalar_select %p50, %s51, %s52
      %p56 = pneg %p50
      %p57 = scmp.eq.s32.totalorder %s29, 5
      %p58 = por %p56, %p57
      %p59 = scmp.ne.s32.totalorder %s51, %s54
      %p60 = scmp.eq.s32.totalorder %s29, 0
      %p61 = por %p59, %p60
      %p62 = scmp.ne.s32.totalorder %s51, %s54
      %p63 = scmp.eq.s32.totalorder %s34, 5
      %p64 = por %p62, %p63
      %p65 = scmp.ne.s32.totalorder %s54, %s55
      %p66 = scmp.eq.s32.totalorder %s34, 0
      %p67 = por %p65, %p66
      %p68 = scmp.ne.s32.totalorder %s54, %s55
      %p69 = scmp.eq.s32.totalorder %s35, 5
      %p70 = por %p68, %p69
      %p72 = scmp.ne.s32.totalorder %s55, %s71
      %p73 = scmp.eq.s32.totalorder %s35, 0
      %p74 = por %p72, %p73
      %s75 = ssub.s32 %s37, %s44
      %p76 = scmp.eq.s32.totalorder %s75, 0
      %s78 = sadd.s32 %s77, 1
      %s79 = scalar_select %p76, %s77, %s78
      %p82 = pneg %p76
      %p83 = scmp.eq.s32.totalorder %s29, 5
      %p84 = por %p82, %p83
      %p85 = scmp.ne.s32.totalorder %s77, %s80
      %p86 = scmp.eq.s32.totalorder %s29, 0
      %p87 = por %p85, %p86
      %p88 = scmp.ne.s32.totalorder %s77, %s80
      %p89 = scmp.eq.s32.totalorder %s34, 5
      %p90 = por %p88, %p89
      %p91 = scmp.ne.s32.totalorder %s80, %s81
      %p92 = scmp.eq.s32.totalorder %s34, 0
      %p93 = por %p91, %p92
      %p94 = scmp.ne.s32.totalorder %s80, %s81
      %p95 = scmp.eq.s32.totalorder %s35, 5
      %p96 = por %p94, %p95
      %p98 = scmp.ne.s32.totalorder %s81, %s97
      %p99 = scmp.eq.s32.totalorder %s35, 0
      %p100 = por %p98, %p99
      %s101 = ssub.s32 %s36, %s48
      %p102 = scmp.eq.s32.totalorder %s101, 0
      %s104 = sadd.s32 %s103, 1
      %s105 = scalar_select %p102, %s103, %s104
      %p108 = pneg %p102
      %p109 = scmp.eq.s32.totalorder %s29, 5
      %p110 = por %p108, %p109
      %p111 = scmp.ne.s32.totalorder %s103, %s106
      %p112 = scmp.eq.s32.totalorder %s29, 0
      %p113 = por %p111, %p112
      %p114 = scmp.ne.s32.totalorder %s103, %s106
      %p115 = scmp.eq.s32.totalorder %s34, 5
      %p116 = por %p114, %p115
      %p117 = scmp.ne.s32.totalorder %s106, %s107
      %p118 = scmp.eq.s32.totalorder %s34, 0
      %p119 = por %p117, %p118
      %p120 = scmp.ne.s32.totalorder %s106, %s107
      %p121 = scmp.eq.s32.totalorder %s35, 5
      %p122 = por %p120, %p121
      %p124 = scmp.ne.s32.totalorder %s107, %s123
      %p125 = scmp.eq.s32.totalorder %s35, 0
      %p126 = por %p124, %p125
      %s127 = ssub.s32 %s36, %s48
      %p128 = scmp.eq.s32.totalorder %s127, 0
      %s130 = sadd.s32 %s129, 1
      %s131 = scalar_select %p128, %s129, %s130
      %p134 = pneg %p128
      %p135 = scmp.eq.s32.totalorder %s29, 5
      %p136 = por %p134, %p135
      %p137 = scmp.ne.s32.totalorder %s129, %s132
      %p138 = scmp.eq.s32.totalorder %s29, 0
      %p139 = por %p137, %p138
      %p140 = scmp.ne.s32.totalorder %s129, %s132
      %p141 = scmp.eq.s32.totalorder %s34, 5
      %p142 = por %p140, %p141
      %p143 = scmp.ne.s32.totalorder %s132, %s133
      %p144 = scmp.eq.s32.totalorder %s34, 0
      %p145 = por %p143, %p144
      %p146 = scmp.ne.s32.totalorder %s132, %s133
      %p147 = scmp.eq.s32.totalorder %s35, 5
      %p148 = por %p146, %p147
      %p150 = scmp.ne.s32.totalorder %s133, %s149
      %p151 = scmp.eq.s32.totalorder %s35, 0
      %p152 = por %p150, %p151
      %s153 = ssub.s32 %s36, %s48
      %p154 = scmp.eq.s32.totalorder %s153, 0
      %s156 = sadd.s32 %s155, 1
      %s157 = scalar_select %p154, %s155, %s156
      %p160 = pneg %p154
      %p161 = scmp.eq.s32.totalorder %s29, 5
      %p162 = por %p160, %p161
      %p163 = scmp.ne.s32.totalorder %s155, %s158
      %p164 = scmp.eq.s32.totalorder %s29, 0
      %p165 = por %p163, %p164
      %p166 = scmp.ne.s32.totalorder %s155, %s158
      %p167 = scmp.eq.s32.totalorder %s34, 5
      %p168 = por %p166, %p167
      %p169 = scmp.ne.s32.totalorder %s158, %s159
      %p170 = scmp.eq.s32.totalorder %s34, 0
      %p171 = por %p169, %p170
      %p172 = scmp.ne.s32.totalorder %s158, %s159
      %p173 = scmp.eq.s32.totalorder %s35, 5
      %p174 = por %p172, %p173
      %p176 = scmp.ne.s32.totalorder %s159, %s175
      %p177 = scmp.eq.s32.totalorder %s35, 0
      %p178 = por %p176, %p177
      %s179 = ssub.s32 %s36, %s48
      %p180 = scmp.eq.s32.totalorder %s179, 0
      %s182 = sadd.s32 %s181, 1
      %s183 = scalar_select %p180, %s181, %s182
      %p186 = pneg %p180
      %p187 = scmp.eq.s32.totalorder %s29, 5
      %p188 = por %p186, %p187
      %p189 = scmp.ne.s32.totalorder %s181, %s184
      %p190 = scmp.eq.s32.totalorder %s29, 0
      %p191 = por %p189, %p190
      %p192 = scmp.ne.s32.totalorder %s181, %s184
      %p193 = scmp.eq.s32.totalorder %s34, 5
      %p194 = por %p192, %p193
      %p195 = scmp.ne.s32.totalorder %s184, %s185
      %p196 = scmp.eq.s32.totalorder %s34, 0
      %p197 = por %p195, %p196
      %p198 = scmp.ne.s32.totalorder %s184, %s185
      %p199 = scmp.eq.s32.totalorder %s35, 5
      %p200 = por %p198, %p199
      %p202 = scmp.ne.s32.totalorder %s185, %s201
      %p203 = scmp.eq.s32.totalorder %s35, 0
      %p204 = por %p202, %p203
      %s205 = ssub.s32 %s36, %s48
      %p206 = scmp.eq.s32.totalorder %s205, 0
      %s208 = sadd.s32 %s207, 1
      %s209 = scalar_select %p206, %s207, %s208
      %p212 = pneg %p206
      %p213 = scmp.eq.s32.totalorder %s29, 5
      %p214 = por %p212, %p213
      %p215 = scmp.ne.s32.totalorder %s207, %s210
      %p216 = scmp.eq.s32.totalorder %s29, 0
      %p217 = por %p215, %p216
      %p218 = scmp.ne.s32.totalorder %s207, %s210
      %p219 = scmp.eq.s32.totalorder %s34, 5
      %p220 = por %p218, %p219
      %p221 = scmp.ne.s32.totalorder %s210, %s211
      %p222 = scmp.eq.s32.totalorder %s34, 0
      %p223 = por %p221, %p222
      %p224 = scmp.ne.s32.totalorder %s210, %s211
      %p225 = scmp.eq.s32.totalorder %s35, 5
      %p226 = por %p224, %p225
      %p228 = scmp.ne.s32.totalorder %s211, %s227
      %p229 = scmp.eq.s32.totalorder %s35, 0
      %p230 = por %p228, %p229
      %s231 = ssub.s32 %s36, %s48
      %p232 = scmp.eq.s32.totalorder %s231, 0
      %s234 = sadd.s32 %s233, 1
      %s235 = scalar_select %p232, %s233, %s234
      %p238 = pneg %p232
      %p239 = scmp.eq.s32.totalorder %s29, 5
      %p240 = por %p238, %p239
      %p241 = scmp.ne.s32.totalorder %s233, %s236
      %p242 = scmp.eq.s32.totalorder %s29, 0
      %p243 = por %p241, %p242
      %p244 = scmp.ne.s32.totalorder %s233, %s236
      %p245 = scmp.eq.s32.totalorder %s34, 5
      %p246 = por %p244, %p245
      %p247 = scmp.ne.s32.totalorder %s236, %s237
      %p248 = scmp.eq.s32.totalorder %s34, 0
      %p249 = por %p247, %p248
      %p250 = scmp.ne.s32.totalorder %s236, %s237
      %p251 = scmp.eq.s32.totalorder %s35, 5
      %p252 = por %p250, %p251
      %p254 = scmp.ne.s32.totalorder %s237, %s253
      %p255 = scmp.eq.s32.totalorder %s35, 0
      %p256 = por %p254, %p255
      %s257 = ssub.s32 %s36, %s48
      %p258 = scmp.eq.s32.totalorder %s257, 0
      %s260 = sadd.s32 %s259, 1
      %s261 = scalar_select %p258, %s259, %s260
      %p264 = pneg %p258
      %p265 = scmp.eq.s32.totalorder %s29, 5
      %p266 = por %p264, %p265
      %p267 = scmp.ne.s32.totalorder %s259, %s262
      %p268 = scmp.eq.s32.totalorder %s29, 0
      %p269 = por %p267, %p268
      %p270 = scmp.ne.s32.totalorder %s259, %s262
      %p271 = scmp.eq.s32.totalorder %s34, 5
      %p272 = por %p270, %p271
      %p273 = scmp.ne.s32.totalorder %s262, %s263
      %p274 = scmp.eq.s32.totalorder %s34, 0
      %p275 = por %p273, %p274
      %p276 = scmp.ne.s32.totalorder %s262, %s263
      %p277 = scmp.eq.s32.totalorder %s35, 5
      %p278 = por %p276, %p277
      %p280 = scmp.ne.s32.totalorder %s263, %s279
      %p281 = scmp.eq.s32.totalorder %s35, 0
      %p282 = por %p280, %p281
      %s283 = ssub.s32 %s36, %s48
      %p284 = scmp.eq.s32.totalorder %s283, 0
      %s286 = sadd.s32 %s285, 1
      %s287 = scalar_select %p284, %s285, %s286
      %p290 = pneg %p284
      %p291 = scmp.eq.s32.totalorder %s29, 5
      %p292 = por %p290, %p291
      %p293 = scmp.ne.s32.totalorder %s285, %s288
      %p294 = scmp.eq.s32.totalorder %s29, 0
      %p295 = por %p293, %p294
      %p296 = scmp.ne.s32.totalorder %s285, %s288
      %p297 = scmp.eq.s32.totalorder %s34, 5
      %p298 = por %p296, %p297
      %p299 = scmp.ne.s32.totalorder %s288, %s289
      %p300 = scmp.eq.s32.totalorder %s34, 0
      %p301 = por %p299, %p300
      %p302 = scmp.ne.s32.totalorder %s288, %s289
      %p303 = scmp.eq.s32.totalorder %s35, 5
      %p304 = por %p302, %p303
      %p306 = scmp.ne.s32.totalorder %s289, %s305
      %p307 = scmp.eq.s32.totalorder %s35, 0
      %p308 = por %p306, %p307
      %s309 = ssub.s32 %s36, %s48
      %p310 = scmp.eq.s32.totalorder %s309, 0
      %s312 = sadd.s32 %s311, 1
      %s313 = scalar_select %p310, %s311, %s312
      %p316 = pneg %p310
      %p317 = scmp.eq.s32.totalorder %s29, 5
      %p318 = por %p316, %p317
      %p319 = scmp.ne.s32.totalorder %s311, %s314
      %p320 = scmp.eq.s32.totalorder %s29, 0
      %p321 = por %p319, %p320
      %p322 = scmp.ne.s32.totalorder %s311, %s314
      %p323 = scmp.eq.s32.totalorder %s34, 5
      %p324 = por %p322, %p323
      %p325 = scmp.ne.s32.totalorder %s314, %s315
      %p326 = scmp.eq.s32.totalorder %s34, 0
      %p327 = por %p325, %p326
      %p328 = scmp.ne.s32.totalorder %s314, %s315
      %p329 = scmp.eq.s32.totalorder %s35, 5
      %p330 = por %p328, %p329
      %p332 = scmp.ne.s32.totalorder %s315, %s331
      %p333 = scmp.eq.s32.totalorder %s35, 0
      %p334 = por %p332, %p333
      %s335 = ssub.s32 %s36, %s48
      %p336 = scmp.eq.s32.totalorder %s335, 0
      %s338 = sadd.s32 %s337, 1
      %s339 = scalar_select %p336, %s337, %s338
      %p342 = pneg %p336
      %p343 = scmp.eq.s32.totalorder %s29, 5
      %p344 = por %p342, %p343
      %p345 = scmp.ne.s32.totalorder %s337, %s340
      %p346 = scmp.eq.s32.totalorder %s29, 0
      %p347 = por %p345, %p346
      %p348 = scmp.ne.s32.totalorder %s337, %s340
      %p349 = scmp.eq.s32.totalorder %s34, 5
      %p350 = por %p348, %p349
      %p351 = scmp.ne.s32.totalorder %s340, %s341
      %p352 = scmp.eq.s32.totalorder %s34, 0
      %p353 = por %p351, %p352
      %p354 = scmp.ne.s32.totalorder %s340, %s341
      %p355 = scmp.eq.s32.totalorder %s35, 5
      %p356 = por %p354, %p355
      %p358 = scmp.ne.s32.totalorder %s341, %s357
      %p359 = scmp.eq.s32.totalorder %s35, 0
      %p360 = por %p358, %p359
      %p361 = scmp.le.s32.totalorder 1, %s29
      %p362 = scmp.lt.s32.totalorder %s29, 7
      %p363 = pnand %p361, %p362
      %p364 = pneg %p363
      // Predicated region
      $region9: #{tpu_custom_call.1} parent=5 // pred_check
        _
      $region10: #{tpu_custom_call.1} parent=5 // pred_check_branch
        %366 = sbr.rel (%p363) target = $region12
      $region11: #{tpu_custom_call.1} parent=5 // pred_region
        %s367 = ssub.s32 %s29, 1
      $region12: #{tpu_custom_call.1} parent=5 // pred_fallthru
        _
      %p368 = scmp.lt.s32.totalorder %s29, 6
      // Predicated region
      $region13: #{tpu_custom_call.1} parent=5 // pred_check
        %p369 = pneg %p368
      $region14: #{tpu_custom_call.1} parent=5 // pred_check_branch
        %371 = sbr.rel (%p369) target = $region16
      $region15: #{tpu_custom_call.1} parent=5 // pred_region
        // Predicated region
        $region17: #{tpu_custom_call.1} parent=15 // pred_check
          %p372 = pneg %p61
        $region18: #{tpu_custom_call.1} parent=15 // pred_check_branch
          %374 = sbr.rel (%p372) target = $region20
        $region19: #{tpu_custom_call.1} parent=15 // pred_region
          %s375 = sand.u32 %s51, 1
          %s376 = scalar_lea.sflag [#allocation5], %s375
          %s377 = sand.u32 %s51, 1
          %s378 = smul.addr %s377, 192
          %s379 = scalar_lea.vmem [#allocation4], %s378
          %s381 = ssub.s32 3072, 3072
          %382 = vsyncadd %s376, %s381
          %s383 = smul.addr %s37, 64
          %s384 = scalar_lea.hbm %s0, %s383
          %s385 = sshll.u32 %s379, 4
          %s386 = int_to_ptr.vmem [resolvable:$true] %s385
          %391 = dma.hbm_to_vmem [thread:$0]  %s384, 3072, %s386, %s376, 192, 64, 4
        $region20: #{tpu_custom_call.1} parent=15 // pred_fallthru
          _
        // Predicated region
        $region21: #{tpu_custom_call.1} parent=15 // pred_check
          %p392 = pneg %p87
        $region22: #{tpu_custom_call.1} parent=15 // pred_check_branch
          %394 = sbr.rel (%p392) target = $region24
        $region23: #{tpu_custom_call.1} parent=15 // pred_region
          %s395 = sand.u32 %s29, 1
          %s396 = scalar_lea.sflag [#allocation8], %s395
          %s397 = sand.u32 %s77, 1
          %s398 = smul.addr %s397, 128
          %s399 = scalar_lea.vmem [#allocation7], %s398
          %s400 = smul.u32 16, %s37
          %s402 = ssub.s32 2048, 2048
          %403 = vsyncadd %s396, %s402
          %s404 = smul.addr %s400, 128
          %s405 = scalar_lea.hbm %s1, %s404
          %s406 = sshll.u32 %s399, 4
          %s407 = int_to_ptr.vmem [resolvable:$true] %s406
          %412 = dma.hbm_to_vmem [thread:$0]  %s405, 2048, %s407, %s396, 128, 128, 8
        $region24: #{tpu_custom_call.1} parent=15 // pred_fallthru
          _
        // Predicated region
        $region25: #{tpu_custom_call.1} parent=15 // pred_check
          %p413 = pneg %p113
        $region26: #{tpu_custom_call.1} parent=15 // pred_check_branch
          %415 = sbr.rel (%p413) target = $region28
        $region27: #{tpu_custom_call.1} parent=15 // pred_region
          %p416 = scmp.lt.s32.totalorder %s36, 1
          %s417 = scalar_select %p416, %s36, 1
          %s418 = scalar_lea.vmem %s2, %s417
        $region28: #{tpu_custom_call.1} parent=15 // pred_fallthru
          _
        // Predicated region
        $region29: #{tpu_custom_call.1} parent=15 // pred_check
          %p419 = pneg %p139
        $region30: #{tpu_custom_call.1} parent=15 // pred_check_branch
          %421 = sbr.rel (%p419) target = $region32
        $region31: #{tpu_custom_call.1} parent=15 // pred_region
          %s422 = sand.u32 %s29, 1
          %s423 = scalar_lea.sflag [#allocation8], %s422
          %s424 = sand.u32 %s129, 1
          %s425 = smul.addr %s424, 128
          %s426 = scalar_lea.vmem [#allocation9], %s425
          %s428 = ssub.s32 2048, 2048
          %429 = vsyncadd %s423, %s428
          %s430 = smul.addr %s36, 16
          %s431 = smul.addr %s430, 128
          %s432 = scalar_lea.hbm %s3, %s431
          %s433 = sshll.u32 %s426, 4
          %s434 = int_to_ptr.vmem [resolvable:$true] %s433
          %439 = dma.hbm_to_vmem [thread:$0]  %s432, 2048, %s434, %s423, 128, 128, 8
        $region32: #{tpu_custom_call.1} parent=15 // pred_fallthru
          _
        // Predicated region
        $region33: #{tpu_custom_call.1} parent=15 // pred_check
          %p440 = pneg %p165
        $region34: #{tpu_custom_call.1} parent=15 // pred_check_branch
          %442 = sbr.rel (%p440) target = $region36
        $region35: #{tpu_custom_call.1} parent=15 // pred_region
          %p443 = scmp.lt.s32.totalorder %s36, 1
          %s444 = scalar_select %p443, %s36, 1
          %s445 = scalar_lea.vmem %s4, %s444
        $region36: #{tpu_custom_call.1} parent=15 // pred_fallthru
          _
        // Predicated region
        $region37: #{tpu_custom_call.1} parent=15 // pred_check
          %p446 = pneg %p191
        $region38: #{tpu_custom_call.1} parent=15 // pred_check_branch
          %448 = sbr.rel (%p446) target = $region40
        $region39: #{tpu_custom_call.1} parent=15 // pred_region
          %p449 = scmp.lt.s32.totalorder %s36, 1
          %s450 = scalar_select %p449, %s36, 1
          %s451 = scalar_lea.vmem %s5, %s450
        $region40: #{tpu_custom_call.1} parent=15 // pred_fallthru
          _
        // Predicated region
        $region41: #{tpu_custom_call.1} parent=15 // pred_check
          %p452 = pneg %p217
        $region42: #{tpu_custom_call.1} parent=15 // pred_check_branch
          %454 = sbr.rel (%p452) target = $region44
        $region43: #{tpu_custom_call.1} parent=15 // pred_region
          %s455 = sand.u32 %s207, 1
          %s456 = scalar_lea.sflag [#allocation11], %s455
          %s457 = sand.u32 %s207, 1
          %s458 = smul.addr %s457, 128
          %s459 = scalar_lea.vmem [#allocation10], %s458
          %s461 = ssub.s32 2048, 2048
          %462 = vsyncadd %s456, %s461
          %s463 = smul.addr %s36, 16
          %s464 = smul.addr %s463, 128
          %s465 = scalar_lea.hbm %s6, %s464
          %s466 = sshll.u32 %s459, 4
          %s467 = int_to_ptr.vmem [resolvable:$true] %s466
          %472 = dma.hbm_to_vmem [thread:$0]  %s465, 2048, %s467, %s456, 128, 128, 8
        $region44: #{tpu_custom_call.1} parent=15 // pred_fallthru
          _
        // Predicated region
        $region45: #{tpu_custom_call.1} parent=15 // pred_check
          %p473 = pneg %p243
        $region46: #{tpu_custom_call.1} parent=15 // pred_check_branch
          %475 = sbr.rel (%p473) target = $region48
        $region47: #{tpu_custom_call.1} parent=15 // pred_region
          %p476 = scmp.lt.s32.totalorder %s36, 1
          %s477 = scalar_select %p476, %s36, 1
          %s478 = scalar_lea.vmem %s7, %s477
        $region48: #{tpu_custom_call.1} parent=15 // pred_fallthru
          _
        // Predicated region
        $region49: #{tpu_custom_call.1} parent=15 // pred_check
          %p479 = pneg %p269
        $region50: #{tpu_custom_call.1} parent=15 // pred_check_branch
          %481 = sbr.rel (%p479) target = $region52
        $region51: #{tpu_custom_call.1} parent=15 // pred_region
          %p482 = scmp.lt.s32.totalorder %s36, 1
          %s483 = scalar_select %p482, %s36, 1
          %s484 = scalar_lea.vmem %s8, %s483
        $region52: #{tpu_custom_call.1} parent=15 // pred_fallthru
          _
        // Predicated region
        $region53: #{tpu_custom_call.1} parent=15 // pred_check
          %p485 = pneg %p295
        $region54: #{tpu_custom_call.1} parent=15 // pred_check_branch
          %487 = sbr.rel (%p485) target = $region56
        $region55: #{tpu_custom_call.1} parent=15 // pred_region
          %p488 = scmp.lt.s32.totalorder %s36, 1
          %s489 = scalar_select %p488, %s36, 1
          %s490 = scalar_lea.vmem %s9, %s489
        $region56: #{tpu_custom_call.1} parent=15 // pred_fallthru
          _
        // Predicated region
        $region57: #{tpu_custom_call.1} parent=15 // pred_check
          %p491 = pneg %p321
        $region58: #{tpu_custom_call.1} parent=15 // pred_check_branch
          %493 = sbr.rel (%p491) target = $region60
        $region59: #{tpu_custom_call.1} parent=15 // pred_region
          %p494 = scmp.lt.s32.totalorder %s36, 1
          %s495 = scalar_select %p494, %s36, 1
          %s496 = scalar_lea.vmem %s10, %s495
        $region60: #{tpu_custom_call.1} parent=15 // pred_fallthru
          _
      $region16: #{tpu_custom_call.1} parent=5 // pred_fallthru
        _
      %p497 = scmp.le.s32.totalorder 1, %s29
      %p498 = scmp.lt.s32.totalorder %s29, 7
      %p499 = pnand %p497, %p498
      %p500 = pneg %p499
      // Predicated region
      $region61: #{tpu_custom_call.1} parent=5 // pred_check
        _
      $region62: #{tpu_custom_call.1} parent=5 // pred_check_branch
        %502 = sbr.rel (%p499) target = $region64
      $region63: #{tpu_custom_call.1} parent=5 // pred_region
        %s503 = ssub.s32 %s29, 1
        %s504 = sand.u32 %s54, 1
        %s505 = scalar_lea.sflag [#allocation5], %s504
        %s506 = sand.u32 %s54, 1
        %s507 = smul.addr %s506, 192
        %s508 = scalar_lea.vmem [#allocation4], %s507
        // Predicated region
        $region65: #{tpu_custom_call.1} parent=63 // pred_check
          %p509 = pneg %p67
        $region66: #{tpu_custom_call.1} parent=63 // pred_check_branch
          %511 = sbr.rel (%p509) target = $region68
        $region67: #{tpu_custom_call.1} parent=63 // pred_region
          %512 = dma.done %s505, 3072
        $region68: #{tpu_custom_call.1} parent=63 // pred_fallthru
          _
        %s513 = sand.u32 %s34, 1
        %s514 = scalar_lea.sflag [#allocation8], %s513
        %s515 = sand.u32 %s80, 1
        %s516 = smul.addr %s515, 128
        %s517 = scalar_lea.vmem [#allocation7], %s516
        // Predicated region
        $region69: #{tpu_custom_call.1} parent=63 // pred_check
          %p518 = pneg %p93
        $region70: #{tpu_custom_call.1} parent=63 // pred_check_branch
          %520 = sbr.rel (%p518) target = $region72
        $region71: #{tpu_custom_call.1} parent=63 // pred_region
          %521 = dma.done %s514, 2048
        $region72: #{tpu_custom_call.1} parent=63 // pred_fallthru
          _
        %s522 = sand.u32 %s34, 1
        %s523 = scalar_lea.sflag [#allocation8], %s522
        %s524 = sand.u32 %s132, 1
        %s525 = smul.addr %s524, 128
        %s526 = scalar_lea.vmem [#allocation9], %s525
        // Predicated region
        $region73: #{tpu_custom_call.1} parent=63 // pred_check
          %p527 = pneg %p145
        $region74: #{tpu_custom_call.1} parent=63 // pred_check_branch
          %529 = sbr.rel (%p527) target = $region76
        $region75: #{tpu_custom_call.1} parent=63 // pred_region
          %530 = dma.done %s523, 2048
        $region76: #{tpu_custom_call.1} parent=63 // pred_fallthru
          _
        %s531 = sand.u32 %s210, 1
        %s532 = scalar_lea.sflag [#allocation11], %s531
        %s533 = sand.u32 %s210, 1
        %s534 = smul.addr %s533, 128
        %s535 = scalar_lea.vmem [#allocation10], %s534
        // Predicated region
        $region77: #{tpu_custom_call.1} parent=63 // pred_check
          %p536 = pneg %p223
        $region78: #{tpu_custom_call.1} parent=63 // pred_check_branch
          %538 = sbr.rel (%p536) target = $region80
        $region79: #{tpu_custom_call.1} parent=63 // pred_region
          %539 = dma.done %s532, 2048
        $region80: #{tpu_custom_call.1} parent=63 // pred_fallthru
          _
        %s540 = sand.u32 %s54, 1
        %s541 = scalar_lea.sflag [#allocation5], %s540
        %s542 = sand.u32 %s54, 1
        %s543 = smul.addr %s542, 192
        %s544 = scalar_lea.vmem [#allocation4], %s543
        %p545 = pneg %p67
        %p546 = pneg %p64
        %s547 = sand.u32 %s34, 1
        %s548 = scalar_lea.sflag [#allocation8], %s547
        %s549 = sand.u32 %s80, 1
        %s550 = smul.addr %s549, 128
        %s551 = scalar_lea.vmem [#allocation7], %s550
        %p552 = pneg %p93
        %p553 = pneg %p90
        %p554 = scmp.lt.s32.totalorder %s38, 1
        %s555 = scalar_select %p554, %s38, 1
        %s556 = scalar_lea.vmem %s2, %s555
        %p557 = pneg %p119
        %p558 = pneg %p116
        %s559 = sand.u32 %s34, 1
        %s560 = scalar_lea.sflag [#allocation8], %s559
        %s561 = sand.u32 %s132, 1
        %s562 = smul.addr %s561, 128
        %s563 = scalar_lea.vmem [#allocation9], %s562
        %p564 = pneg %p145
        %p565 = pneg %p142
        %p566 = scmp.lt.s32.totalorder %s38, 1
        %s567 = scalar_select %p566, %s38, 1
        %s568 = scalar_lea.vmem %s4, %s567
        %p569 = pneg %p171
        %p570 = pneg %p168
        %p571 = scmp.lt.s32.totalorder %s38, 1
        %s572 = scalar_select %p571, %s38, 1
        %s573 = scalar_lea.vmem %s5, %s572
        %p574 = pneg %p197
        %p575 = pneg %p194
        %s576 = sand.u32 %s210, 1
        %s577 = scalar_lea.sflag [#allocation11], %s576
        %s578 = sand.u32 %s210, 1
        %s579 = smul.addr %s578, 128
        %s580 = scalar_lea.vmem [#allocation10], %s579
        %p581 = pneg %p223
        %p582 = pneg %p220
        %p583 = scmp.lt.s32.totalorder %s38, 1
        %s584 = scalar_select %p583, %s38, 1
        %s585 = scalar_lea.vmem %s7, %s584
        %p586 = pneg %p249
        %p587 = pneg %p246
        %p588 = scmp.lt.s32.totalorder %s38, 1
        %s589 = scalar_select %p588, %s38, 1
        %s590 = scalar_lea.vmem %s8, %s589
        %p591 = pneg %p275
        %p592 = pneg %p272
        %p593 = scmp.lt.s32.totalorder %s38, 1
        %s594 = scalar_select %p593, %s38, 1
        %s595 = scalar_lea.vmem %s9, %s594
        %p596 = pneg %p301
        %p597 = pneg %p298
        %p598 = scmp.lt.s32.totalorder %s38, 1
        %s599 = scalar_select %p598, %s38, 1
        %s600 = scalar_lea.vmem %s10, %s599
        %p601 = pneg %p327
        %p602 = pneg %p324
        %p603 = pneg %p353
        %p604 = pneg %p350
        %s605 = sand.u32 %s340, 1
        %s606 = scalar_lea.sflag [#allocation6], %s605
        %s607 = sand.u32 %s340, 1
        %s608 = smul.addr %s607, 384
        %s609 = scalar_lea.vmem [#allocation12], %s608
        %s610 = smul.u32 16, %s39
        %p611 = scmp.lt.s32.totalorder %s38, 1
        %s612 = scalar_select %p611, %s38, 1
        %s613 = scalar_lea.vmem %s2, %s612
        %p614 = scmp.lt.s32.totalorder %s38, 1
        %s615 = scalar_select %p614, %s38, 1
        %s616 = scalar_lea.vmem %s4, %s615
        %p617 = scmp.lt.s32.totalorder %s38, 1
        %s618 = scalar_select %p617, %s38, 1
        %s619 = scalar_lea.vmem %s5, %s618
        %p620 = scmp.lt.s32.totalorder %s38, 1
        %s621 = scalar_select %p620, %s38, 1
        %s622 = scalar_lea.vmem %s7, %s621
        %p623 = scmp.lt.s32.totalorder %s38, 1
        %s624 = scalar_select %p623, %s38, 1
        %s625 = scalar_lea.vmem %s8, %s624
        %p626 = scmp.lt.s32.totalorder %s38, 1
        %s627 = scalar_select %p626, %s38, 1
        %s628 = scalar_lea.vmem %s9, %s627
        %p629 = scmp.lt.s32.totalorder %s38, 1
        %s630 = scalar_select %p629, %s38, 1
        %s631 = scalar_lea.vmem %s10, %s630
        %p632 = scmp.eq.s32.totalorder %s39, 0
        // Predicated region
        $region81: #{tpu_custom_call.1} parent=63 // pred_check
          %p633 = pneg %p632
        $region82: #{tpu_custom_call.1} parent=63 // pred_check_branch
          %635 = sbr.rel (%p633) target = $region84
        $region83: #{tpu_custom_call.1} parent=63 // pred_region
          %636 = vst [vmem:[#allocation3] sm:$0xff] 0.0
          %637 = vst [vmem:[#allocation3 + $0x8] sm:$0xff] 0.0
          %638 = vst [vmem:[#allocation3 + $0x10] sm:$0xff] 0.0
          %639 = vst [vmem:[#allocation3 + $0x18] sm:$0xff] 0.0
          %640 = vst [vmem:[#allocation3 + $0x20] sm:$0xff] 0.0
          %641 = vst [vmem:[#allocation3 + $0x28] sm:$0xff] 0.0
          %642 = vst [vmem:[#allocation3 + $0x30] sm:$0xff] 0.0
          %643 = vst [vmem:[#allocation3 + $0x38] sm:$0xff] 0.0
          %644 = vst [vmem:[#allocation3 + $0x40] sm:$0xff] 0.0
          %645 = vst [vmem:[#allocation3 + $0x48] sm:$0xff] 0.0
          %646 = vst [vmem:[#allocation3 + $0x50] sm:$0xff] 0.0
          %647 = vst [vmem:[#allocation3 + $0x58] sm:$0xff] 0.0
          %648 = vst [vmem:[#allocation3 + $0x60] sm:$0xff] 0.0
          %649 = vst [vmem:[#allocation3 + $0x68] sm:$0xff] 0.0
          %650 = vst [vmem:[#allocation3 + $0x70] sm:$0xff] 0.0
          %651 = vst [vmem:[#allocation3 + $0x78] sm:$0xff] 0.0
          %652 = vst [vmem:[#allocation3 + $0x80] sm:$0xff] 0.0
          %653 = vst [vmem:[#allocation3 + $0x88] sm:$0xff] 0.0
          %654 = vst [vmem:[#allocation3 + $0x90] sm:$0xff] 0.0
          %655 = vst [vmem:[#allocation3 + $0x98] sm:$0xff] 0.0
          %656 = vst [vmem:[#allocation3 + $0xa0] sm:$0xff] 0.0
          %657 = vst [vmem:[#allocation3 + $0xa8] sm:$0xff] 0.0
          %658 = vst [vmem:[#allocation3 + $0xb0] sm:$0xff] 0.0
          %659 = vst [vmem:[#allocation3 + $0xb8] sm:$0xff] 0.0
          %660 = vst [vmem:[#allocation3 + $0xc0] sm:$0xff] 0.0
          %661 = vst [vmem:[#allocation3 + $0xc8] sm:$0xff] 0.0
          %662 = vst [vmem:[#allocation3 + $0xd0] sm:$0xff] 0.0
          %663 = vst [vmem:[#allocation3 + $0xd8] sm:$0xff] 0.0
          %664 = vst [vmem:[#allocation3 + $0xe0] sm:$0xff] 0.0
          %665 = vst [vmem:[#allocation3 + $0xe8] sm:$0xff] 0.0
          %666 = vst [vmem:[#allocation3 + $0xf0] sm:$0xff] 0.0
          %667 = vst [vmem:[#allocation3 + $0xf8] sm:$0xff] 0.0
          %668 = vst [vmem:[#allocation3 + $0x100] sm:$0xff] 0.0
          %669 = vst [vmem:[#allocation3 + $0x108] sm:$0xff] 0.0
          %670 = vst [vmem:[#allocation3 + $0x110] sm:$0xff] 0.0
          %671 = vst [vmem:[#allocation3 + $0x118] sm:$0xff] 0.0
          %672 = vst [vmem:[#allocation3 + $0x120] sm:$0xff] 0.0
          %673 = vst [vmem:[#allocation3 + $0x128] sm:$0xff] 0.0
          %674 = vst [vmem:[#allocation3 + $0x130] sm:$0xff] 0.0
          %675 = vst [vmem:[#allocation3 + $0x138] sm:$0xff] 0.0
          %676 = vst [vmem:[#allocation3 + $0x140] sm:$0xff] 0.0
          %677 = vst [vmem:[#allocation3 + $0x148] sm:$0xff] 0.0
          %678 = vst [vmem:[#allocation3 + $0x150] sm:$0xff] 0.0
          %679 = vst [vmem:[#allocation3 + $0x158] sm:$0xff] 0.0
          %680 = vst [vmem:[#allocation3 + $0x160] sm:$0xff] 0.0
          %681 = vst [vmem:[#allocation3 + $0x168] sm:$0xff] 0.0
          %682 = vst [vmem:[#allocation3 + $0x170] sm:$0xff] 0.0
          %683 = vst [vmem:[#allocation3 + $0x178] sm:$0xff] 0.0
        $region84: #{tpu_custom_call.1} parent=63 // pred_fallthru
          _
        %s684 = smul.u32 %s39, 128
        %p685 = scmp.eq.s32.totalorder %s38, 0
        // Predicated region
        $region85: #{tpu_custom_call.1} parent=63 // pred_check
          %p686 = pneg %p685
        $region86: #{tpu_custom_call.1} parent=63 // pred_check_branch
          %688 = sbr.rel (%p686) target = $region88
        $region87: #{tpu_custom_call.1} parent=63 // pred_region
          %v689 = vld [vmem:[%s517] sm:$0xff]
          %v690 = vld [vmem:[%s517 + $0x8] sm:$0xff]
          %v691 = vld [vmem:[%s517 + $0x10] sm:$0xff]
          %v692 = vld [vmem:[%s517 + $0x18] sm:$0xff]
          %v693 = vld [vmem:[%s517 + $0x20] sm:$0xff]
          %v694 = vld [vmem:[%s517 + $0x28] sm:$0xff]
          %v695 = vld [vmem:[%s517 + $0x30] sm:$0xff]
          %v696 = vld [vmem:[%s517 + $0x38] sm:$0xff]
          %v697 = vld [vmem:[%s517 + $0x40] sm:$0xff]
          %v698 = vld [vmem:[%s517 + $0x48] sm:$0xff]
          %v699 = vld [vmem:[%s517 + $0x50] sm:$0xff]
          %v700 = vld [vmem:[%s517 + $0x58] sm:$0xff]
          %v701 = vld [vmem:[%s517 + $0x60] sm:$0xff]
          %v702 = vld [vmem:[%s517 + $0x68] sm:$0xff]
          %v703 = vld [vmem:[%s517 + $0x70] sm:$0xff]
          %v704 = vld [vmem:[%s517 + $0x78] sm:$0xff]
          %s705 = scalar_lea.vmem [#allocation2], %s684
          %706 = vst [vmem:[%s705] sm:$0xff] %v689
          %707 = vst [vmem:[%s705 + $0x8] sm:$0xff] %v690
          %708 = vst [vmem:[%s705 + $0x10] sm:$0xff] %v691
          %709 = vst [vmem:[%s705 + $0x18] sm:$0xff] %v692
          %710 = vst [vmem:[%s705 + $0x20] sm:$0xff] %v693
          %711 = vst [vmem:[%s705 + $0x28] sm:$0xff] %v694
          %712 = vst [vmem:[%s705 + $0x30] sm:$0xff] %v695
          %713 = vst [vmem:[%s705 + $0x38] sm:$0xff] %v696
          %714 = vst [vmem:[%s705 + $0x40] sm:$0xff] %v697
          %715 = vst [vmem:[%s705 + $0x48] sm:$0xff] %v698
          %716 = vst [vmem:[%s705 + $0x50] sm:$0xff] %v699
          %717 = vst [vmem:[%s705 + $0x58] sm:$0xff] %v700
          %718 = vst [vmem:[%s705 + $0x60] sm:$0xff] %v701
          %719 = vst [vmem:[%s705 + $0x68] sm:$0xff] %v702
          %720 = vst [vmem:[%s705 + $0x70] sm:$0xff] %v703
          %721 = vst [vmem:[%s705 + $0x78] sm:$0xff] %v704
        $region88: #{tpu_custom_call.1} parent=63 // pred_fallthru
          _
        %v722 = vld [vmem:[#allocation3] sm:$0xff]
        %v723 = vld [vmem:[#allocation3 + $0x8] sm:$0xff]
        %v724 = vld [vmem:[#allocation3 + $0x10] sm:$0xff]
        %v725 = vld [vmem:[#allocation3 + $0x18] sm:$0xff]
        %v726 = vld [vmem:[#allocation3 + $0x20] sm:$0xff]
        %v727 = vld [vmem:[#allocation3 + $0x28] sm:$0xff]
        %v728 = vld [vmem:[#allocation3 + $0x30] sm:$0xff]
        %v729 = vld [vmem:[#allocation3 + $0x38] sm:$0xff]
        %v730 = vld [vmem:[#allocation3 + $0x40] sm:$0xff]
        %v731 = vld [vmem:[#allocation3 + $0x48] sm:$0xff]
        %v732 = vld [vmem:[#allocation3 + $0x50] sm:$0xff]
        %v733 = vld [vmem:[#allocation3 + $0x58] sm:$0xff]
        %v734 = vld [vmem:[#allocation3 + $0x60] sm:$0xff]
        %v735 = vld [vmem:[#allocation3 + $0x68] sm:$0xff]
        %v736 = vld [vmem:[#allocation3 + $0x70] sm:$0xff]
        %v737 = vld [vmem:[#allocation3 + $0x78] sm:$0xff]
        %v738 = vld [vmem:[#allocation3 + $0x80] sm:$0xff]
        %v739 = vld [vmem:[#allocation3 + $0x88] sm:$0xff]
        %v740 = vld [vmem:[#allocation3 + $0x90] sm:$0xff]
        %v741 = vld [vmem:[#allocation3 + $0x98] sm:$0xff]
        %v742 = vld [vmem:[#allocation3 + $0xa0] sm:$0xff]
        %v743 = vld [vmem:[#allocation3 + $0xa8] sm:$0xff]
        %v744 = vld [vmem:[#allocation3 + $0xb0] sm:$0xff]
        %v745 = vld [vmem:[#allocation3 + $0xb8] sm:$0xff]
        %v746 = vld [vmem:[#allocation3 + $0xc0] sm:$0xff]
        %v747 = vld [vmem:[#allocation3 + $0xc8] sm:$0xff]
        %v748 = vld [vmem:[#allocation3 + $0xd0] sm:$0xff]
        %v749 = vld [vmem:[#allocation3 + $0xd8] sm:$0xff]
        %v750 = vld [vmem:[#allocation3 + $0xe0] sm:$0xff]
        %v751 = vld [vmem:[#allocation3 + $0xe8] sm:$0xff]
        %v752 = vld [vmem:[#allocation3 + $0xf0] sm:$0xff]
        %v753 = vld [vmem:[#allocation3 + $0xf8] sm:$0xff]
        %v754 = vld [vmem:[#allocation3 + $0x100] sm:$0xff]
        %v755 = vld [vmem:[#allocation3 + $0x108] sm:$0xff]
        %v756 = vld [vmem:[#allocation3 + $0x110] sm:$0xff]
        %v757 = vld [vmem:[#allocation3 + $0x118] sm:$0xff]
        %v758 = vld [vmem:[#allocation3 + $0x120] sm:$0xff]
        %v759 = vld [vmem:[#allocation3 + $0x128] sm:$0xff]
        %v760 = vld [vmem:[#allocation3 + $0x130] sm:$0xff]
        %v761 = vld [vmem:[#allocation3 + $0x138] sm:$0xff]
        %v762 = vld [vmem:[#allocation3 + $0x140] sm:$0xff]
        %v763 = vld [vmem:[#allocation3 + $0x148] sm:$0xff]
        %v764 = vld [vmem:[#allocation3 + $0x150] sm:$0xff]
        %v765 = vld [vmem:[#allocation3 + $0x158] sm:$0xff]
        %v766 = vld [vmem:[#allocation3 + $0x160] sm:$0xff]
        %v767 = vld [vmem:[#allocation3 + $0x168] sm:$0xff]
        %v768 = vld [vmem:[#allocation3 + $0x170] sm:$0xff]
        %v769 = vld [vmem:[#allocation3 + $0x178] sm:$0xff]
        %v770 = vld [vmem:[%s508] sm:$0xf]
        %v771 = vld [vmem:[%s508 + $0x4] sm:$0xf]
        %v772 = vld [vmem:[%s508 + $0x8] sm:$0xf]
        %v773 = vld [vmem:[%s508 + $0xc] sm:$0xf]
        %v774 = vld [vmem:[%s508 + $0x10] sm:$0xf]
        %v775 = vld [vmem:[%s508 + $0x14] sm:$0xf]
        %v776 = vld [vmem:[%s508 + $0x18] sm:$0xf]
        %v777 = vld [vmem:[%s508 + $0x1c] sm:$0xf]
        %v778 = vld [vmem:[%s508 + $0x20] sm:$0xf]
        %v779 = vld [vmem:[%s508 + $0x24] sm:$0xf]
        %v780 = vld [vmem:[%s508 + $0x28] sm:$0xf]
        %v781 = vld [vmem:[%s508 + $0x2c] sm:$0xf]
        %v782 = vld [vmem:[%s508 + $0x30] sm:$0xf]
        %v783 = vld [vmem:[%s508 + $0x34] sm:$0xf]
        %v784 = vld [vmem:[%s508 + $0x38] sm:$0xf]
        %v785 = vld [vmem:[%s508 + $0x3c] sm:$0xf]
        %v786 = vld [vmem:[%s508 + $0x40] sm:$0xf]
        %v787 = vld [vmem:[%s508 + $0x44] sm:$0xf]
        %v788 = vld [vmem:[%s508 + $0x48] sm:$0xf]
        %v789 = vld [vmem:[%s508 + $0x4c] sm:$0xf]
        %v790 = vld [vmem:[%s508 + $0x50] sm:$0xf]
        %v791 = vld [vmem:[%s508 + $0x54] sm:$0xf]
        %v792 = vld [vmem:[%s508 + $0x58] sm:$0xf]
        %v793 = vld [vmem:[%s508 + $0x5c] sm:$0xf]
        %v794 = vld [vmem:[%s508 + $0x60] sm:$0xf]
        %v795 = vld [vmem:[%s508 + $0x64] sm:$0xf]
        %v796 = vld [vmem:[%s508 + $0x68] sm:$0xf]
        %v797 = vld [vmem:[%s508 + $0x6c] sm:$0xf]
        %v798 = vld [vmem:[%s508 + $0x70] sm:$0xf]
        %v799 = vld [vmem:[%s508 + $0x74] sm:$0xf]
        %v800 = vld [vmem:[%s508 + $0x78] sm:$0xf]
        %v801 = vld [vmem:[%s508 + $0x7c] sm:$0xf]
        %v802 = vld [vmem:[%s508 + $0x80] sm:$0xf]
        %v803 = vld [vmem:[%s508 + $0x84] sm:$0xf]
        %v804 = vld [vmem:[%s508 + $0x88] sm:$0xf]
        %v805 = vld [vmem:[%s508 + $0x8c] sm:$0xf]
        %v806 = vld [vmem:[%s508 + $0x90] sm:$0xf]
        %v807 = vld [vmem:[%s508 + $0x94] sm:$0xf]
        %v808 = vld [vmem:[%s508 + $0x98] sm:$0xf]
        %v809 = vld [vmem:[%s508 + $0x9c] sm:$0xf]
        %v810 = vld [vmem:[%s508 + $0xa0] sm:$0xf]
        %v811 = vld [vmem:[%s508 + $0xa4] sm:$0xf]
        %v812 = vld [vmem:[%s508 + $0xa8] sm:$0xf]
        %v813 = vld [vmem:[%s508 + $0xac] sm:$0xf]
        %v814 = vld [vmem:[%s508 + $0xb0] sm:$0xf]
        %v815 = vld [vmem:[%s508 + $0xb4] sm:$0xf]
        %v816 = vld [vmem:[%s508 + $0xb8] sm:$0xf]
        %v817 = vld [vmem:[%s508 + $0xbc] sm:$0xf]
        %v818 = vunpack.c.l.bf16 %v770
        %v819 = vunpack.c.l.bf16 %v771
        %v820 = vunpack.c.l.bf16 %v772
        %v821 = vunpack.c.l.bf16 %v773
        %v822 = vunpack.c.l.bf16 %v774
        %v823 = vunpack.c.l.bf16 %v775
        %v824 = vunpack.c.l.bf16 %v776
        %v825 = vunpack.c.l.bf16 %v777
        %v826 = vunpack.c.l.bf16 %v778
        %v827 = vunpack.c.l.bf16 %v779
        %v828 = vunpack.c.l.bf16 %v780
        %v829 = vunpack.c.l.bf16 %v781
        %v830 = vunpack.c.l.bf16 %v782
        %v831 = vunpack.c.l.bf16 %v783
        %v832 = vunpack.c.l.bf16 %v784
        %v833 = vunpack.c.l.bf16 %v785
        %v834 = vunpack.c.l.bf16 %v786
        %v835 = vunpack.c.l.bf16 %v787
        %v836 = vunpack.c.l.bf16 %v788
        %v837 = vunpack.c.l.bf16 %v789
        %v838 = vunpack.c.l.bf16 %v790
        %v839 = vunpack.c.l.bf16 %v791
        %v840 = vunpack.c.l.bf16 %v792
        %v841 = vunpack.c.l.bf16 %v793
        %v842 = vunpack.c.l.bf16 %v794
        %v843 = vunpack.c.l.bf16 %v795
        %v844 = vunpack.c.l.bf16 %v796
        %v845 = vunpack.c.l.bf16 %v797
        %v846 = vunpack.c.l.bf16 %v798
        %v847 = vunpack.c.l.bf16 %v799
        %v848 = vunpack.c.l.bf16 %v800
        %v849 = vunpack.c.l.bf16 %v801
        %v850 = vunpack.c.l.bf16 %v802
        %v851 = vunpack.c.l.bf16 %v803
        %v852 = vunpack.c.l.bf16 %v804
        %v853 = vunpack.c.l.bf16 %v805
        %v854 = vunpack.c.l.bf16 %v806
        %v855 = vunpack.c.l.bf16 %v807
        %v856 = vunpack.c.l.bf16 %v808
        %v857 = vunpack.c.l.bf16 %v809
        %v858 = vunpack.c.l.bf16 %v810
        %v859 = vunpack.c.l.bf16 %v811
        %v860 = vunpack.c.l.bf16 %v812
        %v861 = vunpack.c.l.bf16 %v813
        %v862 = vunpack.c.l.bf16 %v814
        %v863 = vunpack.c.l.bf16 %v815
        %v864 = vunpack.c.l.bf16 %v816
        %v865 = vunpack.c.l.bf16 %v817
        %s866 = scalar_lea.vmem [#allocation2], %s684
        %v867 = vld [vmem:[%s866] sm:$0xff]
        %v868 = vld [vmem:[%s866 + $0x8] sm:$0xff]
        %v869 = vld [vmem:[%s866 + $0x10] sm:$0xff]
        %v870 = vld [vmem:[%s866 + $0x18] sm:$0xff]
        %v871 = vld [vmem:[%s866 + $0x20] sm:$0xff]
        %v872 = vld [vmem:[%s866 + $0x28] sm:$0xff]
        %v873 = vld [vmem:[%s866 + $0x30] sm:$0xff]
        %v874 = vld [vmem:[%s866 + $0x38] sm:$0xff]
        %v875 = vld [vmem:[%s866 + $0x40] sm:$0xff]
        %v876 = vld [vmem:[%s866 + $0x48] sm:$0xff]
        %v877 = vld [vmem:[%s866 + $0x50] sm:$0xff]
        %v878 = vld [vmem:[%s866 + $0x58] sm:$0xff]
        %v879 = vld [vmem:[%s866 + $0x60] sm:$0xff]
        %v880 = vld [vmem:[%s866 + $0x68] sm:$0xff]
        %v881 = vld [vmem:[%s866 + $0x70] sm:$0xff]
        %v882 = vld [vmem:[%s866 + $0x78] sm:$0xff]
        %883 = vmatprep.subr.mxu0 0.0
        %884 = vmatpush1.msra.mxu0 %v867
        %885 = vmatprep.subr.mxu0 0.0
        %886 = vmatpush1.msra.mxu0 %v868
        %887 = vmatprep.subr.mxu0 0.0
        %888 = vmatpush1.msra.mxu0 %v869
        %889 = vmatprep.subr.mxu0 0.0
        %890 = vmatpush1.msra.mxu0 %v870
        %891 = vmatprep.subr.mxu0 0.0
        %892 = vmatpush1.msra.mxu0 %v871
        %893 = vmatprep.subr.mxu0 0.0
        %894 = vmatpush1.msra.mxu0 %v872
        %895 = vmatprep.subr.mxu0 0.0
        %896 = vmatpush1.msra.mxu0 %v873
        %897 = vmatprep.subr.mxu0 0.0
        %898 = vmatpush1.msra.mxu0 %v874
        %899 = vmatprep.subr.mxu0 0.0
        %900 = vmatpush1.msra.mxu0 %v875
        %901 = vmatprep.subr.mxu0 0.0
        %902 = vmatpush1.msra.mxu0 %v876
        %903 = vmatprep.subr.mxu0 0.0
        %904 = vmatpush1.msra.mxu0 %v877
        %905 = vmatprep.subr.mxu0 0.0
        %906 = vmatpush1.msra.mxu0 %v878
        %907 = vmatprep.subr.mxu0 0.0
        %908 = vmatpush1.msra.mxu0 %v879
        %909 = vmatprep.subr.mxu0 0.0
        %910 = vmatpush1.msra.mxu0 %v880
        %911 = vmatprep.subr.mxu0 0.0
        %912 = vmatpush1.msra.mxu0 %v881
        %913 = vmatprep.subr.mxu0 0.0
        %914 = vmatpush1.msra.mxu0 %v882
        %915 = vmatprep.subr.mxu0 0.0
        %916 = vmatpush1.msra.mxu0 0.0
        %917 = vmatprep.subr.mxu0 0.0
        %918 = vmatpush1.msra.mxu0 0.0
        %919 = vmatprep.subr.mxu0 0.0
        %920 = vmatpush1.msra.mxu0 0.0
        %921 = vmatprep.subr.mxu0 0.0
        %922 = vmatpush1.msra.mxu0 0.0
        %923 = vmatprep.subr.mxu0 0.0
        %924 = vmatpush1.msra.mxu0 0.0
        %925 = vmatprep.subr.mxu0 0.0
        %926 = vmatpush1.msra.mxu0 0.0
        %927 = vmatprep.subr.mxu0 0.0
        %928 = vmatpush1.msra.mxu0 0.0
        %929 = vmatprep.subr.mxu0 0.0
        %930 = vmatpush1.msra.mxu0 0.0
        %931 = vmatprep.subr.mxu0 0.0
        %932 = vmatpush1.msra.mxu0 0.0
        %933 = vmatprep.subr.mxu0 0.0
        %934 = vmatpush1.msra.mxu0 0.0
        %935 = vmatprep.subr.mxu0 0.0
        %936 = vmatpush1.msra.mxu0 0.0
        %937 = vmatprep.subr.mxu0 0.0
        %938 = vmatpush1.msra.mxu0 0.0
        %939 = vmatprep.subr.mxu0 0.0
        %940 = vmatpush1.msra.mxu0 0.0
        %941 = vmatprep.subr.mxu0 0.0
        %942 = vmatpush1.msra.mxu0 0.0
        %943 = vmatprep.subr.mxu0 0.0
        %944 = vmatpush1.msra.mxu0 0.0
        %945 = vmatprep.subr.mxu0 0.0
        %946 = vmatpush1.msra.mxu0 0.0
        %947 = vmatprep.mubr.f32.mxu0 0.0
        %948 = vmatmul.mubr.f32.gmra.mrb[0].mxu0 %v818
        %v949 = vpop.f32.mrb[0].mxu0
        %v950 = vadd.f32 0.0, %v949
        %v951 = vpop.f32.mrb[0].mxu0
        %952 = vmatprep.mubr.f32.mxu0 0.0
        %953 = vmatmul.mubr.f32.gmra.mrb[0].mxu0 %v819
        %v954 = vpop.f32.mrb[0].mxu0
        %v955 = vadd.f32 0.0, %v954
        %v956 = vpop.f32.mrb[0].mxu0
        %957 = vmatprep.mubr.f32.mxu0 0.0
        %958 = vmatmul.mubr.f32.gmra.mrb[0].mxu0 %v820
        %v959 = vpop.f32.mrb[0].mxu0
        %v960 = vadd.f32 0.0, %v959
        %v961 = vpop.f32.mrb[0].mxu0
        %962 = vmatprep.mubr.f32.mxu0 0.0
        %963 = vmatmul.mubr.f32.gmra.mrb[0].mxu0 %v821
        %v964 = vpop.f32.mrb[0].mxu0
        %v965 = vadd.f32 0.0, %v964
        %v966 = vpop.f32.mrb[0].mxu0
        %967 = vmatprep.mubr.f32.mxu0 0.0
        %968 = vmatmul.mubr.f32.gmra.mrb[0].mxu0 %v822
        %v969 = vpop.f32.mrb[0].mxu0
        %v970 = vadd.f32 0.0, %v969
        %v971 = vpop.f32.mrb[0].mxu0
        %972 = vmatprep.mubr.f32.mxu0 0.0
        %973 = vmatmul.mubr.f32.gmra.mrb[0].mxu0 %v823
        %v974 = vpop.f32.mrb[0].mxu0
        %v975 = vadd.f32 0.0, %v974
        %v976 = vpop.f32.mrb[0].mxu0
        %977 = vmatprep.mubr.f32.mxu0 0.0
        %978 = vmatmul.mubr.f32.gmra.mrb[0].mxu0 %v824
        %v979 = vpop.f32.mrb[0].mxu0
        %v980 = vadd.f32 0.0, %v979
        %v981 = vpop.f32.mrb[0].mxu0
        %982 = vmatprep.mubr.f32.mxu0 0.0
        %983 = vmatmul.mubr.f32.gmra.mrb[0].mxu0 %v825
        %v984 = vpop.f32.mrb[0].mxu0
        %v985 = vadd.f32 0.0, %v984
        %v986 = vpop.f32.mrb[0].mxu0
        %987 = vmatprep.mubr.f32.mxu0 0.0
        %988 = vmatmul.mubr.f32.gmra.mrb[0].mxu0 %v826
        %v989 = vpop.f32.mrb[0].mxu0
        %v990 = vadd.f32 0.0, %v989
        %v991 = vpop.f32.mrb[0].mxu0
        %992 = vmatprep.mubr.f32.mxu0 0.0
        %993 = vmatmul.mubr.f32.gmra.mrb[0].mxu0 %v827
        %v994 = vpop.f32.mrb[0].mxu0
        %v995 = vadd.f32 0.0, %v994
        %v996 = vpop.f32.mrb[0].mxu0
        %997 = vmatprep.mubr.f32.mxu0 0.0
        %998 = vmatmul.mubr.f32.gmra.mrb[0].mxu0 %v828
        %v999 = vpop.f32.mrb[0].mxu0
        %v1000 = vadd.f32 0.0, %v999
        %v1001 = vpop.f32.mrb[0].mxu0
        %1002 = vmatprep.mubr.f32.mxu0 0.0
        %1003 = vmatmul.mubr.f32.gmra.mrb[0].mxu0 %v829
        %v1004 = vpop.f32.mrb[0].mxu0
        %v1005 = vadd.f32 0.0, %v1004
        %v1006 = vpop.f32.mrb[0].mxu0
        %1007 = vmatprep.mubr.f32.mxu0 0.0
        %1008 = vmatmul.mubr.f32.gmra.mrb[0].mxu0 %v830
        %v1009 = vpop.f32.mrb[0].mxu0
        %v1010 = vadd.f32 0.0, %v1009
        %v1011 = vpop.f32.mrb[0].mxu0
        %1012 = vmatprep.mubr.f32.mxu0 0.0
        %1013 = vmatmul.mubr.f32.gmra.mrb[0].mxu0 %v831
        %v1014 = vpop.f32.mrb[0].mxu0
        %v1015 = vadd.f32 0.0, %v1014
        %v1016 = vpop.f32.mrb[0].mxu0
        %1017 = vmatprep.mubr.f32.mxu0 0.0
        %1018 = vmatmul.mubr.f32.gmra.mrb[0].mxu0 %v832
        %v1019 = vpop.f32.mrb[0].mxu0
        %v1020 = vadd.f32 0.0, %v1019
        %v1021 = vpop.f32.mrb[0].mxu0
        %1022 = vmatprep.mubr.f32.mxu0 0.0
        %1023 = vmatmul.mubr.f32.gmra.mrb[0].mxu0 %v833
        %v1024 = vpop.f32.mrb[0].mxu0
        %v1025 = vadd.f32 0.0, %v1024
        %v1026 = vpop.f32.mrb[0].mxu0
        %1027 = vmatprep.mubr.f32.mxu0 0.0
        %1028 = vmatmul.mubr.f32.gmra.mrb[0].mxu0 %v834
        %v1029 = vpop.f32.mrb[0].mxu0
        %v1030 = vadd.f32 0.0, %v1029
        %v1031 = vpop.f32.mrb[0].mxu0
        %1032 = vmatprep.mubr.f32.mxu0 0.0
        %1033 = vmatmul.mubr.f32.gmra.mrb[0].mxu0 %v835
        %v1034 = vpop.f32.mrb[0].mxu0
        %v1035 = vadd.f32 0.0, %v1034
        %v1036 = vpop.f32.mrb[0].mxu0
        %1037 = vmatprep.mubr.f32.mxu0 0.0
        %1038 = vmatmul.mubr.f32.gmra.mrb[0].mxu0 %v836
        %v1039 = vpop.f32.mrb[0].mxu0
        %v1040 = vadd.f32 0.0, %v1039
        %v1041 = vpop.f32.mrb[0].mxu0
        %1042 = vmatprep.mubr.f32.mxu0 0.0
        %1043 = vmatmul.mubr.f32.gmra.mrb[0].mxu0 %v837
        %v1044 = vpop.f32.mrb[0].mxu0
        %v1045 = vadd.f32 0.0, %v1044
        %v1046 = vpop.f32.mrb[0].mxu0
        %1047 = vmatprep.mubr.f32.mxu0 0.0
        %1048 = vmatmul.mubr.f32.gmra.mrb[0].mxu0 %v838
        %v1049 = vpop.f32.mrb[0].mxu0
        %v1050 = vadd.f32 0.0, %v1049
        %v1051 = vpop.f32.mrb[0].mxu0
        %1052 = vmatprep.mubr.f32.mxu0 0.0
        %1053 = vmatmul.mubr.f32.gmra.mrb[0].mxu0 %v839
        %v1054 = vpop.f32.mrb[0].mxu0
        %v1055 = vadd.f32 0.0, %v1054
        %v1056 = vpop.f32.mrb[0].mxu0
        %1057 = vmatprep.mubr.f32.mxu0 0.0
        %1058 = vmatmul.mubr.f32.gmra.mrb[0].mxu0 %v840
        %v1059 = vpop.f32.mrb[0].mxu0
        %v1060 = vadd.f32 0.0, %v1059
        %v1061 = vpop.f32.mrb[0].mxu0
        %1062 = vmatprep.mubr.f32.mxu0 0.0
        %1063 = vmatmul.mubr.f32.gmra.mrb[0].mxu0 %v841
        %v1064 = vpop.f32.mrb[0].mxu0
        %v1065 = vadd.f32 0.0, %v1064
        %v1066 = vpop.f32.mrb[0].mxu0
        %1067 = vmatprep.mubr.f32.mxu0 0.0
        %1068 = vmatmul.mubr.f32.gmra.mrb[0].mxu0 %v842
        %v1069 = vpop.f32.mrb[0].mxu0
        %v1070 = vadd.f32 0.0, %v1069
        %v1071 = vpop.f32.mrb[0].mxu0
        %1072 = vmatprep.mubr.f32.mxu0 0.0
        %1073 = vmatmul.mubr.f32.gmra.mrb[0].mxu0 %v843
        %v1074 = vpop.f32.mrb[0].mxu0
        %v1075 = vadd.f32 0.0, %v1074
        %v1076 = vpop.f32.mrb[0].mxu0
        %1077 = vmatprep.mubr.f32.mxu0 0.0
        %1078 = vmatmul.mubr.f32.gmra.mrb[0].mxu0 %v844
        %v1079 = vpop.f32.mrb[0].mxu0
        %v1080 = vadd.f32 0.0, %v1079
        %v1081 = vpop.f32.mrb[0].mxu0
        %1082 = vmatprep.mubr.f32.mxu0 0.0
        %1083 = vmatmul.mubr.f32.gmra.mrb[0].mxu0 %v845
        %v1084 = vpop.f32.mrb[0].mxu0
        %v1085 = vadd.f32 0.0, %v1084
        %v1086 = vpop.f32.mrb[0].mxu0
        %1087 = vmatprep.mubr.f32.mxu0 0.0
        %1088 = vmatmul.mubr.f32.gmra.mrb[0].mxu0 %v846
        %v1089 = vpop.f32.mrb[0].mxu0
        %v1090 = vadd.f32 0.0, %v1089
        %v1091 = vpop.f32.mrb[0].mxu0
        %1092 = vmatprep.mubr.f32.mxu0 0.0
        %1093 = vmatmul.mubr.f32.gmra.mrb[0].mxu0 %v847
        %v1094 = vpop.f32.mrb[0].mxu0
        %v1095 = vadd.f32 0.0, %v1094
        %v1096 = vpop.f32.mrb[0].mxu0
        %1097 = vmatprep.mubr.f32.mxu0 0.0
        %1098 = vmatmul.mubr.f32.gmra.mrb[0].mxu0 %v848
        %v1099 = vpop.f32.mrb[0].mxu0
        %v1100 = vadd.f32 0.0, %v1099
        %v1101 = vpop.f32.mrb[0].mxu0
        %1102 = vmatprep.mubr.f32.mxu0 0.0
        %1103 = vmatmul.mubr.f32.gmra.mrb[0].mxu0 %v849
        %v1104 = vpop.f32.mrb[0].mxu0
        %v1105 = vadd.f32 0.0, %v1104
        %v1106 = vpop.f32.mrb[0].mxu0
        %1107 = vmatprep.mubr.f32.mxu0 0.0
        %1108 = vmatmul.mubr.f32.gmra.mrb[0].mxu0 %v850
        %v1109 = vpop.f32.mrb[0].mxu0
        %v1110 = vadd.f32 0.0, %v1109
        %v1111 = vpop.f32.mrb[0].mxu0
        %1112 = vmatprep.mubr.f32.mxu0 0.0
        %1113 = vmatmul.mubr.f32.gmra.mrb[0].mxu0 %v851
        %v1114 = vpop.f32.mrb[0].mxu0
        %v1115 = vadd.f32 0.0, %v1114
        %v1116 = vpop.f32.mrb[0].mxu0
        %1117 = vmatprep.mubr.f32.mxu0 0.0
        %1118 = vmatmul.mubr.f32.gmra.mrb[0].mxu0 %v852
        %v1119 = vpop.f32.mrb[0].mxu0
        %v1120 = vadd.f32 0.0, %v1119
        %v1121 = vpop.f32.mrb[0].mxu0
        %1122 = vmatprep.mubr.f32.mxu0 0.0
        %1123 = vmatmul.mubr.f32.gmra.mrb[0].mxu0 %v853
        %v1124 = vpop.f32.mrb[0].mxu0
        %v1125 = vadd.f32 0.0, %v1124
        %v1126 = vpop.f32.mrb[0].mxu0
        %1127 = vmatprep.mubr.f32.mxu0 0.0
        %1128 = vmatmul.mubr.f32.gmra.mrb[0].mxu0 %v854
        %v1129 = vpop.f32.mrb[0].mxu0
        %v1130 = vadd.f32 0.0, %v1129
        %v1131 = vpop.f32.mrb[0].mxu0
        %1132 = vmatprep.mubr.f32.mxu0 0.0
        %1133 = vmatmul.mubr.f32.gmra.mrb[0].mxu0 %v855
        %v1134 = vpop.f32.mrb[0].mxu0
        %v1135 = vadd.f32 0.0, %v1134
        %v1136 = vpop.f32.mrb[0].mxu0
        %1137 = vmatprep.mubr.f32.mxu0 0.0
        %1138 = vmatmul.mubr.f32.gmra.mrb[0].mxu0 %v856
        %v1139 = vpop.f32.mrb[0].mxu0
        %v1140 = vadd.f32 0.0, %v1139
        %v1141 = vpop.f32.mrb[0].mxu0
        %1142 = vmatprep.mubr.f32.mxu0 0.0
        %1143 = vmatmul.mubr.f32.gmra.mrb[0].mxu0 %v857
        %v1144 = vpop.f32.mrb[0].mxu0
        %v1145 = vadd.f32 0.0, %v1144
        %v1146 = vpop.f32.mrb[0].mxu0
        %1147 = vmatprep.mubr.f32.mxu0 0.0
        %1148 = vmatmul.mubr.f32.gmra.mrb[0].mxu0 %v858
        %v1149 = vpop.f32.mrb[0].mxu0
        %v1150 = vadd.f32 0.0, %v1149
        %v1151 = vpop.f32.mrb[0].mxu0
        %1152 = vmatprep.mubr.f32.mxu0 0.0
        %1153 = vmatmul.mubr.f32.gmra.mrb[0].mxu0 %v859
        %v1154 = vpop.f32.mrb[0].mxu0
        %v1155 = vadd.f32 0.0, %v1154
        %v1156 = vpop.f32.mrb[0].mxu0
        %1157 = vmatprep.mubr.f32.mxu0 0.0
        %1158 = vmatmul.mubr.f32.gmra.mrb[0].mxu0 %v860
        %v1159 = vpop.f32.mrb[0].mxu0
        %v1160 = vadd.f32 0.0, %v1159
        %v1161 = vpop.f32.mrb[0].mxu0
        %1162 = vmatprep.mubr.f32.mxu0 0.0
        %1163 = vmatmul.mubr.f32.gmra.mrb[0].mxu0 %v861
        %v1164 = vpop.f32.mrb[0].mxu0
        %v1165 = vadd.f32 0.0, %v1164
        %v1166 = vpop.f32.mrb[0].mxu0
        %1167 = vmatprep.mubr.f32.mxu0 0.0
        %1168 = vmatmul.mubr.f32.gmra.mrb[0].mxu0 %v862
        %v1169 = vpop.f32.mrb[0].mxu0
        %v1170 = vadd.f32 0.0, %v1169
        %v1171 = vpop.f32.mrb[0].mxu0
        %1172 = vmatprep.mubr.f32.mxu0 0.0
        %1173 = vmatmul.mubr.f32.gmra.mrb[0].mxu0 %v863
        %v1174 = vpop.f32.mrb[0].mxu0
        %v1175 = vadd.f32 0.0, %v1174
        %v1176 = vpop.f32.mrb[0].mxu0
        %1177 = vmatprep.mubr.f32.mxu0 0.0
        %1178 = vmatmul.mubr.f32.gmra.mrb[0].mxu0 %v864
        %v1179 = vpop.f32.mrb[0].mxu0
        %v1180 = vadd.f32 0.0, %v1179
        %v1181 = vpop.f32.mrb[0].mxu0
        %1182 = vmatprep.mubr.f32.mxu0 0.0
        %1183 = vmatmul.mubr.f32.gmra.mrb[0].mxu0 %v865
        %v1184 = vpop.f32.mrb[0].mxu0
        %v1185 = vadd.f32 0.0, %v1184
        %v1186 = vpop.f32.mrb[0].mxu0
        %1187 = vdwg.mxu0
        %v1188 = vadd.f32 %v722, %v950
        %v1189 = vadd.f32 %v723, %v955
        %v1190 = vadd.f32 %v724, %v960
        %v1191 = vadd.f32 %v725, %v965
        %v1192 = vadd.f32 %v726, %v970
        %v1193 = vadd.f32 %v727, %v975
        %v1194 = vadd.f32 %v728, %v980
        %v1195 = vadd.f32 %v729, %v985
        %v1196 = vadd.f32 %v730, %v990
        %v1197 = vadd.f32 %v731, %v995
        %v1198 = vadd.f32 %v732, %v1000
        %v1199 = vadd.f32 %v733, %v1005
        %v1200 = vadd.f32 %v734, %v1010
        %v1201 = vadd.f32 %v735, %v1015
        %v1202 = vadd.f32 %v736, %v1020
        %v1203 = vadd.f32 %v737, %v1025
        %v1204 = vadd.f32 %v738, %v1030
        %v1205 = vadd.f32 %v739, %v1035
        %v1206 = vadd.f32 %v740, %v1040
        %v1207 = vadd.f32 %v741, %v1045
        %v1208 = vadd.f32 %v742, %v1050
        %v1209 = vadd.f32 %v743, %v1055
        %v1210 = vadd.f32 %v744, %v1060
        %v1211 = vadd.f32 %v745, %v1065
        %v1212 = vadd.f32 %v746, %v1070
        %v1213 = vadd.f32 %v747, %v1075
        %v1214 = vadd.f32 %v748, %v1080
        %v1215 = vadd.f32 %v749, %v1085
        %v1216 = vadd.f32 %v750, %v1090
        %v1217 = vadd.f32 %v751, %v1095
        %v1218 = vadd.f32 %v752, %v1100
        %v1219 = vadd.f32 %v753, %v1105
        %v1220 = vadd.f32 %v754, %v1110
        %v1221 = vadd.f32 %v755, %v1115
        %v1222 = vadd.f32 %v756, %v1120
        %v1223 = vadd.f32 %v757, %v1125
        %v1224 = vadd.f32 %v758, %v1130
        %v1225 = vadd.f32 %v759, %v1135
        %v1226 = vadd.f32 %v760, %v1140
        %v1227 = vadd.f32 %v761, %v1145
        %v1228 = vadd.f32 %v762, %v1150
        %v1229 = vadd.f32 %v763, %v1155
        %v1230 = vadd.f32 %v764, %v1160
        %v1231 = vadd.f32 %v765, %v1165
        %v1232 = vadd.f32 %v766, %v1170
        %v1233 = vadd.f32 %v767, %v1175
        %v1234 = vadd.f32 %v768, %v1180
        %v1235 = vadd.f32 %v769, %v1185
        %1236 = vst [vmem:[#allocation3] sm:$0xff] %v1188
        %1237 = vst [vmem:[#allocation3 + $0x8] sm:$0xff] %v1189
        %1238 = vst [vmem:[#allocation3 + $0x10] sm:$0xff] %v1190
        %1239 = vst [vmem:[#allocation3 + $0x18] sm:$0xff] %v1191
        %1240 = vst [vmem:[#allocation3 + $0x20] sm:$0xff] %v1192
        %1241 = vst [vmem:[#allocation3 + $0x28] sm:$0xff] %v1193
        %1242 = vst [vmem:[#allocation3 + $0x30] sm:$0xff] %v1194
        %1243 = vst [vmem:[#allocation3 + $0x38] sm:$0xff] %v1195
        %1244 = vst [vmem:[#allocation3 + $0x40] sm:$0xff] %v1196
        %1245 = vst [vmem:[#allocation3 + $0x48] sm:$0xff] %v1197
        %1246 = vst [vmem:[#allocation3 + $0x50] sm:$0xff] %v1198
        %1247 = vst [vmem:[#allocation3 + $0x58] sm:$0xff] %v1199
        %1248 = vst [vmem:[#allocation3 + $0x60] sm:$0xff] %v1200
        %1249 = vst [vmem:[#allocation3 + $0x68] sm:$0xff] %v1201
        %1250 = vst [vmem:[#allocation3 + $0x70] sm:$0xff] %v1202
        %1251 = vst [vmem:[#allocation3 + $0x78] sm:$0xff] %v1203
        %1252 = vst [vmem:[#allocation3 + $0x80] sm:$0xff] %v1204
        %1253 = vst [vmem:[#allocation3 + $0x88] sm:$0xff] %v1205
        %1254 = vst [vmem:[#allocation3 + $0x90] sm:$0xff] %v1206
        %1255 = vst [vmem:[#allocation3 + $0x98] sm:$0xff] %v1207
        %1256 = vst [vmem:[#allocation3 + $0xa0] sm:$0xff] %v1208
        %1257 = vst [vmem:[#allocation3 + $0xa8] sm:$0xff] %v1209
        %1258 = vst [vmem:[#allocation3 + $0xb0] sm:$0xff] %v1210
        %1259 = vst [vmem:[#allocation3 + $0xb8] sm:$0xff] %v1211
        %1260 = vst [vmem:[#allocation3 + $0xc0] sm:$0xff] %v1212
        %1261 = vst [vmem:[#allocation3 + $0xc8] sm:$0xff] %v1213
        %1262 = vst [vmem:[#allocation3 + $0xd0] sm:$0xff] %v1214
        %1263 = vst [vmem:[#allocation3 + $0xd8] sm:$0xff] %v1215
        %1264 = vst [vmem:[#allocation3 + $0xe0] sm:$0xff] %v1216
        %1265 = vst [vmem:[#allocation3 + $0xe8] sm:$0xff] %v1217
        %1266 = vst [vmem:[#allocation3 + $0xf0] sm:$0xff] %v1218
        %1267 = vst [vmem:[#allocation3 + $0xf8] sm:$0xff] %v1219
        %1268 = vst [vmem:[#allocation3 + $0x100] sm:$0xff] %v1220
        %1269 = vst [vmem:[#allocation3 + $0x108] sm:$0xff] %v1221
        %1270 = vst [vmem:[#allocation3 + $0x110] sm:$0xff] %v1222
        %1271 = vst [vmem:[#allocation3 + $0x118] sm:$0xff] %v1223
        %1272 = vst [vmem:[#allocation3 + $0x120] sm:$0xff] %v1224
        %1273 = vst [vmem:[#allocation3 + $0x128] sm:$0xff] %v1225
        %1274 = vst [vmem:[#allocation3 + $0x130] sm:$0xff] %v1226
        %1275 = vst [vmem:[#allocation3 + $0x138] sm:$0xff] %v1227
        %1276 = vst [vmem:[#allocation3 + $0x140] sm:$0xff] %v1228
        %1277 = vst [vmem:[#allocation3 + $0x148] sm:$0xff] %v1229
        %1278 = vst [vmem:[#allocation3 + $0x150] sm:$0xff] %v1230
        %1279 = vst [vmem:[#allocation3 + $0x158] sm:$0xff] %v1231
        %1280 = vst [vmem:[#allocation3 + $0x160] sm:$0xff] %v1232
        %1281 = vst [vmem:[#allocation3 + $0x168] sm:$0xff] %v1233
        %1282 = vst [vmem:[#allocation3 + $0x170] sm:$0xff] %v1234
        %1283 = vst [vmem:[#allocation3 + $0x178] sm:$0xff] %v1235
        %p1284 = scmp.eq.s32.totalorder %s39, 2
        // Predicated region
        $region89: #{tpu_custom_call.1} parent=63 // pred_check
          %p1285 = pneg %p1284
        $region90: #{tpu_custom_call.1} parent=63 // pred_check_branch
          %1287 = sbr.rel (%p1285) target = $region92
        $region91: #{tpu_custom_call.1} parent=63 // pred_region
          %v1288 = vld [vmem:[%s613] sm:$0x1]
          %v1289 = vadd.f32 %v1288, 1.0
          %v1290 = vld [vmem:[#allocation2] sm:$0xff]
          %v1291 = vld [vmem:[#allocation2 + $0x8] sm:$0xff]
          %v1292 = vld [vmem:[#allocation2 + $0x10] sm:$0xff]
          %v1293 = vld [vmem:[#allocation2 + $0x18] sm:$0xff]
          %v1294 = vld [vmem:[#allocation2 + $0x20] sm:$0xff]
          %v1295 = vld [vmem:[#allocation2 + $0x28] sm:$0xff]
          %v1296 = vld [vmem:[#allocation2 + $0x30] sm:$0xff]
          %v1297 = vld [vmem:[#allocation2 + $0x38] sm:$0xff]
          %v1298 = vld [vmem:[#allocation2 + $0x40] sm:$0xff]
          %v1299 = vld [vmem:[#allocation2 + $0x48] sm:$0xff]
          %v1300 = vld [vmem:[#allocation2 + $0x50] sm:$0xff]
          %v1301 = vld [vmem:[#allocation2 + $0x58] sm:$0xff]
          %v1302 = vld [vmem:[#allocation2 + $0x60] sm:$0xff]
          %v1303 = vld [vmem:[#allocation2 + $0x68] sm:$0xff]
          %v1304 = vld [vmem:[#allocation2 + $0x70] sm:$0xff]
          %v1305 = vld [vmem:[#allocation2 + $0x78] sm:$0xff]
          %v1306 = vld [vmem:[#allocation2 + $0x80] sm:$0xff]
          %v1307 = vld [vmem:[#allocation2 + $0x88] sm:$0xff]
          %v1308 = vld [vmem:[#allocation2 + $0x90] sm:$0xff]
          %v1309 = vld [vmem:[#allocation2 + $0x98] sm:$0xff]
          %v1310 = vld [vmem:[#allocation2 + $0xa0] sm:$0xff]
          %v1311 = vld [vmem:[#allocation2 + $0xa8] sm:$0xff]
          %v1312 = vld [vmem:[#allocation2 + $0xb0] sm:$0xff]
          %v1313 = vld [vmem:[#allocation2 + $0xb8] sm:$0xff]
          %v1314 = vld [vmem:[#allocation2 + $0xc0] sm:$0xff]
          %v1315 = vld [vmem:[#allocation2 + $0xc8] sm:$0xff]
          %v1316 = vld [vmem:[#allocation2 + $0xd0] sm:$0xff]
          %v1317 = vld [vmem:[#allocation2 + $0xd8] sm:$0xff]
          %v1318 = vld [vmem:[#allocation2 + $0xe0] sm:$0xff]
          %v1319 = vld [vmem:[#allocation2 + $0xe8] sm:$0xff]
          %v1320 = vld [vmem:[#allocation2 + $0xf0] sm:$0xff]
          %v1321 = vld [vmem:[#allocation2 + $0xf8] sm:$0xff]
          %v1322 = vld [vmem:[#allocation2 + $0x100] sm:$0xff]
          %v1323 = vld [vmem:[#allocation2 + $0x108] sm:$0xff]
          %v1324 = vld [vmem:[#allocation2 + $0x110] sm:$0xff]
          %v1325 = vld [vmem:[#allocation2 + $0x118] sm:$0xff]
          %v1326 = vld [vmem:[#allocation2 + $0x120] sm:$0xff]
          %v1327 = vld [vmem:[#allocation2 + $0x128] sm:$0xff]
          %v1328 = vld [vmem:[#allocation2 + $0x130] sm:$0xff]
          %v1329 = vld [vmem:[#allocation2 + $0x138] sm:$0xff]
          %v1330 = vld [vmem:[#allocation2 + $0x140] sm:$0xff]
          %v1331 = vld [vmem:[#allocation2 + $0x148] sm:$0xff]
          %v1332 = vld [vmem:[#allocation2 + $0x150] sm:$0xff]
          %v1333 = vld [vmem:[#allocation2 + $0x158] sm:$0xff]
          %v1334 = vld [vmem:[#allocation2 + $0x160] sm:$0xff]
          %v1335 = vld [vmem:[#allocation2 + $0x168] sm:$0xff]
          %v1336 = vld [vmem:[#allocation2 + $0x170] sm:$0xff]
          %v1337 = vld [vmem:[#allocation2 + $0x178] sm:$0xff]
          %v1339 = vlaneseq
          %v1340 = vshrl.u32 %v1339, 7
          %v1341 = vsub.s32 0, %v1340
          %v1342 = vrot.slane %v1289, %v1341
          %v1344 = vmul.f32 %v1342, %v1290
          %v1345 = vmul.f32 %v1342, %v1291
          %v1346 = vmul.f32 %v1342, %v1292
          %v1347 = vmul.f32 %v1342, %v1293
          %v1348 = vmul.f32 %v1342, %v1294
          %v1349 = vmul.f32 %v1342, %v1295
          %v1350 = vmul.f32 %v1342, %v1296
          %v1351 = vmul.f32 %v1342, %v1297
          %v1352 = vmul.f32 %v1342, %v1298
          %v1353 = vmul.f32 %v1342, %v1299
          %v1354 = vmul.f32 %v1342, %v1300
          %v1355 = vmul.f32 %v1342, %v1301
          %v1356 = vmul.f32 %v1342, %v1302
          %v1357 = vmul.f32 %v1342, %v1303
          %v1358 = vmul.f32 %v1342, %v1304
          %v1359 = vmul.f32 %v1342, %v1305
          %v1360 = vmul.f32 %v1342, %v1306
          %v1361 = vmul.f32 %v1342, %v1307
          %v1362 = vmul.f32 %v1342, %v1308
          %v1363 = vmul.f32 %v1342, %v1309
          %v1364 = vmul.f32 %v1342, %v1310
          %v1365 = vmul.f32 %v1342, %v1311
          %v1366 = vmul.f32 %v1342, %v1312
          %v1367 = vmul.f32 %v1342, %v1313
          %v1368 = vmul.f32 %v1342, %v1314
          %v1369 = vmul.f32 %v1342, %v1315
          %v1370 = vmul.f32 %v1342, %v1316
          %v1371 = vmul.f32 %v1342, %v1317
          %v1372 = vmul.f32 %v1342, %v1318
          %v1373 = vmul.f32 %v1342, %v1319
          %v1374 = vmul.f32 %v1342, %v1320
          %v1375 = vmul.f32 %v1342, %v1321
          %v1376 = vmul.f32 %v1342, %v1322
          %v1377 = vmul.f32 %v1342, %v1323
          %v1378 = vmul.f32 %v1342, %v1324
          %v1379 = vmul.f32 %v1342, %v1325
          %v1380 = vmul.f32 %v1342, %v1326
          %v1381 = vmul.f32 %v1342, %v1327
          %v1382 = vmul.f32 %v1342, %v1328
          %v1383 = vmul.f32 %v1342, %v1329
          %v1384 = vmul.f32 %v1342, %v1330
          %v1385 = vmul.f32 %v1342, %v1331
          %v1386 = vmul.f32 %v1342, %v1332
          %v1387 = vmul.f32 %v1342, %v1333
          %v1388 = vmul.f32 %v1342, %v1334
          %v1389 = vmul.f32 %v1342, %v1335
          %v1390 = vmul.f32 %v1342, %v1336
          %v1391 = vmul.f32 %v1342, %v1337
          %v1392 = vld [vmem:[#allocation3] sm:$0xff]
          %v1393 = vld [vmem:[#allocation3 + $0x8] sm:$0xff]
          %v1394 = vld [vmem:[#allocation3 + $0x10] sm:$0xff]
          %v1395 = vld [vmem:[#allocation3 + $0x18] sm:$0xff]
          %v1396 = vld [vmem:[#allocation3 + $0x20] sm:$0xff]
          %v1397 = vld [vmem:[#allocation3 + $0x28] sm:$0xff]
          %v1398 = vld [vmem:[#allocation3 + $0x30] sm:$0xff]
          %v1399 = vld [vmem:[#allocation3 + $0x38] sm:$0xff]
          %v1400 = vld [vmem:[#allocation3 + $0x40] sm:$0xff]
          %v1401 = vld [vmem:[#allocation3 + $0x48] sm:$0xff]
          %v1402 = vld [vmem:[#allocation3 + $0x50] sm:$0xff]
          %v1403 = vld [vmem:[#allocation3 + $0x58] sm:$0xff]
          %v1404 = vld [vmem:[#allocation3 + $0x60] sm:$0xff]
          %v1405 = vld [vmem:[#allocation3 + $0x68] sm:$0xff]
          %v1406 = vld [vmem:[#allocation3 + $0x70] sm:$0xff]
          %v1407 = vld [vmem:[#allocation3 + $0x78] sm:$0xff]
          %v1408 = vld [vmem:[#allocation3 + $0x80] sm:$0xff]
          %v1409 = vld [vmem:[#allocation3 + $0x88] sm:$0xff]
          %v1410 = vld [vmem:[#allocation3 + $0x90] sm:$0xff]
          %v1411 = vld [vmem:[#allocation3 + $0x98] sm:$0xff]
          %v1412 = vld [vmem:[#allocation3 + $0xa0] sm:$0xff]
          %v1413 = vld [vmem:[#allocation3 + $0xa8] sm:$0xff]
          %v1414 = vld [vmem:[#allocation3 + $0xb0] sm:$0xff]
          %v1415 = vld [vmem:[#allocation3 + $0xb8] sm:$0xff]
          %v1416 = vld [vmem:[#allocation3 + $0xc0] sm:$0xff]
          %v1417 = vld [vmem:[#allocation3 + $0xc8] sm:$0xff]
          %v1418 = vld [vmem:[#allocation3 + $0xd0] sm:$0xff]
          %v1419 = vld [vmem:[#allocation3 + $0xd8] sm:$0xff]
          %v1420 = vld [vmem:[#allocation3 + $0xe0] sm:$0xff]
          %v1421 = vld [vmem:[#allocation3 + $0xe8] sm:$0xff]
          %v1422 = vld [vmem:[#allocation3 + $0xf0] sm:$0xff]
          %v1423 = vld [vmem:[#allocation3 + $0xf8] sm:$0xff]
          %v1424 = vld [vmem:[#allocation3 + $0x100] sm:$0xff]
          %v1425 = vld [vmem:[#allocation3 + $0x108] sm:$0xff]
          %v1426 = vld [vmem:[#allocation3 + $0x110] sm:$0xff]
          %v1427 = vld [vmem:[#allocation3 + $0x118] sm:$0xff]
          %v1428 = vld [vmem:[#allocation3 + $0x120] sm:$0xff]
          %v1429 = vld [vmem:[#allocation3 + $0x128] sm:$0xff]
          %v1430 = vld [vmem:[#allocation3 + $0x130] sm:$0xff]
          %v1431 = vld [vmem:[#allocation3 + $0x138] sm:$0xff]
          %v1432 = vld [vmem:[#allocation3 + $0x140] sm:$0xff]
          %v1433 = vld [vmem:[#allocation3 + $0x148] sm:$0xff]
          %v1434 = vld [vmem:[#allocation3 + $0x150] sm:$0xff]
          %v1435 = vld [vmem:[#allocation3 + $0x158] sm:$0xff]
          %v1436 = vld [vmem:[#allocation3 + $0x160] sm:$0xff]
          %v1437 = vld [vmem:[#allocation3 + $0x168] sm:$0xff]
          %v1438 = vld [vmem:[#allocation3 + $0x170] sm:$0xff]
          %v1439 = vld [vmem:[#allocation3 + $0x178] sm:$0xff]
          %v1440 = vadd.f32 %v1344, %v1392
          %v1441 = vadd.f32 %v1345, %v1393
          %v1442 = vadd.f32 %v1346, %v1394
          %v1443 = vadd.f32 %v1347, %v1395
          %v1444 = vadd.f32 %v1348, %v1396
          %v1445 = vadd.f32 %v1349, %v1397
          %v1446 = vadd.f32 %v1350, %v1398
          %v1447 = vadd.f32 %v1351, %v1399
          %v1448 = vadd.f32 %v1352, %v1400
          %v1449 = vadd.f32 %v1353, %v1401
          %v1450 = vadd.f32 %v1354, %v1402
          %v1451 = vadd.f32 %v1355, %v1403
          %v1452 = vadd.f32 %v1356, %v1404
          %v1453 = vadd.f32 %v1357, %v1405
          %v1454 = vadd.f32 %v1358, %v1406
          %v1455 = vadd.f32 %v1359, %v1407
          %v1456 = vadd.f32 %v1360, %v1408
          %v1457 = vadd.f32 %v1361, %v1409
          %v1458 = vadd.f32 %v1362, %v1410
          %v1459 = vadd.f32 %v1363, %v1411
          %v1460 = vadd.f32 %v1364, %v1412
          %v1461 = vadd.f32 %v1365, %v1413
          %v1462 = vadd.f32 %v1366, %v1414
          %v1463 = vadd.f32 %v1367, %v1415
          %v1464 = vadd.f32 %v1368, %v1416
          %v1465 = vadd.f32 %v1369, %v1417
          %v1466 = vadd.f32 %v1370, %v1418
          %v1467 = vadd.f32 %v1371, %v1419
          %v1468 = vadd.f32 %v1372, %v1420
          %v1469 = vadd.f32 %v1373, %v1421
          %v1470 = vadd.f32 %v1374, %v1422
          %v1471 = vadd.f32 %v1375, %v1423
          %v1472 = vadd.f32 %v1376, %v1424
          %v1473 = vadd.f32 %v1377, %v1425
          %v1474 = vadd.f32 %v1378, %v1426
          %v1475 = vadd.f32 %v1379, %v1427
          %v1476 = vadd.f32 %v1380, %v1428
          %v1477 = vadd.f32 %v1381, %v1429
          %v1478 = vadd.f32 %v1382, %v1430
          %v1479 = vadd.f32 %v1383, %v1431
          %v1480 = vadd.f32 %v1384, %v1432
          %v1481 = vadd.f32 %v1385, %v1433
          %v1482 = vadd.f32 %v1386, %v1434
          %v1483 = vadd.f32 %v1387, %v1435
          %v1484 = vadd.f32 %v1388, %v1436
          %v1485 = vadd.f32 %v1389, %v1437
          %v1486 = vadd.f32 %v1390, %v1438
          %v1487 = vadd.f32 %v1391, %v1439
          %v1488 = vlaneseq
          %v1489 = vshrl.u32 %v1488, 7
          %v1490 = vadd.s32 %v1489, 8
          %v1491 = vadd.s32 %v1489, 16
          %v1492 = vadd.s32 %v1489, 24
          %v1493 = vadd.s32 %v1489, 32
          %v1494 = vadd.s32 %v1489, 40
          %v1495 = vadd.s32 %v1489, 48
          %v1496 = vadd.s32 %v1489, 56
          %v1497 = vadd.s32 %v1489, 64
          %v1498 = vadd.s32 %v1489, 72
          %v1499 = vadd.s32 %v1489, 80
          %v1500 = vadd.s32 %v1489, 88
          %v1501 = vadd.s32 %v1489, 96
          %v1502 = vadd.s32 %v1489, 104
          %v1503 = vadd.s32 %v1489, 112
          %v1504 = vadd.s32 %v1489, 120
          %v1505 = vadd.s32 %v1489, 128
          %v1506 = vadd.s32 %v1489, 136
          %v1507 = vadd.s32 %v1489, 144
          %v1508 = vadd.s32 %v1489, 152
          %v1509 = vadd.s32 %v1489, 160
          %v1510 = vadd.s32 %v1489, 168
          %v1511 = vadd.s32 %v1489, 176
          %v1512 = vadd.s32 %v1489, 184
          %v1513 = vadd.s32 %v1489, 192
          %v1514 = vadd.s32 %v1489, 200
          %v1515 = vadd.s32 %v1489, 208
          %v1516 = vadd.s32 %v1489, 216
          %v1517 = vadd.s32 %v1489, 224
          %v1518 = vadd.s32 %v1489, 232
          %v1519 = vadd.s32 %v1489, 240
          %v1520 = vadd.s32 %v1489, 248
          %v1521 = vadd.s32 %v1489, 256
          %v1522 = vadd.s32 %v1489, 264
          %v1523 = vadd.s32 %v1489, 272
          %v1524 = vadd.s32 %v1489, 280
          %v1525 = vadd.s32 %v1489, 288
          %v1526 = vadd.s32 %v1489, 296
          %v1527 = vadd.s32 %v1489, 304
          %v1528 = vadd.s32 %v1489, 312
          %v1529 = vadd.s32 %v1489, 320
          %v1530 = vadd.s32 %v1489, 328
          %v1531 = vadd.s32 %v1489, 336
          %v1532 = vadd.s32 %v1489, 344
          %v1533 = vadd.s32 %v1489, 352
          %v1534 = vadd.s32 %v1489, 360
          %v1535 = vadd.s32 %v1489, 368
          %v1536 = vadd.s32 %v1489, 376
          %vm1537 = vcmp.lt.s32.totalorder %v1489, 300
          %vm1538 = vcmp.lt.s32.totalorder %v1490, 300
          %vm1539 = vcmp.lt.s32.totalorder %v1491, 300
          %vm1540 = vcmp.lt.s32.totalorder %v1492, 300
          %vm1541 = vcmp.lt.s32.totalorder %v1493, 300
          %vm1542 = vcmp.lt.s32.totalorder %v1494, 300
          %vm1543 = vcmp.lt.s32.totalorder %v1495, 300
          %vm1544 = vcmp.lt.s32.totalorder %v1496, 300
          %vm1545 = vcmp.lt.s32.totalorder %v1497, 300
          %vm1546 = vcmp.lt.s32.totalorder %v1498, 300
          %vm1547 = vcmp.lt.s32.totalorder %v1499, 300
          %vm1548 = vcmp.lt.s32.totalorder %v1500, 300
          %vm1549 = vcmp.lt.s32.totalorder %v1501, 300
          %vm1550 = vcmp.lt.s32.totalorder %v1502, 300
          %vm1551 = vcmp.lt.s32.totalorder %v1503, 300
          %vm1552 = vcmp.lt.s32.totalorder %v1504, 300
          %vm1553 = vcmp.lt.s32.totalorder %v1505, 300
          %vm1554 = vcmp.lt.s32.totalorder %v1506, 300
          %vm1555 = vcmp.lt.s32.totalorder %v1507, 300
          %vm1556 = vcmp.lt.s32.totalorder %v1508, 300
          %vm1557 = vcmp.lt.s32.totalorder %v1509, 300
          %vm1558 = vcmp.lt.s32.totalorder %v1510, 300
          %vm1559 = vcmp.lt.s32.totalorder %v1511, 300
          %vm1560 = vcmp.lt.s32.totalorder %v1512, 300
          %vm1561 = vcmp.lt.s32.totalorder %v1513, 300
          %vm1562 = vcmp.lt.s32.totalorder %v1514, 300
          %vm1563 = vcmp.lt.s32.totalorder %v1515, 300
          %vm1564 = vcmp.lt.s32.totalorder %v1516, 300
          %vm1565 = vcmp.lt.s32.totalorder %v1517, 300
          %vm1566 = vcmp.lt.s32.totalorder %v1518, 300
          %vm1567 = vcmp.lt.s32.totalorder %v1519, 300
          %vm1568 = vcmp.lt.s32.totalorder %v1520, 300
          %vm1569 = vcmp.lt.s32.totalorder %v1521, 300
          %vm1570 = vcmp.lt.s32.totalorder %v1522, 300
          %vm1571 = vcmp.lt.s32.totalorder %v1523, 300
          %vm1572 = vcmp.lt.s32.totalorder %v1524, 300
          %vm1573 = vcmp.lt.s32.totalorder %v1525, 300
          %vm1574 = vcmp.lt.s32.totalorder %v1526, 300
          %vm1575 = vcmp.lt.s32.totalorder %v1527, 300
          %vm1576 = vcmp.lt.s32.totalorder %v1528, 300
          %vm1577 = vcmp.lt.s32.totalorder %v1529, 300
          %vm1578 = vcmp.lt.s32.totalorder %v1530, 300
          %vm1579 = vcmp.lt.s32.totalorder %v1531, 300
          %vm1580 = vcmp.lt.s32.totalorder %v1532, 300
          %vm1581 = vcmp.lt.s32.totalorder %v1533, 300
          %vm1582 = vcmp.lt.s32.totalorder %v1534, 300
          %vm1583 = vcmp.lt.s32.totalorder %v1535, 300
          %vm1584 = vcmp.lt.s32.totalorder %v1536, 300
          %v1585 = vld [vmem:[%s526] sm:$0xff]
          %v1586 = vld [vmem:[%s526 + $0x8] sm:$0xff]
          %v1587 = vld [vmem:[%s526 + $0x10] sm:$0xff]
          %v1588 = vld [vmem:[%s526 + $0x18] sm:$0xff]
          %v1589 = vld [vmem:[%s526 + $0x20] sm:$0xff]
          %v1590 = vld [vmem:[%s526 + $0x28] sm:$0xff]
          %v1591 = vld [vmem:[%s526 + $0x30] sm:$0xff]
          %v1592 = vld [vmem:[%s526 + $0x38] sm:$0xff]
          %v1593 = vld [vmem:[%s526 + $0x40] sm:$0xff]
          %v1594 = vld [vmem:[%s526 + $0x48] sm:$0xff]
          %v1595 = vld [vmem:[%s526 + $0x50] sm:$0xff]
          %v1596 = vld [vmem:[%s526 + $0x58] sm:$0xff]
          %v1597 = vld [vmem:[%s526 + $0x60] sm:$0xff]
          %v1598 = vld [vmem:[%s526 + $0x68] sm:$0xff]
          %v1599 = vld [vmem:[%s526 + $0x70] sm:$0xff]
          %v1600 = vld [vmem:[%s526 + $0x78] sm:$0xff]
          %1601 = vmatprep.subr.mxu0 0.0
          %1602 = vmatpush1.msra.mxu0 %v1585
          %1603 = vmatprep.subr.mxu0 0.0
          %1604 = vmatpush1.msra.mxu0 %v1586
          %1605 = vmatprep.subr.mxu0 0.0
          %1606 = vmatpush1.msra.mxu0 %v1587
          %1607 = vmatprep.subr.mxu0 0.0
          %1608 = vmatpush1.msra.mxu0 %v1588
          %1609 = vmatprep.subr.mxu0 0.0
          %1610 = vmatpush1.msra.mxu0 %v1589
          %1611 = vmatprep.subr.mxu0 0.0
          %1612 = vmatpush1.msra.mxu0 %v1590
          %1613 = vmatprep.subr.mxu0 0.0
          %1614 = vmatpush1.msra.mxu0 %v1591
          %1615 = vmatprep.subr.mxu0 0.0
          %1616 = vmatpush1.msra.mxu0 %v1592
          %1617 = vmatprep.subr.mxu0 0.0
          %1618 = vmatpush1.msra.mxu0 %v1593
          %1619 = vmatprep.subr.mxu0 0.0
          %1620 = vmatpush1.msra.mxu0 %v1594
          %1621 = vmatprep.subr.mxu0 0.0
          %1622 = vmatpush1.msra.mxu0 %v1595
          %1623 = vmatprep.subr.mxu0 0.0
          %1624 = vmatpush1.msra.mxu0 %v1596
          %1625 = vmatprep.subr.mxu0 0.0
          %1626 = vmatpush1.msra.mxu0 %v1597
          %1627 = vmatprep.subr.mxu0 0.0
          %1628 = vmatpush1.msra.mxu0 %v1598
          %1629 = vmatprep.subr.mxu0 0.0
          %1630 = vmatpush1.msra.mxu0 %v1599
          %1631 = vmatprep.subr.mxu0 0.0
          %1632 = vmatpush1.msra.mxu0 %v1600
          %1633 = vmatprep.subr.mxu0 0.0
          %1634 = vmatpush1.msra.mxu0 0.0
          %1635 = vmatprep.subr.mxu0 0.0
          %1636 = vmatpush1.msra.mxu0 0.0
          %1637 = vmatprep.subr.mxu0 0.0
          %1638 = vmatpush1.msra.mxu0 0.0
          %1639 = vmatprep.subr.mxu0 0.0
          %1640 = vmatpush1.msra.mxu0 0.0
          %1641 = vmatprep.subr.mxu0 0.0
          %1642 = vmatpush1.msra.mxu0 0.0
          %1643 = vmatprep.subr.mxu0 0.0
          %1644 = vmatpush1.msra.mxu0 0.0
          %1645 = vmatprep.subr.mxu0 0.0
          %1646 = vmatpush1.msra.mxu0 0.0
          %1647 = vmatprep.subr.mxu0 0.0
          %1648 = vmatpush1.msra.mxu0 0.0
          %1649 = vmatprep.subr.mxu0 0.0
          %1650 = vmatpush1.msra.mxu0 0.0
          %1651 = vmatprep.subr.mxu0 0.0
          %1652 = vmatpush1.msra.mxu0 0.0
          %1653 = vmatprep.subr.mxu0 0.0
          %1654 = vmatpush1.msra.mxu0 0.0
          %1655 = vmatprep.subr.mxu0 0.0
          %1656 = vmatpush1.msra.mxu0 0.0
          %1657 = vmatprep.subr.mxu0 0.0
          %1658 = vmatpush1.msra.mxu0 0.0
          %1659 = vmatprep.subr.mxu0 0.0
          %1660 = vmatpush1.msra.mxu0 0.0
          %1661 = vmatprep.subr.mxu0 0.0
          %1662 = vmatpush1.msra.mxu0 0.0
          %1663 = vmatprep.subr.mxu0 0.0
          %1664 = vmatpush1.msra.mxu0 0.0
          %1665 = vmatprep.mubr.f32.mxu0 0.0
          %1666 = vmatmul.mubr.f32.gmra.mrb[0].mxu0 %v1440
          %v1667 = vpop.f32.mrb[0].mxu0
          %v1668 = vadd.f32 0.0, %v1667
          %v1669 = vpop.f32.mrb[0].mxu0
          %1670 = vmatprep.mubr.f32.mxu0 0.0
          %1671 = vmatmul.mubr.f32.gmra.mrb[0].mxu0 %v1441
          %v1672 = vpop.f32.mrb[0].mxu0
          %v1673 = vadd.f32 0.0, %v1672
          %v1674 = vpop.f32.mrb[0].mxu0
          %1675 = vmatprep.mubr.f32.mxu0 0.0
          %1676 = vmatmul.mubr.f32.gmra.mrb[0].mxu0 %v1442
          %v1677 = vpop.f32.mrb[0].mxu0
          %v1678 = vadd.f32 0.0, %v1677
          %v1679 = vpop.f32.mrb[0].mxu0
          %1680 = vmatprep.mubr.f32.mxu0 0.0
          %1681 = vmatmul.mubr.f32.gmra.mrb[0].mxu0 %v1443
          %v1682 = vpop.f32.mrb[0].mxu0
          %v1683 = vadd.f32 0.0, %v1682
          %v1684 = vpop.f32.mrb[0].mxu0
          %1685 = vmatprep.mubr.f32.mxu0 0.0
          %1686 = vmatmul.mubr.f32.gmra.mrb[0].mxu0 %v1444
          %v1687 = vpop.f32.mrb[0].mxu0
          %v1688 = vadd.f32 0.0, %v1687
          %v1689 = vpop.f32.mrb[0].mxu0
          %1690 = vmatprep.mubr.f32.mxu0 0.0
          %1691 = vmatmul.mubr.f32.gmra.mrb[0].mxu0 %v1445
          %v1692 = vpop.f32.mrb[0].mxu0
          %v1693 = vadd.f32 0.0, %v1692
          %v1694 = vpop.f32.mrb[0].mxu0
          %1695 = vmatprep.mubr.f32.mxu0 0.0
          %1696 = vmatmul.mubr.f32.gmra.mrb[0].mxu0 %v1446
          %v1697 = vpop.f32.mrb[0].mxu0
          %v1698 = vadd.f32 0.0, %v1697
          %v1699 = vpop.f32.mrb[0].mxu0
          %1700 = vmatprep.mubr.f32.mxu0 0.0
          %1701 = vmatmul.mubr.f32.gmra.mrb[0].mxu0 %v1447
          %v1702 = vpop.f32.mrb[0].mxu0
          %v1703 = vadd.f32 0.0, %v1702
          %v1704 = vpop.f32.mrb[0].mxu0
          %1705 = vmatprep.mubr.f32.mxu0 0.0
          %1706 = vmatmul.mubr.f32.gmra.mrb[0].mxu0 %v1448
          %v1707 = vpop.f32.mrb[0].mxu0
          %v1708 = vadd.f32 0.0, %v1707
          %v1709 = vpop.f32.mrb[0].mxu0
          %1710 = vmatprep.mubr.f32.mxu0 0.0
          %1711 = vmatmul.mubr.f32.gmra.mrb[0].mxu0 %v1449
          %v1712 = vpop.f32.mrb[0].mxu0
          %v1713 = vadd.f32 0.0, %v1712
          %v1714 = vpop.f32.mrb[0].mxu0
          %1715 = vmatprep.mubr.f32.mxu0 0.0
          %1716 = vmatmul.mubr.f32.gmra.mrb[0].mxu0 %v1450
          %v1717 = vpop.f32.mrb[0].mxu0
          %v1718 = vadd.f32 0.0, %v1717
          %v1719 = vpop.f32.mrb[0].mxu0
          %1720 = vmatprep.mubr.f32.mxu0 0.0
          %1721 = vmatmul.mubr.f32.gmra.mrb[0].mxu0 %v1451
          %v1722 = vpop.f32.mrb[0].mxu0
          %v1723 = vadd.f32 0.0, %v1722
          %v1724 = vpop.f32.mrb[0].mxu0
          %1725 = vmatprep.mubr.f32.mxu0 0.0
          %1726 = vmatmul.mubr.f32.gmra.mrb[0].mxu0 %v1452
          %v1727 = vpop.f32.mrb[0].mxu0
          %v1728 = vadd.f32 0.0, %v1727
          %v1729 = vpop.f32.mrb[0].mxu0
          %1730 = vmatprep.mubr.f32.mxu0 0.0
          %1731 = vmatmul.mubr.f32.gmra.mrb[0].mxu0 %v1453
          %v1732 = vpop.f32.mrb[0].mxu0
          %v1733 = vadd.f32 0.0, %v1732
          %v1734 = vpop.f32.mrb[0].mxu0
          %1735 = vmatprep.mubr.f32.mxu0 0.0
          %1736 = vmatmul.mubr.f32.gmra.mrb[0].mxu0 %v1454
          %v1737 = vpop.f32.mrb[0].mxu0
          %v1738 = vadd.f32 0.0, %v1737
          %v1739 = vpop.f32.mrb[0].mxu0
          %1740 = vmatprep.mubr.f32.mxu0 0.0
          %1741 = vmatmul.mubr.f32.gmra.mrb[0].mxu0 %v1455
          %v1742 = vpop.f32.mrb[0].mxu0
          %v1743 = vadd.f32 0.0, %v1742
          %v1744 = vpop.f32.mrb[0].mxu0
          %1745 = vmatprep.mubr.f32.mxu0 0.0
          %1746 = vmatmul.mubr.f32.gmra.mrb[0].mxu0 %v1456
          %v1747 = vpop.f32.mrb[0].mxu0
          %v1748 = vadd.f32 0.0, %v1747
          %v1749 = vpop.f32.mrb[0].mxu0
          %1750 = vmatprep.mubr.f32.mxu0 0.0
          %1751 = vmatmul.mubr.f32.gmra.mrb[0].mxu0 %v1457
          %v1752 = vpop.f32.mrb[0].mxu0
          %v1753 = vadd.f32 0.0, %v1752
          %v1754 = vpop.f32.mrb[0].mxu0
          %1755 = vmatprep.mubr.f32.mxu0 0.0
          %1756 = vmatmul.mubr.f32.gmra.mrb[0].mxu0 %v1458
          %v1757 = vpop.f32.mrb[0].mxu0
          %v1758 = vadd.f32 0.0, %v1757
          %v1759 = vpop.f32.mrb[0].mxu0
          %1760 = vmatprep.mubr.f32.mxu0 0.0
          %1761 = vmatmul.mubr.f32.gmra.mrb[0].mxu0 %v1459
          %v1762 = vpop.f32.mrb[0].mxu0
          %v1763 = vadd.f32 0.0, %v1762
          %v1764 = vpop.f32.mrb[0].mxu0
          %1765 = vmatprep.mubr.f32.mxu0 0.0
          %1766 = vmatmul.mubr.f32.gmra.mrb[0].mxu0 %v1460
          %v1767 = vpop.f32.mrb[0].mxu0
          %v1768 = vadd.f32 0.0, %v1767
          %v1769 = vpop.f32.mrb[0].mxu0
          %1770 = vmatprep.mubr.f32.mxu0 0.0
          %1771 = vmatmul.mubr.f32.gmra.mrb[0].mxu0 %v1461
          %v1772 = vpop.f32.mrb[0].mxu0
          %v1773 = vadd.f32 0.0, %v1772
          %v1774 = vpop.f32.mrb[0].mxu0
          %1775 = vmatprep.mubr.f32.mxu0 0.0
          %1776 = vmatmul.mubr.f32.gmra.mrb[0].mxu0 %v1462
          %v1777 = vpop.f32.mrb[0].mxu0
          %v1778 = vadd.f32 0.0, %v1777
          %v1779 = vpop.f32.mrb[0].mxu0
          %1780 = vmatprep.mubr.f32.mxu0 0.0
          %1781 = vmatmul.mubr.f32.gmra.mrb[0].mxu0 %v1463
          %v1782 = vpop.f32.mrb[0].mxu0
          %v1783 = vadd.f32 0.0, %v1782
          %v1784 = vpop.f32.mrb[0].mxu0
          %1785 = vmatprep.mubr.f32.mxu0 0.0
          %1786 = vmatmul.mubr.f32.gmra.mrb[0].mxu0 %v1464
          %v1787 = vpop.f32.mrb[0].mxu0
          %v1788 = vadd.f32 0.0, %v1787
          %v1789 = vpop.f32.mrb[0].mxu0
          %1790 = vmatprep.mubr.f32.mxu0 0.0
          %1791 = vmatmul.mubr.f32.gmra.mrb[0].mxu0 %v1465
          %v1792 = vpop.f32.mrb[0].mxu0
          %v1793 = vadd.f32 0.0, %v1792
          %v1794 = vpop.f32.mrb[0].mxu0
          %1795 = vmatprep.mubr.f32.mxu0 0.0
          %1796 = vmatmul.mubr.f32.gmra.mrb[0].mxu0 %v1466
          %v1797 = vpop.f32.mrb[0].mxu0
          %v1798 = vadd.f32 0.0, %v1797
          %v1799 = vpop.f32.mrb[0].mxu0
          %1800 = vmatprep.mubr.f32.mxu0 0.0
          %1801 = vmatmul.mubr.f32.gmra.mrb[0].mxu0 %v1467
          %v1802 = vpop.f32.mrb[0].mxu0
          %v1803 = vadd.f32 0.0, %v1802
          %v1804 = vpop.f32.mrb[0].mxu0
          %1805 = vmatprep.mubr.f32.mxu0 0.0
          %1806 = vmatmul.mubr.f32.gmra.mrb[0].mxu0 %v1468
          %v1807 = vpop.f32.mrb[0].mxu0
          %v1808 = vadd.f32 0.0, %v1807
          %v1809 = vpop.f32.mrb[0].mxu0
          %1810 = vmatprep.mubr.f32.mxu0 0.0
          %1811 = vmatmul.mubr.f32.gmra.mrb[0].mxu0 %v1469
          %v1812 = vpop.f32.mrb[0].mxu0
          %v1813 = vadd.f32 0.0, %v1812
          %v1814 = vpop.f32.mrb[0].mxu0
          %1815 = vmatprep.mubr.f32.mxu0 0.0
          %1816 = vmatmul.mubr.f32.gmra.mrb[0].mxu0 %v1470
          %v1817 = vpop.f32.mrb[0].mxu0
          %v1818 = vadd.f32 0.0, %v1817
          %v1819 = vpop.f32.mrb[0].mxu0
          %1820 = vmatprep.mubr.f32.mxu0 0.0
          %1821 = vmatmul.mubr.f32.gmra.mrb[0].mxu0 %v1471
          %v1822 = vpop.f32.mrb[0].mxu0
          %v1823 = vadd.f32 0.0, %v1822
          %v1824 = vpop.f32.mrb[0].mxu0
          %1825 = vmatprep.mubr.f32.mxu0 0.0
          %1826 = vmatmul.mubr.f32.gmra.mrb[0].mxu0 %v1472
          %v1827 = vpop.f32.mrb[0].mxu0
          %v1828 = vadd.f32 0.0, %v1827
          %v1829 = vpop.f32.mrb[0].mxu0
          %1830 = vmatprep.mubr.f32.mxu0 0.0
          %1831 = vmatmul.mubr.f32.gmra.mrb[0].mxu0 %v1473
          %v1832 = vpop.f32.mrb[0].mxu0
          %v1833 = vadd.f32 0.0, %v1832
          %v1834 = vpop.f32.mrb[0].mxu0
          %1835 = vmatprep.mubr.f32.mxu0 0.0
          %1836 = vmatmul.mubr.f32.gmra.mrb[0].mxu0 %v1474
          %v1837 = vpop.f32.mrb[0].mxu0
          %v1838 = vadd.f32 0.0, %v1837
          %v1839 = vpop.f32.mrb[0].mxu0
          %1840 = vmatprep.mubr.f32.mxu0 0.0
          %1841 = vmatmul.mubr.f32.gmra.mrb[0].mxu0 %v1475
          %v1842 = vpop.f32.mrb[0].mxu0
          %v1843 = vadd.f32 0.0, %v1842
          %v1844 = vpop.f32.mrb[0].mxu0
          %1845 = vmatprep.mubr.f32.mxu0 0.0
          %1846 = vmatmul.mubr.f32.gmra.mrb[0].mxu0 %v1476
          %v1847 = vpop.f32.mrb[0].mxu0
          %v1848 = vadd.f32 0.0, %v1847
          %v1849 = vpop.f32.mrb[0].mxu0
          %1850 = vmatprep.mubr.f32.mxu0 0.0
          %1851 = vmatmul.mubr.f32.gmra.mrb[0].mxu0 %v1477
          %v1852 = vpop.f32.mrb[0].mxu0
          %v1853 = vadd.f32 0.0, %v1852
          %v1854 = vpop.f32.mrb[0].mxu0
          %1855 = vmatprep.mubr.f32.mxu0 0.0
          %1856 = vmatmul.mubr.f32.gmra.mrb[0].mxu0 %v1478
          %v1857 = vpop.f32.mrb[0].mxu0
          %v1858 = vadd.f32 0.0, %v1857
          %v1859 = vpop.f32.mrb[0].mxu0
          %1860 = vmatprep.mubr.f32.mxu0 0.0
          %1861 = vmatmul.mubr.f32.gmra.mrb[0].mxu0 %v1479
          %v1862 = vpop.f32.mrb[0].mxu0
          %v1863 = vadd.f32 0.0, %v1862
          %v1864 = vpop.f32.mrb[0].mxu0
          %1865 = vmatprep.mubr.f32.mxu0 0.0
          %1866 = vmatmul.mubr.f32.gmra.mrb[0].mxu0 %v1480
          %v1867 = vpop.f32.mrb[0].mxu0
          %v1868 = vadd.f32 0.0, %v1867
          %v1869 = vpop.f32.mrb[0].mxu0
          %1870 = vmatprep.mubr.f32.mxu0 0.0
          %1871 = vmatmul.mubr.f32.gmra.mrb[0].mxu0 %v1481
          %v1872 = vpop.f32.mrb[0].mxu0
          %v1873 = vadd.f32 0.0, %v1872
          %v1874 = vpop.f32.mrb[0].mxu0
          %1875 = vmatprep.mubr.f32.mxu0 0.0
          %1876 = vmatmul.mubr.f32.gmra.mrb[0].mxu0 %v1482
          %v1877 = vpop.f32.mrb[0].mxu0
          %v1878 = vadd.f32 0.0, %v1877
          %v1879 = vpop.f32.mrb[0].mxu0
          %1880 = vmatprep.mubr.f32.mxu0 0.0
          %1881 = vmatmul.mubr.f32.gmra.mrb[0].mxu0 %v1483
          %v1882 = vpop.f32.mrb[0].mxu0
          %v1883 = vadd.f32 0.0, %v1882
          %v1884 = vpop.f32.mrb[0].mxu0
          %1885 = vmatprep.mubr.f32.mxu0 0.0
          %1886 = vmatmul.mubr.f32.gmra.mrb[0].mxu0 %v1484
          %v1887 = vpop.f32.mrb[0].mxu0
          %v1888 = vadd.f32 0.0, %v1887
          %v1889 = vpop.f32.mrb[0].mxu0
          %1890 = vmatprep.mubr.f32.mxu0 0.0
          %1891 = vmatmul.mubr.f32.gmra.mrb[0].mxu0 %v1485
          %v1892 = vpop.f32.mrb[0].mxu0
          %v1893 = vadd.f32 0.0, %v1892
          %v1894 = vpop.f32.mrb[0].mxu0
          %1895 = vmatprep.mubr.f32.mxu0 0.0
          %1896 = vmatmul.mubr.f32.gmra.mrb[0].mxu0 %v1486
          %v1897 = vpop.f32.mrb[0].mxu0
          %v1898 = vadd.f32 0.0, %v1897
          %v1899 = vpop.f32.mrb[0].mxu0
          %1900 = vmatprep.mubr.f32.mxu0 0.0
          %1901 = vmatmul.mubr.f32.gmra.mrb[0].mxu0 %v1487
          %v1902 = vpop.f32.mrb[0].mxu0
          %v1903 = vadd.f32 0.0, %v1902
          %v1904 = vpop.f32.mrb[0].mxu0
          %1905 = vdwg.mxu0
          %v1906 = vld [vmem:[%s616] sm:$0x1]
          %v1907 = vld [vmem:[%s619] sm:$0x1]
          %v1908 = vsel %vm1537, 1, 0
          %v1909 = vsel %vm1538, 1, 0
          %v1910 = vsel %vm1539, 1, 0
          %v1911 = vsel %vm1540, 1, 0
          %v1912 = vsel %vm1541, 1, 0
          %v1913 = vsel %vm1542, 1, 0
          %v1914 = vsel %vm1543, 1, 0
          %v1915 = vsel %vm1544, 1, 0
          %v1916 = vsel %vm1545, 1, 0
          %v1917 = vsel %vm1546, 1, 0
          %v1918 = vsel %vm1547, 1, 0
          %v1919 = vsel %vm1548, 1, 0
          %v1920 = vsel %vm1549, 1, 0
          %v1921 = vsel %vm1550, 1, 0
          %v1922 = vsel %vm1551, 1, 0
          %v1923 = vsel %vm1552, 1, 0
          %v1924 = vsel %vm1553, 1, 0
          %v1925 = vsel %vm1554, 1, 0
          %v1926 = vsel %vm1555, 1, 0
          %v1927 = vsel %vm1556, 1, 0
          %v1928 = vsel %vm1557, 1, 0
          %v1929 = vsel %vm1558, 1, 0
          %v1930 = vsel %vm1559, 1, 0
          %v1931 = vsel %vm1560, 1, 0
          %v1932 = vsel %vm1561, 1, 0
          %v1933 = vsel %vm1562, 1, 0
          %v1934 = vsel %vm1563, 1, 0
          %v1935 = vsel %vm1564, 1, 0
          %v1936 = vsel %vm1565, 1, 0
          %v1937 = vsel %vm1566, 1, 0
          %v1938 = vsel %vm1567, 1, 0
          %v1939 = vsel %vm1568, 1, 0
          %v1940 = vsel %vm1569, 1, 0
          %v1941 = vsel %vm1570, 1, 0
          %v1942 = vsel %vm1571, 1, 0
          %v1943 = vsel %vm1572, 1, 0
          %v1944 = vsel %vm1573, 1, 0
          %v1945 = vsel %vm1574, 1, 0
          %v1946 = vsel %vm1575, 1, 0
          %v1947 = vsel %vm1576, 1, 0
          %v1948 = vsel %vm1577, 1, 0
          %v1949 = vsel %vm1578, 1, 0
          %v1950 = vsel %vm1579, 1, 0
          %v1951 = vsel %vm1580, 1, 0
          %v1952 = vsel %vm1581, 1, 0
          %v1953 = vsel %vm1582, 1, 0
          %v1954 = vsel %vm1583, 1, 0
          %v1955 = vsel %vm1584, 1, 0
          %vm1956 = vcmp.eq.s32.totalorder %v1908, 1
          %vm1957 = vcmp.eq.s32.totalorder %v1909, 1
          %vm1958 = vcmp.eq.s32.totalorder %v1910, 1
          %vm1959 = vcmp.eq.s32.totalorder %v1911, 1
          %vm1960 = vcmp.eq.s32.totalorder %v1912, 1
          %vm1961 = vcmp.eq.s32.totalorder %v1913, 1
          %vm1962 = vcmp.eq.s32.totalorder %v1914, 1
          %vm1963 = vcmp.eq.s32.totalorder %v1915, 1
          %vm1964 = vcmp.eq.s32.totalorder %v1916, 1
          %vm1965 = vcmp.eq.s32.totalorder %v1917, 1
          %vm1966 = vcmp.eq.s32.totalorder %v1918, 1
          %vm1967 = vcmp.eq.s32.totalorder %v1919, 1
          %vm1968 = vcmp.eq.s32.totalorder %v1920, 1
          %vm1969 = vcmp.eq.s32.totalorder %v1921, 1
          %vm1970 = vcmp.eq.s32.totalorder %v1922, 1
          %vm1971 = vcmp.eq.s32.totalorder %v1923, 1
          %vm1972 = vcmp.eq.s32.totalorder %v1924, 1
          %vm1973 = vcmp.eq.s32.totalorder %v1925, 1
          %vm1974 = vcmp.eq.s32.totalorder %v1926, 1
          %vm1975 = vcmp.eq.s32.totalorder %v1927, 1
          %vm1976 = vcmp.eq.s32.totalorder %v1928, 1
          %vm1977 = vcmp.eq.s32.totalorder %v1929, 1
          %vm1978 = vcmp.eq.s32.totalorder %v1930, 1
          %vm1979 = vcmp.eq.s32.totalorder %v1931, 1
          %vm1980 = vcmp.eq.s32.totalorder %v1932, 1
          %vm1981 = vcmp.eq.s32.totalorder %v1933, 1
          %vm1982 = vcmp.eq.s32.totalorder %v1934, 1
          %vm1983 = vcmp.eq.s32.totalorder %v1935, 1
          %vm1984 = vcmp.eq.s32.totalorder %v1936, 1
          %vm1985 = vcmp.eq.s32.totalorder %v1937, 1
          %vm1986 = vcmp.eq.s32.totalorder %v1938, 1
          %vm1987 = vcmp.eq.s32.totalorder %v1939, 1
          %vm1988 = vcmp.eq.s32.totalorder %v1940, 1
          %vm1989 = vcmp.eq.s32.totalorder %v1941, 1
          %vm1990 = vcmp.eq.s32.totalorder %v1942, 1
          %vm1991 = vcmp.eq.s32.totalorder %v1943, 1
          %vm1992 = vcmp.eq.s32.totalorder %v1944, 1
          %vm1993 = vcmp.eq.s32.totalorder %v1945, 1
          %vm1994 = vcmp.eq.s32.totalorder %v1946, 1
          %vm1995 = vcmp.eq.s32.totalorder %v1947, 1
          %vm1996 = vcmp.eq.s32.totalorder %v1948, 1
          %vm1997 = vcmp.eq.s32.totalorder %v1949, 1
          %vm1998 = vcmp.eq.s32.totalorder %v1950, 1
          %vm1999 = vcmp.eq.s32.totalorder %v1951, 1
          %vm2000 = vcmp.eq.s32.totalorder %v1952, 1
          %vm2001 = vcmp.eq.s32.totalorder %v1953, 1
          %vm2002 = vcmp.eq.s32.totalorder %v1954, 1
          %vm2003 = vcmp.eq.s32.totalorder %v1955, 1
          %v2004 = vsel %vm1956, %v1668, 0.0
          %v2005 = vsel %vm1957, %v1673, 0.0
          %v2006 = vsel %vm1958, %v1678, 0.0
          %v2007 = vsel %vm1959, %v1683, 0.0
          %v2008 = vsel %vm1960, %v1688, 0.0
          %v2009 = vsel %vm1961, %v1693, 0.0
          %v2010 = vsel %vm1962, %v1698, 0.0
          %v2011 = vsel %vm1963, %v1703, 0.0
          %v2012 = vsel %vm1964, %v1708, 0.0
          %v2013 = vsel %vm1965, %v1713, 0.0
          %v2014 = vsel %vm1966, %v1718, 0.0
          %v2015 = vsel %vm1967, %v1723, 0.0
          %v2016 = vsel %vm1968, %v1728, 0.0
          %v2017 = vsel %vm1969, %v1733, 0.0
          %v2018 = vsel %vm1970, %v1738, 0.0
          %v2019 = vsel %vm1971, %v1743, 0.0
          %v2020 = vsel %vm1972, %v1748, 0.0
          %v2021 = vsel %vm1973, %v1753, 0.0
          %v2022 = vsel %vm1974, %v1758, 0.0
          %v2023 = vsel %vm1975, %v1763, 0.0
          %v2024 = vsel %vm1976, %v1768, 0.0
          %v2025 = vsel %vm1977, %v1773, 0.0
          %v2026 = vsel %vm1978, %v1778, 0.0
          %v2027 = vsel %vm1979, %v1783, 0.0
          %v2028 = vsel %vm1980, %v1788, 0.0
          %v2029 = vsel %vm1981, %v1793, 0.0
          %v2030 = vsel %vm1982, %v1798, 0.0
          %v2031 = vsel %vm1983, %v1803, 0.0
          %v2032 = vsel %vm1984, %v1808, 0.0
          %v2033 = vsel %vm1985, %v1813, 0.0
          %v2034 = vsel %vm1986, %v1818, 0.0
          %v2035 = vsel %vm1987, %v1823, 0.0
          %v2036 = vsel %vm1988, %v1828, 0.0
          %v2037 = vsel %vm1989, %v1833, 0.0
          %v2038 = vsel %vm1990, %v1838, 0.0
          %v2039 = vsel %vm1991, %v1843, 0.0
          %v2040 = vsel %vm1992, %v1848, 0.0
          %v2041 = vsel %vm1993, %v1853, 0.0
          %v2042 = vsel %vm1994, %v1858, 0.0
          %v2043 = vsel %vm1995, %v1863, 0.0
          %v2044 = vsel %vm1996, %v1868, 0.0
          %v2045 = vsel %vm1997, %v1873, 0.0
          %v2046 = vsel %vm1998, %v1878, 0.0
          %v2047 = vsel %vm1999, %v1883, 0.0
          %v2048 = vsel %vm2000, %v1888, 0.0
          %v2049 = vsel %vm2001, %v1893, 0.0
          %v2050 = vsel %vm2002, %v1898, 0.0
          %v2051 = vsel %vm2003, %v1903, 0.0
          %v2052 = vadd.f32 %v2004, %v2005
          %v2053 = vadd.f32 %v2052, %v2006
          %v2054 = vadd.f32 %v2053, %v2007
          %v2055 = vadd.f32 %v2054, %v2008
          %v2056 = vadd.f32 %v2055, %v2009
          %v2057 = vadd.f32 %v2056, %v2010
          %v2058 = vadd.f32 %v2057, %v2011
          %v2059 = vadd.f32 %v2058, %v2012
          %v2060 = vadd.f32 %v2059, %v2013
          %v2061 = vadd.f32 %v2060, %v2014
          %v2062 = vadd.f32 %v2061, %v2015
          %v2063 = vadd.f32 %v2062, %v2016
          %v2064 = vadd.f32 %v2063, %v2017
          %v2065 = vadd.f32 %v2064, %v2018
          %v2066 = vadd.f32 %v2065, %v2019
          %v2067 = vadd.f32 %v2066, %v2020
          %v2068 = vadd.f32 %v2067, %v2021
          %v2069 = vadd.f32 %v2068, %v2022
          %v2070 = vadd.f32 %v2069, %v2023
          %v2071 = vadd.f32 %v2070, %v2024
          %v2072 = vadd.f32 %v2071, %v2025
          %v2073 = vadd.f32 %v2072, %v2026
          %v2074 = vadd.f32 %v2073, %v2027
          %v2075 = vadd.f32 %v2074, %v2028
          %v2076 = vadd.f32 %v2075, %v2029
          %v2077 = vadd.f32 %v2076, %v2030
          %v2078 = vadd.f32 %v2077, %v2031
          %v2079 = vadd.f32 %v2078, %v2032
          %v2080 = vadd.f32 %v2079, %v2033
          %v2081 = vadd.f32 %v2080, %v2034
          %v2082 = vadd.f32 %v2081, %v2035
          %v2083 = vadd.f32 %v2082, %v2036
          %v2084 = vadd.f32 %v2083, %v2037
          %v2085 = vadd.f32 %v2084, %v2038
          %v2086 = vadd.f32 %v2085, %v2039
          %v2087 = vadd.f32 %v2086, %v2040
          %v2088 = vadd.f32 %v2087, %v2041
          %v2089 = vadd.f32 %v2088, %v2042
          %v2090 = vadd.f32 %v2089, %v2043
          %v2091 = vadd.f32 %v2090, %v2044
          %v2092 = vadd.f32 %v2091, %v2045
          %v2093 = vadd.f32 %v2092, %v2046
          %v2094 = vadd.f32 %v2093, %v2047
          %v2095 = vadd.f32 %v2094, %v2048
          %v2096 = vadd.f32 %v2095, %v2049
          %v2097 = vadd.f32 %v2096, %v2050
          %v2098 = vadd.f32 %v2097, %v2051
          %v2099 = vrot.slane %v2098, 4
          %v2100 = vadd.f32 %v2098, %v2099
          %v2101 = vrot.slane %v2100, 2
          %v2102 = vadd.f32 %v2100, %v2101
          %v2103 = vrot.slane %v2102, 1
          %v2104 = vadd.f32 %v2102, %v2103
          %v2105 = vmul.f32 %v2104, 0.0033333334
          %v2106 = vmul.f32 %v2004, %v2004
          %v2107 = vmul.f32 %v2005, %v2005
          %v2108 = vmul.f32 %v2006, %v2006
          %v2109 = vmul.f32 %v2007, %v2007
          %v2110 = vmul.f32 %v2008, %v2008
          %v2111 = vmul.f32 %v2009, %v2009
          %v2112 = vmul.f32 %v2010, %v2010
          %v2113 = vmul.f32 %v2011, %v2011
          %v2114 = vmul.f32 %v2012, %v2012
          %v2115 = vmul.f32 %v2013, %v2013
          %v2116 = vmul.f32 %v2014, %v2014
          %v2117 = vmul.f32 %v2015, %v2015
          %v2118 = vmul.f32 %v2016, %v2016
          %v2119 = vmul.f32 %v2017, %v2017
          %v2120 = vmul.f32 %v2018, %v2018
          %v2121 = vmul.f32 %v2019, %v2019
          %v2122 = vmul.f32 %v2020, %v2020
          %v2123 = vmul.f32 %v2021, %v2021
          %v2124 = vmul.f32 %v2022, %v2022
          %v2125 = vmul.f32 %v2023, %v2023
          %v2126 = vmul.f32 %v2024, %v2024
          %v2127 = vmul.f32 %v2025, %v2025
          %v2128 = vmul.f32 %v2026, %v2026
          %v2129 = vmul.f32 %v2027, %v2027
          %v2130 = vmul.f32 %v2028, %v2028
          %v2131 = vmul.f32 %v2029, %v2029
          %v2132 = vmul.f32 %v2030, %v2030
          %v2133 = vmul.f32 %v2031, %v2031
          %v2134 = vmul.f32 %v2032, %v2032
          %v2135 = vmul.f32 %v2033, %v2033
          %v2136 = vmul.f32 %v2034, %v2034
          %v2137 = vmul.f32 %v2035, %v2035
          %v2138 = vmul.f32 %v2036, %v2036
          %v2139 = vmul.f32 %v2037, %v2037
          %v2140 = vmul.f32 %v2038, %v2038
          %v2141 = vmul.f32 %v2039, %v2039
          %v2142 = vmul.f32 %v2040, %v2040
          %v2143 = vmul.f32 %v2041, %v2041
          %v2144 = vmul.f32 %v2042, %v2042
          %v2145 = vmul.f32 %v2043, %v2043
          %v2146 = vmul.f32 %v2044, %v2044
          %v2147 = vmul.f32 %v2045, %v2045
          %v2148 = vmul.f32 %v2046, %v2046
          %v2149 = vmul.f32 %v2047, %v2047
          %v2150 = vmul.f32 %v2048, %v2048
          %v2151 = vmul.f32 %v2049, %v2049
          %v2152 = vmul.f32 %v2050, %v2050
          %v2153 = vmul.f32 %v2051, %v2051
          %v2154 = vadd.f32 %v2106, %v2107
          %v2155 = vadd.f32 %v2154, %v2108
          %v2156 = vadd.f32 %v2155, %v2109
          %v2157 = vadd.f32 %v2156, %v2110
          %v2158 = vadd.f32 %v2157, %v2111
          %v2159 = vadd.f32 %v2158, %v2112
          %v2160 = vadd.f32 %v2159, %v2113
          %v2161 = vadd.f32 %v2160, %v2114
          %v2162 = vadd.f32 %v2161, %v2115
          %v2163 = vadd.f32 %v2162, %v2116
          %v2164 = vadd.f32 %v2163, %v2117
          %v2165 = vadd.f32 %v2164, %v2118
          %v2166 = vadd.f32 %v2165, %v2119
          %v2167 = vadd.f32 %v2166, %v2120
          %v2168 = vadd.f32 %v2167, %v2121
          %v2169 = vadd.f32 %v2168, %v2122
          %v2170 = vadd.f32 %v2169, %v2123
          %v2171 = vadd.f32 %v2170, %v2124
          %v2172 = vadd.f32 %v2171, %v2125
          %v2173 = vadd.f32 %v2172, %v2126
          %v2174 = vadd.f32 %v2173, %v2127
          %v2175 = vadd.f32 %v2174, %v2128
          %v2176 = vadd.f32 %v2175, %v2129
          %v2177 = vadd.f32 %v2176, %v2130
          %v2178 = vadd.f32 %v2177, %v2131
          %v2179 = vadd.f32 %v2178, %v2132
          %v2180 = vadd.f32 %v2179, %v2133
          %v2181 = vadd.f32 %v2180, %v2134
          %v2182 = vadd.f32 %v2181, %v2135
          %v2183 = vadd.f32 %v2182, %v2136
          %v2184 = vadd.f32 %v2183, %v2137
          %v2185 = vadd.f32 %v2184, %v2138
          %v2186 = vadd.f32 %v2185, %v2139
          %v2187 = vadd.f32 %v2186, %v2140
          %v2188 = vadd.f32 %v2187, %v2141
          %v2189 = vadd.f32 %v2188, %v2142
          %v2190 = vadd.f32 %v2189, %v2143
          %v2191 = vadd.f32 %v2190, %v2144
          %v2192 = vadd.f32 %v2191, %v2145
          %v2193 = vadd.f32 %v2192, %v2146
          %v2194 = vadd.f32 %v2193, %v2147
          %v2195 = vadd.f32 %v2194, %v2148
          %v2196 = vadd.f32 %v2195, %v2149
          %v2197 = vadd.f32 %v2196, %v2150
          %v2198 = vadd.f32 %v2197, %v2151
          %v2199 = vadd.f32 %v2198, %v2152
          %v2200 = vadd.f32 %v2199, %v2153
          %v2201 = vrot.slane %v2200, 4
          %v2202 = vadd.f32 %v2200, %v2201
          %v2203 = vrot.slane %v2202, 2
          %v2204 = vadd.f32 %v2202, %v2203
          %v2205 = vrot.slane %v2204, 1
          %v2206 = vadd.f32 %v2204, %v2205
          %v2207 = vmul.f32 %v2206, 0.0033333334
          %v2208 = vmul.f32 %v2105, %v2105
          %v2209 = vsub.f32 %v2207, %v2208
          %v2210 = vmax.f32 %v2209, 0.0
          %v2211 = vsub.f32 %v1668, %v2105
          %v2212 = vsub.f32 %v1673, %v2105
          %v2213 = vsub.f32 %v1678, %v2105
          %v2214 = vsub.f32 %v1683, %v2105
          %v2215 = vsub.f32 %v1688, %v2105
          %v2216 = vsub.f32 %v1693, %v2105
          %v2217 = vsub.f32 %v1698, %v2105
          %v2218 = vsub.f32 %v1703, %v2105
          %v2219 = vsub.f32 %v1708, %v2105
          %v2220 = vsub.f32 %v1713, %v2105
          %v2221 = vsub.f32 %v1718, %v2105
          %v2222 = vsub.f32 %v1723, %v2105
          %v2223 = vsub.f32 %v1728, %v2105
          %v2224 = vsub.f32 %v1733, %v2105
          %v2225 = vsub.f32 %v1738, %v2105
          %v2226 = vsub.f32 %v1743, %v2105
          %v2227 = vsub.f32 %v1748, %v2105
          %v2228 = vsub.f32 %v1753, %v2105
          %v2229 = vsub.f32 %v1758, %v2105
          %v2230 = vsub.f32 %v1763, %v2105
          %v2231 = vsub.f32 %v1768, %v2105
          %v2232 = vsub.f32 %v1773, %v2105
          %v2233 = vsub.f32 %v1778, %v2105
          %v2234 = vsub.f32 %v1783, %v2105
          %v2235 = vsub.f32 %v1788, %v2105
          %v2236 = vsub.f32 %v1793, %v2105
          %v2237 = vsub.f32 %v1798, %v2105
          %v2238 = vsub.f32 %v1803, %v2105
          %v2239 = vsub.f32 %v1808, %v2105
          %v2240 = vsub.f32 %v1813, %v2105
          %v2241 = vsub.f32 %v1818, %v2105
          %v2242 = vsub.f32 %v1823, %v2105
          %v2243 = vsub.f32 %v1828, %v2105
          %v2244 = vsub.f32 %v1833, %v2105
          %v2245 = vsub.f32 %v1838, %v2105
          %v2246 = vsub.f32 %v1843, %v2105
          %v2247 = vsub.f32 %v1848, %v2105
          %v2248 = vsub.f32 %v1853, %v2105
          %v2249 = vsub.f32 %v1858, %v2105
          %v2250 = vsub.f32 %v1863, %v2105
          %v2251 = vsub.f32 %v1868, %v2105
          %v2252 = vsub.f32 %v1873, %v2105
          %v2253 = vsub.f32 %v1878, %v2105
          %v2254 = vsub.f32 %v1883, %v2105
          %v2255 = vsub.f32 %v1888, %v2105
          %v2256 = vsub.f32 %v1893, %v2105
          %v2257 = vsub.f32 %v1898, %v2105
          %v2258 = vsub.f32 %v1903, %v2105
          %v2259 = vadd.f32 %v2210, 1e-05
          %v2260 = vrsqrt.pop %v2259
          %v2261 = vmul.f32 %v2211, %v2260
          %v2262 = vmul.f32 %v2212, %v2260
          %v2263 = vmul.f32 %v2213, %v2260
          %v2264 = vmul.f32 %v2214, %v2260
          %v2265 = vmul.f32 %v2215, %v2260
          %v2266 = vmul.f32 %v2216, %v2260
          %v2267 = vmul.f32 %v2217, %v2260
          %v2268 = vmul.f32 %v2218, %v2260
          %v2269 = vmul.f32 %v2219, %v2260
          %v2270 = vmul.f32 %v2220, %v2260
          %v2271 = vmul.f32 %v2221, %v2260
          %v2272 = vmul.f32 %v2222, %v2260
          %v2273 = vmul.f32 %v2223, %v2260
          %v2274 = vmul.f32 %v2224, %v2260
          %v2275 = vmul.f32 %v2225, %v2260
          %v2276 = vmul.f32 %v2226, %v2260
          %v2277 = vmul.f32 %v2227, %v2260
          %v2278 = vmul.f32 %v2228, %v2260
          %v2279 = vmul.f32 %v2229, %v2260
          %v2280 = vmul.f32 %v2230, %v2260
          %v2281 = vmul.f32 %v2231, %v2260
          %v2282 = vmul.f32 %v2232, %v2260
          %v2283 = vmul.f32 %v2233, %v2260
          %v2284 = vmul.f32 %v2234, %v2260
          %v2285 = vmul.f32 %v2235, %v2260
          %v2286 = vmul.f32 %v2236, %v2260
          %v2287 = vmul.f32 %v2237, %v2260
          %v2288 = vmul.f32 %v2238, %v2260
          %v2289 = vmul.f32 %v2239, %v2260
          %v2290 = vmul.f32 %v2240, %v2260
          %v2291 = vmul.f32 %v2241, %v2260
          %v2292 = vmul.f32 %v2242, %v2260
          %v2293 = vmul.f32 %v2243, %v2260
          %v2294 = vmul.f32 %v2244, %v2260
          %v2295 = vmul.f32 %v2245, %v2260
          %v2296 = vmul.f32 %v2246, %v2260
          %v2297 = vmul.f32 %v2247, %v2260
          %v2298 = vmul.f32 %v2248, %v2260
          %v2299 = vmul.f32 %v2249, %v2260
          %v2300 = vmul.f32 %v2250, %v2260
          %v2301 = vmul.f32 %v2251, %v2260
          %v2302 = vmul.f32 %v2252, %v2260
          %v2303 = vmul.f32 %v2253, %v2260
          %v2304 = vmul.f32 %v2254, %v2260
          %v2305 = vmul.f32 %v2255, %v2260
          %v2306 = vmul.f32 %v2256, %v2260
          %v2307 = vmul.f32 %v2257, %v2260
          %v2308 = vmul.f32 %v2258, %v2260
          %v2310 = vlaneseq
          %v2311 = vshrl.u32 %v2310, 7
          %v2312 = vsub.s32 0, %v2311
          %v2313 = vrot.slane %v1906, %v2312
          %v2315 = vmul.f32 %v2261, %v2313
          %v2316 = vmul.f32 %v2262, %v2313
          %v2317 = vmul.f32 %v2263, %v2313
          %v2318 = vmul.f32 %v2264, %v2313
          %v2319 = vmul.f32 %v2265, %v2313
          %v2320 = vmul.f32 %v2266, %v2313
          %v2321 = vmul.f32 %v2267, %v2313
          %v2322 = vmul.f32 %v2268, %v2313
          %v2323 = vmul.f32 %v2269, %v2313
          %v2324 = vmul.f32 %v2270, %v2313
          %v2325 = vmul.f32 %v2271, %v2313
          %v2326 = vmul.f32 %v2272, %v2313
          %v2327 = vmul.f32 %v2273, %v2313
          %v2328 = vmul.f32 %v2274, %v2313
          %v2329 = vmul.f32 %v2275, %v2313
          %v2330 = vmul.f32 %v2276, %v2313
          %v2331 = vmul.f32 %v2277, %v2313
          %v2332 = vmul.f32 %v2278, %v2313
          %v2333 = vmul.f32 %v2279, %v2313
          %v2334 = vmul.f32 %v2280, %v2313
          %v2335 = vmul.f32 %v2281, %v2313
          %v2336 = vmul.f32 %v2282, %v2313
          %v2337 = vmul.f32 %v2283, %v2313
          %v2338 = vmul.f32 %v2284, %v2313
          %v2339 = vmul.f32 %v2285, %v2313
          %v2340 = vmul.f32 %v2286, %v2313
          %v2341 = vmul.f32 %v2287, %v2313
          %v2342 = vmul.f32 %v2288, %v2313
          %v2343 = vmul.f32 %v2289, %v2313
          %v2344 = vmul.f32 %v2290, %v2313
          %v2345 = vmul.f32 %v2291, %v2313
          %v2346 = vmul.f32 %v2292, %v2313
          %v2347 = vmul.f32 %v2293, %v2313
          %v2348 = vmul.f32 %v2294, %v2313
          %v2349 = vmul.f32 %v2295, %v2313
          %v2350 = vmul.f32 %v2296, %v2313
          %v2351 = vmul.f32 %v2297, %v2313
          %v2352 = vmul.f32 %v2298, %v2313
          %v2353 = vmul.f32 %v2299, %v2313
          %v2354 = vmul.f32 %v2300, %v2313
          %v2355 = vmul.f32 %v2301, %v2313
          %v2356 = vmul.f32 %v2302, %v2313
          %v2357 = vmul.f32 %v2303, %v2313
          %v2358 = vmul.f32 %v2304, %v2313
          %v2359 = vmul.f32 %v2305, %v2313
          %v2360 = vmul.f32 %v2306, %v2313
          %v2361 = vmul.f32 %v2307, %v2313
          %v2362 = vmul.f32 %v2308, %v2313
          %v2364 = vlaneseq
          %v2365 = vshrl.u32 %v2364, 7
          %v2366 = vsub.s32 0, %v2365
          %v2367 = vrot.slane %v1907, %v2366
          %v2369 = vadd.f32 %v2315, %v2367
          %v2370 = vadd.f32 %v2316, %v2367
          %v2371 = vadd.f32 %v2317, %v2367
          %v2372 = vadd.f32 %v2318, %v2367
          %v2373 = vadd.f32 %v2319, %v2367
          %v2374 = vadd.f32 %v2320, %v2367
          %v2375 = vadd.f32 %v2321, %v2367
          %v2376 = vadd.f32 %v2322, %v2367
          %v2377 = vadd.f32 %v2323, %v2367
          %v2378 = vadd.f32 %v2324, %v2367
          %v2379 = vadd.f32 %v2325, %v2367
          %v2380 = vadd.f32 %v2326, %v2367
          %v2381 = vadd.f32 %v2327, %v2367
          %v2382 = vadd.f32 %v2328, %v2367
          %v2383 = vadd.f32 %v2329, %v2367
          %v2384 = vadd.f32 %v2330, %v2367
          %v2385 = vadd.f32 %v2331, %v2367
          %v2386 = vadd.f32 %v2332, %v2367
          %v2387 = vadd.f32 %v2333, %v2367
          %v2388 = vadd.f32 %v2334, %v2367
          %v2389 = vadd.f32 %v2335, %v2367
          %v2390 = vadd.f32 %v2336, %v2367
          %v2391 = vadd.f32 %v2337, %v2367
          %v2392 = vadd.f32 %v2338, %v2367
          %v2393 = vadd.f32 %v2339, %v2367
          %v2394 = vadd.f32 %v2340, %v2367
          %v2395 = vadd.f32 %v2341, %v2367
          %v2396 = vadd.f32 %v2342, %v2367
          %v2397 = vadd.f32 %v2343, %v2367
          %v2398 = vadd.f32 %v2344, %v2367
          %v2399 = vadd.f32 %v2345, %v2367
          %v2400 = vadd.f32 %v2346, %v2367
          %v2401 = vadd.f32 %v2347, %v2367
          %v2402 = vadd.f32 %v2348, %v2367
          %v2403 = vadd.f32 %v2349, %v2367
          %v2404 = vadd.f32 %v2350, %v2367
          %v2405 = vadd.f32 %v2351, %v2367
          %v2406 = vadd.f32 %v2352, %v2367
          %v2407 = vadd.f32 %v2353, %v2367
          %v2408 = vadd.f32 %v2354, %v2367
          %v2409 = vadd.f32 %v2355, %v2367
          %v2410 = vadd.f32 %v2356, %v2367
          %v2411 = vadd.f32 %v2357, %v2367
          %v2412 = vadd.f32 %v2358, %v2367
          %v2413 = vadd.f32 %v2359, %v2367
          %v2414 = vadd.f32 %v2360, %v2367
          %v2415 = vadd.f32 %v2361, %v2367
          %v2416 = vadd.f32 %v2362, %v2367
          %v2417 = vmax.f32 %v2369, 0.0
          %v2418 = vmax.f32 %v2370, 0.0
          %v2419 = vmax.f32 %v2371, 0.0
          %v2420 = vmax.f32 %v2372, 0.0
          %v2421 = vmax.f32 %v2373, 0.0
          %v2422 = vmax.f32 %v2374, 0.0
          %v2423 = vmax.f32 %v2375, 0.0
          %v2424 = vmax.f32 %v2376, 0.0
          %v2425 = vmax.f32 %v2377, 0.0
          %v2426 = vmax.f32 %v2378, 0.0
          %v2427 = vmax.f32 %v2379, 0.0
          %v2428 = vmax.f32 %v2380, 0.0
          %v2429 = vmax.f32 %v2381, 0.0
          %v2430 = vmax.f32 %v2382, 0.0
          %v2431 = vmax.f32 %v2383, 0.0
          %v2432 = vmax.f32 %v2384, 0.0
          %v2433 = vmax.f32 %v2385, 0.0
          %v2434 = vmax.f32 %v2386, 0.0
          %v2435 = vmax.f32 %v2387, 0.0
          %v2436 = vmax.f32 %v2388, 0.0
          %v2437 = vmax.f32 %v2389, 0.0
          %v2438 = vmax.f32 %v2390, 0.0
          %v2439 = vmax.f32 %v2391, 0.0
          %v2440 = vmax.f32 %v2392, 0.0
          %v2441 = vmax.f32 %v2393, 0.0
          %v2442 = vmax.f32 %v2394, 0.0
          %v2443 = vmax.f32 %v2395, 0.0
          %v2444 = vmax.f32 %v2396, 0.0
          %v2445 = vmax.f32 %v2397, 0.0
          %v2446 = vmax.f32 %v2398, 0.0
          %v2447 = vmax.f32 %v2399, 0.0
          %v2448 = vmax.f32 %v2400, 0.0
          %v2449 = vmax.f32 %v2401, 0.0
          %v2450 = vmax.f32 %v2402, 0.0
          %v2451 = vmax.f32 %v2403, 0.0
          %v2452 = vmax.f32 %v2404, 0.0
          %v2453 = vmax.f32 %v2405, 0.0
          %v2454 = vmax.f32 %v2406, 0.0
          %v2455 = vmax.f32 %v2407, 0.0
          %v2456 = vmax.f32 %v2408, 0.0
          %v2457 = vmax.f32 %v2409, 0.0
          %v2458 = vmax.f32 %v2410, 0.0
          %v2459 = vmax.f32 %v2411, 0.0
          %v2460 = vmax.f32 %v2412, 0.0
          %v2461 = vmax.f32 %v2413, 0.0
          %v2462 = vmax.f32 %v2414, 0.0
          %v2463 = vmax.f32 %v2415, 0.0
          %v2464 = vmax.f32 %v2416, 0.0
          %v2465 = vld [vmem:[%s535] sm:$0xff]
          %v2466 = vld [vmem:[%s535 + $0x8] sm:$0xff]
          %v2467 = vld [vmem:[%s535 + $0x10] sm:$0xff]
          %v2468 = vld [vmem:[%s535 + $0x18] sm:$0xff]
          %v2469 = vld [vmem:[%s535 + $0x20] sm:$0xff]
          %v2470 = vld [vmem:[%s535 + $0x28] sm:$0xff]
          %v2471 = vld [vmem:[%s535 + $0x30] sm:$0xff]
          %v2472 = vld [vmem:[%s535 + $0x38] sm:$0xff]
          %v2473 = vld [vmem:[%s535 + $0x40] sm:$0xff]
          %v2474 = vld [vmem:[%s535 + $0x48] sm:$0xff]
          %v2475 = vld [vmem:[%s535 + $0x50] sm:$0xff]
          %v2476 = vld [vmem:[%s535 + $0x58] sm:$0xff]
          %v2477 = vld [vmem:[%s535 + $0x60] sm:$0xff]
          %v2478 = vld [vmem:[%s535 + $0x68] sm:$0xff]
          %v2479 = vld [vmem:[%s535 + $0x70] sm:$0xff]
          %v2480 = vld [vmem:[%s535 + $0x78] sm:$0xff]
          %2481 = vmatprep.subr.mxu0 0.0
          %2482 = vmatpush1.msra.mxu0 %v2465
          %2483 = vmatprep.subr.mxu0 0.0
          %2484 = vmatpush1.msra.mxu0 %v2466
          %2485 = vmatprep.subr.mxu0 0.0
          %2486 = vmatpush1.msra.mxu0 %v2467
          %2487 = vmatprep.subr.mxu0 0.0
          %2488 = vmatpush1.msra.mxu0 %v2468
          %2489 = vmatprep.subr.mxu0 0.0
          %2490 = vmatpush1.msra.mxu0 %v2469
          %2491 = vmatprep.subr.mxu0 0.0
          %2492 = vmatpush1.msra.mxu0 %v2470
          %2493 = vmatprep.subr.mxu0 0.0
          %2494 = vmatpush1.msra.mxu0 %v2471
          %2495 = vmatprep.subr.mxu0 0.0
          %2496 = vmatpush1.msra.mxu0 %v2472
          %2497 = vmatprep.subr.mxu0 0.0
          %2498 = vmatpush1.msra.mxu0 %v2473
          %2499 = vmatprep.subr.mxu0 0.0
          %2500 = vmatpush1.msra.mxu0 %v2474
          %2501 = vmatprep.subr.mxu0 0.0
          %2502 = vmatpush1.msra.mxu0 %v2475
          %2503 = vmatprep.subr.mxu0 0.0
          %2504 = vmatpush1.msra.mxu0 %v2476
          %2505 = vmatprep.subr.mxu0 0.0
          %2506 = vmatpush1.msra.mxu0 %v2477
          %2507 = vmatprep.subr.mxu0 0.0
          %2508 = vmatpush1.msra.mxu0 %v2478
          %2509 = vmatprep.subr.mxu0 0.0
          %2510 = vmatpush1.msra.mxu0 %v2479
          %2511 = vmatprep.subr.mxu0 0.0
          %2512 = vmatpush1.msra.mxu0 %v2480
          %2513 = vmatprep.subr.mxu0 0.0
          %2514 = vmatpush1.msra.mxu0 0.0
          %2515 = vmatprep.subr.mxu0 0.0
          %2516 = vmatpush1.msra.mxu0 0.0
          %2517 = vmatprep.subr.mxu0 0.0
          %2518 = vmatpush1.msra.mxu0 0.0
          %2519 = vmatprep.subr.mxu0 0.0
          %2520 = vmatpush1.msra.mxu0 0.0
          %2521 = vmatprep.subr.mxu0 0.0
          %2522 = vmatpush1.msra.mxu0 0.0
          %2523 = vmatprep.subr.mxu0 0.0
          %2524 = vmatpush1.msra.mxu0 0.0
          %2525 = vmatprep.subr.mxu0 0.0
          %2526 = vmatpush1.msra.mxu0 0.0
          %2527 = vmatprep.subr.mxu0 0.0
          %2528 = vmatpush1.msra.mxu0 0.0
          %2529 = vmatprep.subr.mxu0 0.0
          %2530 = vmatpush1.msra.mxu0 0.0
          %2531 = vmatprep.subr.mxu0 0.0
          %2532 = vmatpush1.msra.mxu0 0.0
          %2533 = vmatprep.subr.mxu0 0.0
          %2534 = vmatpush1.msra.mxu0 0.0
          %2535 = vmatprep.subr.mxu0 0.0
          %2536 = vmatpush1.msra.mxu0 0.0
          %2537 = vmatprep.subr.mxu0 0.0
          %2538 = vmatpush1.msra.mxu0 0.0
          %2539 = vmatprep.subr.mxu0 0.0
          %2540 = vmatpush1.msra.mxu0 0.0
          %2541 = vmatprep.subr.mxu0 0.0
          %2542 = vmatpush1.msra.mxu0 0.0
          %2543 = vmatprep.subr.mxu0 0.0
          %2544 = vmatpush1.msra.mxu0 0.0
          %2545 = vmatprep.mubr.f32.mxu0 0.0
          %2546 = vmatmul.mubr.f32.gmra.mrb[0].mxu0 %v2417
          %v2547 = vpop.f32.mrb[0].mxu0
          %v2548 = vadd.f32 0.0, %v2547
          %v2549 = vpop.f32.mrb[0].mxu0
          %2550 = vmatprep.mubr.f32.mxu0 0.0
          %2551 = vmatmul.mubr.f32.gmra.mrb[0].mxu0 %v2418
          %v2552 = vpop.f32.mrb[0].mxu0
          %v2553 = vadd.f32 0.0, %v2552
          %v2554 = vpop.f32.mrb[0].mxu0
          %2555 = vmatprep.mubr.f32.mxu0 0.0
          %2556 = vmatmul.mubr.f32.gmra.mrb[0].mxu0 %v2419
          %v2557 = vpop.f32.mrb[0].mxu0
          %v2558 = vadd.f32 0.0, %v2557
          %v2559 = vpop.f32.mrb[0].mxu0
          %2560 = vmatprep.mubr.f32.mxu0 0.0
          %2561 = vmatmul.mubr.f32.gmra.mrb[0].mxu0 %v2420
          %v2562 = vpop.f32.mrb[0].mxu0
          %v2563 = vadd.f32 0.0, %v2562
          %v2564 = vpop.f32.mrb[0].mxu0
          %2565 = vmatprep.mubr.f32.mxu0 0.0
          %2566 = vmatmul.mubr.f32.gmra.mrb[0].mxu0 %v2421
          %v2567 = vpop.f32.mrb[0].mxu0
          %v2568 = vadd.f32 0.0, %v2567
          %v2569 = vpop.f32.mrb[0].mxu0
          %2570 = vmatprep.mubr.f32.mxu0 0.0
          %2571 = vmatmul.mubr.f32.gmra.mrb[0].mxu0 %v2422
          %v2572 = vpop.f32.mrb[0].mxu0
          %v2573 = vadd.f32 0.0, %v2572
          %v2574 = vpop.f32.mrb[0].mxu0
          %2575 = vmatprep.mubr.f32.mxu0 0.0
          %2576 = vmatmul.mubr.f32.gmra.mrb[0].mxu0 %v2423
          %v2577 = vpop.f32.mrb[0].mxu0
          %v2578 = vadd.f32 0.0, %v2577
          %v2579 = vpop.f32.mrb[0].mxu0
          %2580 = vmatprep.mubr.f32.mxu0 0.0
          %2581 = vmatmul.mubr.f32.gmra.mrb[0].mxu0 %v2424
          %v2582 = vpop.f32.mrb[0].mxu0
          %v2583 = vadd.f32 0.0, %v2582
          %v2584 = vpop.f32.mrb[0].mxu0
          %2585 = vmatprep.mubr.f32.mxu0 0.0
          %2586 = vmatmul.mubr.f32.gmra.mrb[0].mxu0 %v2425
          %v2587 = vpop.f32.mrb[0].mxu0
          %v2588 = vadd.f32 0.0, %v2587
          %v2589 = vpop.f32.mrb[0].mxu0
          %2590 = vmatprep.mubr.f32.mxu0 0.0
          %2591 = vmatmul.mubr.f32.gmra.mrb[0].mxu0 %v2426
          %v2592 = vpop.f32.mrb[0].mxu0
          %v2593 = vadd.f32 0.0, %v2592
          %v2594 = vpop.f32.mrb[0].mxu0
          %2595 = vmatprep.mubr.f32.mxu0 0.0
          %2596 = vmatmul.mubr.f32.gmra.mrb[0].mxu0 %v2427
          %v2597 = vpop.f32.mrb[0].mxu0
          %v2598 = vadd.f32 0.0, %v2597
          %v2599 = vpop.f32.mrb[0].mxu0
          %2600 = vmatprep.mubr.f32.mxu0 0.0
          %2601 = vmatmul.mubr.f32.gmra.mrb[0].mxu0 %v2428
          %v2602 = vpop.f32.mrb[0].mxu0
          %v2603 = vadd.f32 0.0, %v2602
          %v2604 = vpop.f32.mrb[0].mxu0
          %2605 = vmatprep.mubr.f32.mxu0 0.0
          %2606 = vmatmul.mubr.f32.gmra.mrb[0].mxu0 %v2429
          %v2607 = vpop.f32.mrb[0].mxu0
          %v2608 = vadd.f32 0.0, %v2607
          %v2609 = vpop.f32.mrb[0].mxu0
          %2610 = vmatprep.mubr.f32.mxu0 0.0
          %2611 = vmatmul.mubr.f32.gmra.mrb[0].mxu0 %v2430
          %v2612 = vpop.f32.mrb[0].mxu0
          %v2613 = vadd.f32 0.0, %v2612
          %v2614 = vpop.f32.mrb[0].mxu0
          %2615 = vmatprep.mubr.f32.mxu0 0.0
          %2616 = vmatmul.mubr.f32.gmra.mrb[0].mxu0 %v2431
          %v2617 = vpop.f32.mrb[0].mxu0
          %v2618 = vadd.f32 0.0, %v2617
          %v2619 = vpop.f32.mrb[0].mxu0
          %2620 = vmatprep.mubr.f32.mxu0 0.0
          %2621 = vmatmul.mubr.f32.gmra.mrb[0].mxu0 %v2432
          %v2622 = vpop.f32.mrb[0].mxu0
          %v2623 = vadd.f32 0.0, %v2622
          %v2624 = vpop.f32.mrb[0].mxu0
          %2625 = vmatprep.mubr.f32.mxu0 0.0
          %2626 = vmatmul.mubr.f32.gmra.mrb[0].mxu0 %v2433
          %v2627 = vpop.f32.mrb[0].mxu0
          %v2628 = vadd.f32 0.0, %v2627
          %v2629 = vpop.f32.mrb[0].mxu0
          %2630 = vmatprep.mubr.f32.mxu0 0.0
          %2631 = vmatmul.mubr.f32.gmra.mrb[0].mxu0 %v2434
          %v2632 = vpop.f32.mrb[0].mxu0
          %v2633 = vadd.f32 0.0, %v2632
          %v2634 = vpop.f32.mrb[0].mxu0
          %2635 = vmatprep.mubr.f32.mxu0 0.0
          %2636 = vmatmul.mubr.f32.gmra.mrb[0].mxu0 %v2435
          %v2637 = vpop.f32.mrb[0].mxu0
          %v2638 = vadd.f32 0.0, %v2637
          %v2639 = vpop.f32.mrb[0].mxu0
          %2640 = vmatprep.mubr.f32.mxu0 0.0
          %2641 = vmatmul.mubr.f32.gmra.mrb[0].mxu0 %v2436
          %v2642 = vpop.f32.mrb[0].mxu0
          %v2643 = vadd.f32 0.0, %v2642
          %v2644 = vpop.f32.mrb[0].mxu0
          %2645 = vmatprep.mubr.f32.mxu0 0.0
          %2646 = vmatmul.mubr.f32.gmra.mrb[0].mxu0 %v2437
          %v2647 = vpop.f32.mrb[0].mxu0
          %v2648 = vadd.f32 0.0, %v2647
          %v2649 = vpop.f32.mrb[0].mxu0
          %2650 = vmatprep.mubr.f32.mxu0 0.0
          %2651 = vmatmul.mubr.f32.gmra.mrb[0].mxu0 %v2438
          %v2652 = vpop.f32.mrb[0].mxu0
          %v2653 = vadd.f32 0.0, %v2652
          %v2654 = vpop.f32.mrb[0].mxu0
          %2655 = vmatprep.mubr.f32.mxu0 0.0
          %2656 = vmatmul.mubr.f32.gmra.mrb[0].mxu0 %v2439
          %v2657 = vpop.f32.mrb[0].mxu0
          %v2658 = vadd.f32 0.0, %v2657
          %v2659 = vpop.f32.mrb[0].mxu0
          %2660 = vmatprep.mubr.f32.mxu0 0.0
          %2661 = vmatmul.mubr.f32.gmra.mrb[0].mxu0 %v2440
          %v2662 = vpop.f32.mrb[0].mxu0
          %v2663 = vadd.f32 0.0, %v2662
          %v2664 = vpop.f32.mrb[0].mxu0
          %2665 = vmatprep.mubr.f32.mxu0 0.0
          %2666 = vmatmul.mubr.f32.gmra.mrb[0].mxu0 %v2441
          %v2667 = vpop.f32.mrb[0].mxu0
          %v2668 = vadd.f32 0.0, %v2667
          %v2669 = vpop.f32.mrb[0].mxu0
          %2670 = vmatprep.mubr.f32.mxu0 0.0
          %2671 = vmatmul.mubr.f32.gmra.mrb[0].mxu0 %v2442
          %v2672 = vpop.f32.mrb[0].mxu0
          %v2673 = vadd.f32 0.0, %v2672
          %v2674 = vpop.f32.mrb[0].mxu0
          %2675 = vmatprep.mubr.f32.mxu0 0.0
          %2676 = vmatmul.mubr.f32.gmra.mrb[0].mxu0 %v2443
          %v2677 = vpop.f32.mrb[0].mxu0
          %v2678 = vadd.f32 0.0, %v2677
          %v2679 = vpop.f32.mrb[0].mxu0
          %2680 = vmatprep.mubr.f32.mxu0 0.0
          %2681 = vmatmul.mubr.f32.gmra.mrb[0].mxu0 %v2444
          %v2682 = vpop.f32.mrb[0].mxu0
          %v2683 = vadd.f32 0.0, %v2682
          %v2684 = vpop.f32.mrb[0].mxu0
          %2685 = vmatprep.mubr.f32.mxu0 0.0
          %2686 = vmatmul.mubr.f32.gmra.mrb[0].mxu0 %v2445
          %v2687 = vpop.f32.mrb[0].mxu0
          %v2688 = vadd.f32 0.0, %v2687
          %v2689 = vpop.f32.mrb[0].mxu0
          %2690 = vmatprep.mubr.f32.mxu0 0.0
          %2691 = vmatmul.mubr.f32.gmra.mrb[0].mxu0 %v2446
          %v2692 = vpop.f32.mrb[0].mxu0
          %v2693 = vadd.f32 0.0, %v2692
          %v2694 = vpop.f32.mrb[0].mxu0
          %2695 = vmatprep.mubr.f32.mxu0 0.0
          %2696 = vmatmul.mubr.f32.gmra.mrb[0].mxu0 %v2447
          %v2697 = vpop.f32.mrb[0].mxu0
          %v2698 = vadd.f32 0.0, %v2697
          %v2699 = vpop.f32.mrb[0].mxu0
          %2700 = vmatprep.mubr.f32.mxu0 0.0
          %2701 = vmatmul.mubr.f32.gmra.mrb[0].mxu0 %v2448
          %v2702 = vpop.f32.mrb[0].mxu0
          %v2703 = vadd.f32 0.0, %v2702
          %v2704 = vpop.f32.mrb[0].mxu0
          %2705 = vmatprep.mubr.f32.mxu0 0.0
          %2706 = vmatmul.mubr.f32.gmra.mrb[0].mxu0 %v2449
          %v2707 = vpop.f32.mrb[0].mxu0
          %v2708 = vadd.f32 0.0, %v2707
          %v2709 = vpop.f32.mrb[0].mxu0
          %2710 = vmatprep.mubr.f32.mxu0 0.0
          %2711 = vmatmul.mubr.f32.gmra.mrb[0].mxu0 %v2450
          %v2712 = vpop.f32.mrb[0].mxu0
          %v2713 = vadd.f32 0.0, %v2712
          %v2714 = vpop.f32.mrb[0].mxu0
          %2715 = vmatprep.mubr.f32.mxu0 0.0
          %2716 = vmatmul.mubr.f32.gmra.mrb[0].mxu0 %v2451
          %v2717 = vpop.f32.mrb[0].mxu0
          %v2718 = vadd.f32 0.0, %v2717
          %v2719 = vpop.f32.mrb[0].mxu0
          %2720 = vmatprep.mubr.f32.mxu0 0.0
          %2721 = vmatmul.mubr.f32.gmra.mrb[0].mxu0 %v2452
          %v2722 = vpop.f32.mrb[0].mxu0
          %v2723 = vadd.f32 0.0, %v2722
          %v2724 = vpop.f32.mrb[0].mxu0
          %2725 = vmatprep.mubr.f32.mxu0 0.0
          %2726 = vmatmul.mubr.f32.gmra.mrb[0].mxu0 %v2453
          %v2727 = vpop.f32.mrb[0].mxu0
          %v2728 = vadd.f32 0.0, %v2727
          %v2729 = vpop.f32.mrb[0].mxu0
          %2730 = vmatprep.mubr.f32.mxu0 0.0
          %2731 = vmatmul.mubr.f32.gmra.mrb[0].mxu0 %v2454
          %v2732 = vpop.f32.mrb[0].mxu0
          %v2733 = vadd.f32 0.0, %v2732
          %v2734 = vpop.f32.mrb[0].mxu0
          %2735 = vmatprep.mubr.f32.mxu0 0.0
          %2736 = vmatmul.mubr.f32.gmra.mrb[0].mxu0 %v2455
          %v2737 = vpop.f32.mrb[0].mxu0
          %v2738 = vadd.f32 0.0, %v2737
          %v2739 = vpop.f32.mrb[0].mxu0
          %2740 = vmatprep.mubr.f32.mxu0 0.0
          %2741 = vmatmul.mubr.f32.gmra.mrb[0].mxu0 %v2456
          %v2742 = vpop.f32.mrb[0].mxu0
          %v2743 = vadd.f32 0.0, %v2742
          %v2744 = vpop.f32.mrb[0].mxu0
          %2745 = vmatprep.mubr.f32.mxu0 0.0
          %2746 = vmatmul.mubr.f32.gmra.mrb[0].mxu0 %v2457
          %v2747 = vpop.f32.mrb[0].mxu0
          %v2748 = vadd.f32 0.0, %v2747
          %v2749 = vpop.f32.mrb[0].mxu0
          %2750 = vmatprep.mubr.f32.mxu0 0.0
          %2751 = vmatmul.mubr.f32.gmra.mrb[0].mxu0 %v2458
          %v2752 = vpop.f32.mrb[0].mxu0
          %v2753 = vadd.f32 0.0, %v2752
          %v2754 = vpop.f32.mrb[0].mxu0
          %2755 = vmatprep.mubr.f32.mxu0 0.0
          %2756 = vmatmul.mubr.f32.gmra.mrb[0].mxu0 %v2459
          %v2757 = vpop.f32.mrb[0].mxu0
          %v2758 = vadd.f32 0.0, %v2757
          %v2759 = vpop.f32.mrb[0].mxu0
          %2760 = vmatprep.mubr.f32.mxu0 0.0
          %2761 = vmatmul.mubr.f32.gmra.mrb[0].mxu0 %v2460
          %v2762 = vpop.f32.mrb[0].mxu0
          %v2763 = vadd.f32 0.0, %v2762
          %v2764 = vpop.f32.mrb[0].mxu0
          %2765 = vmatprep.mubr.f32.mxu0 0.0
          %2766 = vmatmul.mubr.f32.gmra.mrb[0].mxu0 %v2461
          %v2767 = vpop.f32.mrb[0].mxu0
          %v2768 = vadd.f32 0.0, %v2767
          %v2769 = vpop.f32.mrb[0].mxu0
          %2770 = vmatprep.mubr.f32.mxu0 0.0
          %2771 = vmatmul.mubr.f32.gmra.mrb[0].mxu0 %v2462
          %v2772 = vpop.f32.mrb[0].mxu0
          %v2773 = vadd.f32 0.0, %v2772
          %v2774 = vpop.f32.mrb[0].mxu0
          %2775 = vmatprep.mubr.f32.mxu0 0.0
          %2776 = vmatmul.mubr.f32.gmra.mrb[0].mxu0 %v2463
          %v2777 = vpop.f32.mrb[0].mxu0
          %v2778 = vadd.f32 0.0, %v2777
          %v2779 = vpop.f32.mrb[0].mxu0
          %2780 = vmatprep.mubr.f32.mxu0 0.0
          %2781 = vmatmul.mubr.f32.gmra.mrb[0].mxu0 %v2464
          %v2782 = vpop.f32.mrb[0].mxu0
          %v2783 = vadd.f32 0.0, %v2782
          %v2784 = vpop.f32.mrb[0].mxu0
          %2785 = vdwg.mxu0
          %v2786 = vld [vmem:[%s622] sm:$0x1]
          %v2787 = vld [vmem:[%s625] sm:$0x1]
          %v2788 = vsel %vm1956, %v2548, 0.0
          %v2789 = vsel %vm1957, %v2553, 0.0
          %v2790 = vsel %vm1958, %v2558, 0.0
          %v2791 = vsel %vm1959, %v2563, 0.0
          %v2792 = vsel %vm1960, %v2568, 0.0
          %v2793 = vsel %vm1961, %v2573, 0.0
          %v2794 = vsel %vm1962, %v2578, 0.0
          %v2795 = vsel %vm1963, %v2583, 0.0
          %v2796 = vsel %vm1964, %v2588, 0.0
          %v2797 = vsel %vm1965, %v2593, 0.0
          %v2798 = vsel %vm1966, %v2598, 0.0
          %v2799 = vsel %vm1967, %v2603, 0.0
          %v2800 = vsel %vm1968, %v2608, 0.0
          %v2801 = vsel %vm1969, %v2613, 0.0
          %v2802 = vsel %vm1970, %v2618, 0.0
          %v2803 = vsel %vm1971, %v2623, 0.0
          %v2804 = vsel %vm1972, %v2628, 0.0
          %v2805 = vsel %vm1973, %v2633, 0.0
          %v2806 = vsel %vm1974, %v2638, 0.0
          %v2807 = vsel %vm1975, %v2643, 0.0
          %v2808 = vsel %vm1976, %v2648, 0.0
          %v2809 = vsel %vm1977, %v2653, 0.0
          %v2810 = vsel %vm1978, %v2658, 0.0
          %v2811 = vsel %vm1979, %v2663, 0.0
          %v2812 = vsel %vm1980, %v2668, 0.0
          %v2813 = vsel %vm1981, %v2673, 0.0
          %v2814 = vsel %vm1982, %v2678, 0.0
          %v2815 = vsel %vm1983, %v2683, 0.0
          %v2816 = vsel %vm1984, %v2688, 0.0
          %v2817 = vsel %vm1985, %v2693, 0.0
          %v2818 = vsel %vm1986, %v2698, 0.0
          %v2819 = vsel %vm1987, %v2703, 0.0
          %v2820 = vsel %vm1988, %v2708, 0.0
          %v2821 = vsel %vm1989, %v2713, 0.0
          %v2822 = vsel %vm1990, %v2718, 0.0
          %v2823 = vsel %vm1991, %v2723, 0.0
          %v2824 = vsel %vm1992, %v2728, 0.0
          %v2825 = vsel %vm1993, %v2733, 0.0
          %v2826 = vsel %vm1994, %v2738, 0.0
          %v2827 = vsel %vm1995, %v2743, 0.0
          %v2828 = vsel %vm1996, %v2748, 0.0
          %v2829 = vsel %vm1997, %v2753, 0.0
          %v2830 = vsel %vm1998, %v2758, 0.0
          %v2831 = vsel %vm1999, %v2763, 0.0
          %v2832 = vsel %vm2000, %v2768, 0.0
          %v2833 = vsel %vm2001, %v2773, 0.0
          %v2834 = vsel %vm2002, %v2778, 0.0
          %v2835 = vsel %vm2003, %v2783, 0.0
          %v2836 = vadd.f32 %v2788, %v2789
          %v2837 = vadd.f32 %v2836, %v2790
          %v2838 = vadd.f32 %v2837, %v2791
          %v2839 = vadd.f32 %v2838, %v2792
          %v2840 = vadd.f32 %v2839, %v2793
          %v2841 = vadd.f32 %v2840, %v2794
          %v2842 = vadd.f32 %v2841, %v2795
          %v2843 = vadd.f32 %v2842, %v2796
          %v2844 = vadd.f32 %v2843, %v2797
          %v2845 = vadd.f32 %v2844, %v2798
          %v2846 = vadd.f32 %v2845, %v2799
          %v2847 = vadd.f32 %v2846, %v2800
          %v2848 = vadd.f32 %v2847, %v2801
          %v2849 = vadd.f32 %v2848, %v2802
          %v2850 = vadd.f32 %v2849, %v2803
          %v2851 = vadd.f32 %v2850, %v2804
          %v2852 = vadd.f32 %v2851, %v2805
          %v2853 = vadd.f32 %v2852, %v2806
          %v2854 = vadd.f32 %v2853, %v2807
          %v2855 = vadd.f32 %v2854, %v2808
          %v2856 = vadd.f32 %v2855, %v2809
          %v2857 = vadd.f32 %v2856, %v2810
          %v2858 = vadd.f32 %v2857, %v2811
          %v2859 = vadd.f32 %v2858, %v2812
          %v2860 = vadd.f32 %v2859, %v2813
          %v2861 = vadd.f32 %v2860, %v2814
          %v2862 = vadd.f32 %v2861, %v2815
          %v2863 = vadd.f32 %v2862, %v2816
          %v2864 = vadd.f32 %v2863, %v2817
          %v2865 = vadd.f32 %v2864, %v2818
          %v2866 = vadd.f32 %v2865, %v2819
          %v2867 = vadd.f32 %v2866, %v2820
          %v2868 = vadd.f32 %v2867, %v2821
          %v2869 = vadd.f32 %v2868, %v2822
          %v2870 = vadd.f32 %v2869, %v2823
          %v2871 = vadd.f32 %v2870, %v2824
          %v2872 = vadd.f32 %v2871, %v2825
          %v2873 = vadd.f32 %v2872, %v2826
          %v2874 = vadd.f32 %v2873, %v2827
          %v2875 = vadd.f32 %v2874, %v2828
          %v2876 = vadd.f32 %v2875, %v2829
          %v2877 = vadd.f32 %v2876, %v2830
          %v2878 = vadd.f32 %v2877, %v2831
          %v2879 = vadd.f32 %v2878, %v2832
          %v2880 = vadd.f32 %v2879, %v2833
          %v2881 = vadd.f32 %v2880, %v2834
          %v2882 = vadd.f32 %v2881, %v2835
          %v2883 = vrot.slane %v2882, 4
          %v2884 = vadd.f32 %v2882, %v2883
          %v2885 = vrot.slane %v2884, 2
          %v2886 = vadd.f32 %v2884, %v2885
          %v2887 = vrot.slane %v2886, 1
          %v2888 = vadd.f32 %v2886, %v2887
          %v2889 = vmul.f32 %v2888, 0.0033333334
          %v2890 = vmul.f32 %v2788, %v2788
          %v2891 = vmul.f32 %v2789, %v2789
          %v2892 = vmul.f32 %v2790, %v2790
          %v2893 = vmul.f32 %v2791, %v2791
          %v2894 = vmul.f32 %v2792, %v2792
          %v2895 = vmul.f32 %v2793, %v2793
          %v2896 = vmul.f32 %v2794, %v2794
          %v2897 = vmul.f32 %v2795, %v2795
          %v2898 = vmul.f32 %v2796, %v2796
          %v2899 = vmul.f32 %v2797, %v2797
          %v2900 = vmul.f32 %v2798, %v2798
          %v2901 = vmul.f32 %v2799, %v2799
          %v2902 = vmul.f32 %v2800, %v2800
          %v2903 = vmul.f32 %v2801, %v2801
          %v2904 = vmul.f32 %v2802, %v2802
          %v2905 = vmul.f32 %v2803, %v2803
          %v2906 = vmul.f32 %v2804, %v2804
          %v2907 = vmul.f32 %v2805, %v2805
          %v2908 = vmul.f32 %v2806, %v2806
          %v2909 = vmul.f32 %v2807, %v2807
          %v2910 = vmul.f32 %v2808, %v2808
          %v2911 = vmul.f32 %v2809, %v2809
          %v2912 = vmul.f32 %v2810, %v2810
          %v2913 = vmul.f32 %v2811, %v2811
          %v2914 = vmul.f32 %v2812, %v2812
          %v2915 = vmul.f32 %v2813, %v2813
          %v2916 = vmul.f32 %v2814, %v2814
          %v2917 = vmul.f32 %v2815, %v2815
          %v2918 = vmul.f32 %v2816, %v2816
          %v2919 = vmul.f32 %v2817, %v2817
          %v2920 = vmul.f32 %v2818, %v2818
          %v2921 = vmul.f32 %v2819, %v2819
          %v2922 = vmul.f32 %v2820, %v2820
          %v2923 = vmul.f32 %v2821, %v2821
          %v2924 = vmul.f32 %v2822, %v2822
          %v2925 = vmul.f32 %v2823, %v2823
          %v2926 = vmul.f32 %v2824, %v2824
          %v2927 = vmul.f32 %v2825, %v2825
          %v2928 = vmul.f32 %v2826, %v2826
          %v2929 = vmul.f32 %v2827, %v2827
          %v2930 = vmul.f32 %v2828, %v2828
          %v2931 = vmul.f32 %v2829, %v2829
          %v2932 = vmul.f32 %v2830, %v2830
          %v2933 = vmul.f32 %v2831, %v2831
          %v2934 = vmul.f32 %v2832, %v2832
          %v2935 = vmul.f32 %v2833, %v2833
          %v2936 = vmul.f32 %v2834, %v2834
          %v2937 = vmul.f32 %v2835, %v2835
          %v2938 = vadd.f32 %v2890, %v2891
          %v2939 = vadd.f32 %v2938, %v2892
          %v2940 = vadd.f32 %v2939, %v2893
          %v2941 = vadd.f32 %v2940, %v2894
          %v2942 = vadd.f32 %v2941, %v2895
          %v2943 = vadd.f32 %v2942, %v2896
          %v2944 = vadd.f32 %v2943, %v2897
          %v2945 = vadd.f32 %v2944, %v2898
          %v2946 = vadd.f32 %v2945, %v2899
          %v2947 = vadd.f32 %v2946, %v2900
          %v2948 = vadd.f32 %v2947, %v2901
          %v2949 = vadd.f32 %v2948, %v2902
          %v2950 = vadd.f32 %v2949, %v2903
          %v2951 = vadd.f32 %v2950, %v2904
          %v2952 = vadd.f32 %v2951, %v2905
          %v2953 = vadd.f32 %v2952, %v2906
          %v2954 = vadd.f32 %v2953, %v2907
          %v2955 = vadd.f32 %v2954, %v2908
          %v2956 = vadd.f32 %v2955, %v2909
          %v2957 = vadd.f32 %v2956, %v2910
          %v2958 = vadd.f32 %v2957, %v2911
          %v2959 = vadd.f32 %v2958, %v2912
          %v2960 = vadd.f32 %v2959, %v2913
          %v2961 = vadd.f32 %v2960, %v2914
          %v2962 = vadd.f32 %v2961, %v2915
          %v2963 = vadd.f32 %v2962, %v2916
          %v2964 = vadd.f32 %v2963, %v2917
          %v2965 = vadd.f32 %v2964, %v2918
          %v2966 = vadd.f32 %v2965, %v2919
          %v2967 = vadd.f32 %v2966, %v2920
          %v2968 = vadd.f32 %v2967, %v2921
          %v2969 = vadd.f32 %v2968, %v2922
          %v2970 = vadd.f32 %v2969, %v2923
          %v2971 = vadd.f32 %v2970, %v2924
          %v2972 = vadd.f32 %v2971, %v2925
          %v2973 = vadd.f32 %v2972, %v2926
          %v2974 = vadd.f32 %v2973, %v2927
          %v2975 = vadd.f32 %v2974, %v2928
          %v2976 = vadd.f32 %v2975, %v2929
          %v2977 = vadd.f32 %v2976, %v2930
          %v2978 = vadd.f32 %v2977, %v2931
          %v2979 = vadd.f32 %v2978, %v2932
          %v2980 = vadd.f32 %v2979, %v2933
          %v2981 = vadd.f32 %v2980, %v2934
          %v2982 = vadd.f32 %v2981, %v2935
          %v2983 = vadd.f32 %v2982, %v2936
          %v2984 = vadd.f32 %v2983, %v2937
          %v2985 = vrot.slane %v2984, 4
          %v2986 = vadd.f32 %v2984, %v2985
          %v2987 = vrot.slane %v2986, 2
          %v2988 = vadd.f32 %v2986, %v2987
          %v2989 = vrot.slane %v2988, 1
          %v2990 = vadd.f32 %v2988, %v2989
          %v2991 = vmul.f32 %v2990, 0.0033333334
          %v2992 = vmul.f32 %v2889, %v2889
          %v2993 = vsub.f32 %v2991, %v2992
          %v2994 = vmax.f32 %v2993, 0.0
          %v2995 = vsub.f32 %v2548, %v2889
          %v2996 = vsub.f32 %v2553, %v2889
          %v2997 = vsub.f32 %v2558, %v2889
          %v2998 = vsub.f32 %v2563, %v2889
          %v2999 = vsub.f32 %v2568, %v2889
          %v3000 = vsub.f32 %v2573, %v2889
          %v3001 = vsub.f32 %v2578, %v2889
          %v3002 = vsub.f32 %v2583, %v2889
          %v3003 = vsub.f32 %v2588, %v2889
          %v3004 = vsub.f32 %v2593, %v2889
          %v3005 = vsub.f32 %v2598, %v2889
          %v3006 = vsub.f32 %v2603, %v2889
          %v3007 = vsub.f32 %v2608, %v2889
          %v3008 = vsub.f32 %v2613, %v2889
          %v3009 = vsub.f32 %v2618, %v2889
          %v3010 = vsub.f32 %v2623, %v2889
          %v3011 = vsub.f32 %v2628, %v2889
          %v3012 = vsub.f32 %v2633, %v2889
          %v3013 = vsub.f32 %v2638, %v2889
          %v3014 = vsub.f32 %v2643, %v2889
          %v3015 = vsub.f32 %v2648, %v2889
          %v3016 = vsub.f32 %v2653, %v2889
          %v3017 = vsub.f32 %v2658, %v2889
          %v3018 = vsub.f32 %v2663, %v2889
          %v3019 = vsub.f32 %v2668, %v2889
          %v3020 = vsub.f32 %v2673, %v2889
          %v3021 = vsub.f32 %v2678, %v2889
          %v3022 = vsub.f32 %v2683, %v2889
          %v3023 = vsub.f32 %v2688, %v2889
          %v3024 = vsub.f32 %v2693, %v2889
          %v3025 = vsub.f32 %v2698, %v2889
          %v3026 = vsub.f32 %v2703, %v2889
          %v3027 = vsub.f32 %v2708, %v2889
          %v3028 = vsub.f32 %v2713, %v2889
          %v3029 = vsub.f32 %v2718, %v2889
          %v3030 = vsub.f32 %v2723, %v2889
          %v3031 = vsub.f32 %v2728, %v2889
          %v3032 = vsub.f32 %v2733, %v2889
          %v3033 = vsub.f32 %v2738, %v2889
          %v3034 = vsub.f32 %v2743, %v2889
          %v3035 = vsub.f32 %v2748, %v2889
          %v3036 = vsub.f32 %v2753, %v2889
          %v3037 = vsub.f32 %v2758, %v2889
          %v3038 = vsub.f32 %v2763, %v2889
          %v3039 = vsub.f32 %v2768, %v2889
          %v3040 = vsub.f32 %v2773, %v2889
          %v3041 = vsub.f32 %v2778, %v2889
          %v3042 = vsub.f32 %v2783, %v2889
          %v3043 = vadd.f32 %v2994, 1e-05
          %v3044 = vrsqrt.pop %v3043
          %v3045 = vmul.f32 %v2995, %v3044
          %v3046 = vmul.f32 %v2996, %v3044
          %v3047 = vmul.f32 %v2997, %v3044
          %v3048 = vmul.f32 %v2998, %v3044
          %v3049 = vmul.f32 %v2999, %v3044
          %v3050 = vmul.f32 %v3000, %v3044
          %v3051 = vmul.f32 %v3001, %v3044
          %v3052 = vmul.f32 %v3002, %v3044
          %v3053 = vmul.f32 %v3003, %v3044
          %v3054 = vmul.f32 %v3004, %v3044
          %v3055 = vmul.f32 %v3005, %v3044
          %v3056 = vmul.f32 %v3006, %v3044
          %v3057 = vmul.f32 %v3007, %v3044
          %v3058 = vmul.f32 %v3008, %v3044
          %v3059 = vmul.f32 %v3009, %v3044
          %v3060 = vmul.f32 %v3010, %v3044
          %v3061 = vmul.f32 %v3011, %v3044
          %v3062 = vmul.f32 %v3012, %v3044
          %v3063 = vmul.f32 %v3013, %v3044
          %v3064 = vmul.f32 %v3014, %v3044
          %v3065 = vmul.f32 %v3015, %v3044
          %v3066 = vmul.f32 %v3016, %v3044
          %v3067 = vmul.f32 %v3017, %v3044
          %v3068 = vmul.f32 %v3018, %v3044
          %v3069 = vmul.f32 %v3019, %v3044
          %v3070 = vmul.f32 %v3020, %v3044
          %v3071 = vmul.f32 %v3021, %v3044
          %v3072 = vmul.f32 %v3022, %v3044
          %v3073 = vmul.f32 %v3023, %v3044
          %v3074 = vmul.f32 %v3024, %v3044
          %v3075 = vmul.f32 %v3025, %v3044
          %v3076 = vmul.f32 %v3026, %v3044
          %v3077 = vmul.f32 %v3027, %v3044
          %v3078 = vmul.f32 %v3028, %v3044
          %v3079 = vmul.f32 %v3029, %v3044
          %v3080 = vmul.f32 %v3030, %v3044
          %v3081 = vmul.f32 %v3031, %v3044
          %v3082 = vmul.f32 %v3032, %v3044
          %v3083 = vmul.f32 %v3033, %v3044
          %v3084 = vmul.f32 %v3034, %v3044
          %v3085 = vmul.f32 %v3035, %v3044
          %v3086 = vmul.f32 %v3036, %v3044
          %v3087 = vmul.f32 %v3037, %v3044
          %v3088 = vmul.f32 %v3038, %v3044
          %v3089 = vmul.f32 %v3039, %v3044
          %v3090 = vmul.f32 %v3040, %v3044
          %v3091 = vmul.f32 %v3041, %v3044
          %v3092 = vmul.f32 %v3042, %v3044
          %v3094 = vlaneseq
          %v3095 = vshrl.u32 %v3094, 7
          %v3096 = vsub.s32 0, %v3095
          %v3097 = vrot.slane %v2786, %v3096
          %v3099 = vmul.f32 %v3045, %v3097
          %v3100 = vmul.f32 %v3046, %v3097
          %v3101 = vmul.f32 %v3047, %v3097
          %v3102 = vmul.f32 %v3048, %v3097
          %v3103 = vmul.f32 %v3049, %v3097
          %v3104 = vmul.f32 %v3050, %v3097
          %v3105 = vmul.f32 %v3051, %v3097
          %v3106 = vmul.f32 %v3052, %v3097
          %v3107 = vmul.f32 %v3053, %v3097
          %v3108 = vmul.f32 %v3054, %v3097
          %v3109 = vmul.f32 %v3055, %v3097
          %v3110 = vmul.f32 %v3056, %v3097
          %v3111 = vmul.f32 %v3057, %v3097
          %v3112 = vmul.f32 %v3058, %v3097
          %v3113 = vmul.f32 %v3059, %v3097
          %v3114 = vmul.f32 %v3060, %v3097
          %v3115 = vmul.f32 %v3061, %v3097
          %v3116 = vmul.f32 %v3062, %v3097
          %v3117 = vmul.f32 %v3063, %v3097
          %v3118 = vmul.f32 %v3064, %v3097
          %v3119 = vmul.f32 %v3065, %v3097
          %v3120 = vmul.f32 %v3066, %v3097
          %v3121 = vmul.f32 %v3067, %v3097
          %v3122 = vmul.f32 %v3068, %v3097
          %v3123 = vmul.f32 %v3069, %v3097
          %v3124 = vmul.f32 %v3070, %v3097
          %v3125 = vmul.f32 %v3071, %v3097
          %v3126 = vmul.f32 %v3072, %v3097
          %v3127 = vmul.f32 %v3073, %v3097
          %v3128 = vmul.f32 %v3074, %v3097
          %v3129 = vmul.f32 %v3075, %v3097
          %v3130 = vmul.f32 %v3076, %v3097
          %v3131 = vmul.f32 %v3077, %v3097
          %v3132 = vmul.f32 %v3078, %v3097
          %v3133 = vmul.f32 %v3079, %v3097
          %v3134 = vmul.f32 %v3080, %v3097
          %v3135 = vmul.f32 %v3081, %v3097
          %v3136 = vmul.f32 %v3082, %v3097
          %v3137 = vmul.f32 %v3083, %v3097
          %v3138 = vmul.f32 %v3084, %v3097
          %v3139 = vmul.f32 %v3085, %v3097
          %v3140 = vmul.f32 %v3086, %v3097
          %v3141 = vmul.f32 %v3087, %v3097
          %v3142 = vmul.f32 %v3088, %v3097
          %v3143 = vmul.f32 %v3089, %v3097
          %v3144 = vmul.f32 %v3090, %v3097
          %v3145 = vmul.f32 %v3091, %v3097
          %v3146 = vmul.f32 %v3092, %v3097
          %v3148 = vlaneseq
          %v3149 = vshrl.u32 %v3148, 7
          %v3150 = vsub.s32 0, %v3149
          %v3151 = vrot.slane %v2787, %v3150
          %v3153 = vadd.f32 %v3099, %v3151
          %v3154 = vadd.f32 %v3100, %v3151
          %v3155 = vadd.f32 %v3101, %v3151
          %v3156 = vadd.f32 %v3102, %v3151
          %v3157 = vadd.f32 %v3103, %v3151
          %v3158 = vadd.f32 %v3104, %v3151
          %v3159 = vadd.f32 %v3105, %v3151
          %v3160 = vadd.f32 %v3106, %v3151
          %v3161 = vadd.f32 %v3107, %v3151
          %v3162 = vadd.f32 %v3108, %v3151
          %v3163 = vadd.f32 %v3109, %v3151
          %v3164 = vadd.f32 %v3110, %v3151
          %v3165 = vadd.f32 %v3111, %v3151
          %v3166 = vadd.f32 %v3112, %v3151
          %v3167 = vadd.f32 %v3113, %v3151
          %v3168 = vadd.f32 %v3114, %v3151
          %v3169 = vadd.f32 %v3115, %v3151
          %v3170 = vadd.f32 %v3116, %v3151
          %v3171 = vadd.f32 %v3117, %v3151
          %v3172 = vadd.f32 %v3118, %v3151
          %v3173 = vadd.f32 %v3119, %v3151
          %v3174 = vadd.f32 %v3120, %v3151
          %v3175 = vadd.f32 %v3121, %v3151
          %v3176 = vadd.f32 %v3122, %v3151
          %v3177 = vadd.f32 %v3123, %v3151
          %v3178 = vadd.f32 %v3124, %v3151
          %v3179 = vadd.f32 %v3125, %v3151
          %v3180 = vadd.f32 %v3126, %v3151
          %v3181 = vadd.f32 %v3127, %v3151
          %v3182 = vadd.f32 %v3128, %v3151
          %v3183 = vadd.f32 %v3129, %v3151
          %v3184 = vadd.f32 %v3130, %v3151
          %v3185 = vadd.f32 %v3131, %v3151
          %v3186 = vadd.f32 %v3132, %v3151
          %v3187 = vadd.f32 %v3133, %v3151
          %v3188 = vadd.f32 %v3134, %v3151
          %v3189 = vadd.f32 %v3135, %v3151
          %v3190 = vadd.f32 %v3136, %v3151
          %v3191 = vadd.f32 %v3137, %v3151
          %v3192 = vadd.f32 %v3138, %v3151
          %v3193 = vadd.f32 %v3139, %v3151
          %v3194 = vadd.f32 %v3140, %v3151
          %v3195 = vadd.f32 %v3141, %v3151
          %v3196 = vadd.f32 %v3142, %v3151
          %v3197 = vadd.f32 %v3143, %v3151
          %v3198 = vadd.f32 %v3144, %v3151
          %v3199 = vadd.f32 %v3145, %v3151
          %v3200 = vadd.f32 %v3146, %v3151
          %v3201 = vmax.f32 %v3153, 0.0
          %v3202 = vmax.f32 %v3154, 0.0
          %v3203 = vmax.f32 %v3155, 0.0
          %v3204 = vmax.f32 %v3156, 0.0
          %v3205 = vmax.f32 %v3157, 0.0
          %v3206 = vmax.f32 %v3158, 0.0
          %v3207 = vmax.f32 %v3159, 0.0
          %v3208 = vmax.f32 %v3160, 0.0
          %v3209 = vmax.f32 %v3161, 0.0
          %v3210 = vmax.f32 %v3162, 0.0
          %v3211 = vmax.f32 %v3163, 0.0
          %v3212 = vmax.f32 %v3164, 0.0
          %v3213 = vmax.f32 %v3165, 0.0
          %v3214 = vmax.f32 %v3166, 0.0
          %v3215 = vmax.f32 %v3167, 0.0
          %v3216 = vmax.f32 %v3168, 0.0
          %v3217 = vmax.f32 %v3169, 0.0
          %v3218 = vmax.f32 %v3170, 0.0
          %v3219 = vmax.f32 %v3171, 0.0
          %v3220 = vmax.f32 %v3172, 0.0
          %v3221 = vmax.f32 %v3173, 0.0
          %v3222 = vmax.f32 %v3174, 0.0
          %v3223 = vmax.f32 %v3175, 0.0
          %v3224 = vmax.f32 %v3176, 0.0
          %v3225 = vmax.f32 %v3177, 0.0
          %v3226 = vmax.f32 %v3178, 0.0
          %v3227 = vmax.f32 %v3179, 0.0
          %v3228 = vmax.f32 %v3180, 0.0
          %v3229 = vmax.f32 %v3181, 0.0
          %v3230 = vmax.f32 %v3182, 0.0
          %v3231 = vmax.f32 %v3183, 0.0
          %v3232 = vmax.f32 %v3184, 0.0
          %v3233 = vmax.f32 %v3185, 0.0
          %v3234 = vmax.f32 %v3186, 0.0
          %v3235 = vmax.f32 %v3187, 0.0
          %v3236 = vmax.f32 %v3188, 0.0
          %v3237 = vmax.f32 %v3189, 0.0
          %v3238 = vmax.f32 %v3190, 0.0
          %v3239 = vmax.f32 %v3191, 0.0
          %v3240 = vmax.f32 %v3192, 0.0
          %v3241 = vmax.f32 %v3193, 0.0
          %v3242 = vmax.f32 %v3194, 0.0
          %v3243 = vmax.f32 %v3195, 0.0
          %v3244 = vmax.f32 %v3196, 0.0
          %v3245 = vmax.f32 %v3197, 0.0
          %v3246 = vmax.f32 %v3198, 0.0
          %v3247 = vmax.f32 %v3199, 0.0
          %v3248 = vmax.f32 %v3200, 0.0
          %v3249 = vld [vmem:[%s628] sm:$0x1]
          %v3250 = vld [vmem:[%s631] sm:$0x1]
          %v3251 = vsel %vm1956, %v3201, 0.0
          %v3252 = vsel %vm1957, %v3202, 0.0
          %v3253 = vsel %vm1958, %v3203, 0.0
          %v3254 = vsel %vm1959, %v3204, 0.0
          %v3255 = vsel %vm1960, %v3205, 0.0
          %v3256 = vsel %vm1961, %v3206, 0.0
          %v3257 = vsel %vm1962, %v3207, 0.0
          %v3258 = vsel %vm1963, %v3208, 0.0
          %v3259 = vsel %vm1964, %v3209, 0.0
          %v3260 = vsel %vm1965, %v3210, 0.0
          %v3261 = vsel %vm1966, %v3211, 0.0
          %v3262 = vsel %vm1967, %v3212, 0.0
          %v3263 = vsel %vm1968, %v3213, 0.0
          %v3264 = vsel %vm1969, %v3214, 0.0
          %v3265 = vsel %vm1970, %v3215, 0.0
          %v3266 = vsel %vm1971, %v3216, 0.0
          %v3267 = vsel %vm1972, %v3217, 0.0
          %v3268 = vsel %vm1973, %v3218, 0.0
          %v3269 = vsel %vm1974, %v3219, 0.0
          %v3270 = vsel %vm1975, %v3220, 0.0
          %v3271 = vsel %vm1976, %v3221, 0.0
          %v3272 = vsel %vm1977, %v3222, 0.0
          %v3273 = vsel %vm1978, %v3223, 0.0
          %v3274 = vsel %vm1979, %v3224, 0.0
          %v3275 = vsel %vm1980, %v3225, 0.0
          %v3276 = vsel %vm1981, %v3226, 0.0
          %v3277 = vsel %vm1982, %v3227, 0.0
          %v3278 = vsel %vm1983, %v3228, 0.0
          %v3279 = vsel %vm1984, %v3229, 0.0
          %v3280 = vsel %vm1985, %v3230, 0.0
          %v3281 = vsel %vm1986, %v3231, 0.0
          %v3282 = vsel %vm1987, %v3232, 0.0
          %v3283 = vsel %vm1988, %v3233, 0.0
          %v3284 = vsel %vm1989, %v3234, 0.0
          %v3285 = vsel %vm1990, %v3235, 0.0
          %v3286 = vsel %vm1991, %v3236, 0.0
          %v3287 = vsel %vm1992, %v3237, 0.0
          %v3288 = vsel %vm1993, %v3238, 0.0
          %v3289 = vsel %vm1994, %v3239, 0.0
          %v3290 = vsel %vm1995, %v3240, 0.0
          %v3291 = vsel %vm1996, %v3241, 0.0
          %v3292 = vsel %vm1997, %v3242, 0.0
          %v3293 = vsel %vm1998, %v3243, 0.0
          %v3294 = vsel %vm1999, %v3244, 0.0
          %v3295 = vsel %vm2000, %v3245, 0.0
          %v3296 = vsel %vm2001, %v3246, 0.0
          %v3297 = vsel %vm2002, %v3247, 0.0
          %v3298 = vsel %vm2003, %v3248, 0.0
          %v3299 = vadd.f32 %v3251, %v3252
          %v3300 = vadd.f32 %v3299, %v3253
          %v3301 = vadd.f32 %v3300, %v3254
          %v3302 = vadd.f32 %v3301, %v3255
          %v3303 = vadd.f32 %v3302, %v3256
          %v3304 = vadd.f32 %v3303, %v3257
          %v3305 = vadd.f32 %v3304, %v3258
          %v3306 = vadd.f32 %v3305, %v3259
          %v3307 = vadd.f32 %v3306, %v3260
          %v3308 = vadd.f32 %v3307, %v3261
          %v3309 = vadd.f32 %v3308, %v3262
          %v3310 = vadd.f32 %v3309, %v3263
          %v3311 = vadd.f32 %v3310, %v3264
          %v3312 = vadd.f32 %v3311, %v3265
          %v3313 = vadd.f32 %v3312, %v3266
          %v3314 = vadd.f32 %v3313, %v3267
          %v3315 = vadd.f32 %v3314, %v3268
          %v3316 = vadd.f32 %v3315, %v3269
          %v3317 = vadd.f32 %v3316, %v3270
          %v3318 = vadd.f32 %v3317, %v3271
          %v3319 = vadd.f32 %v3318, %v3272
          %v3320 = vadd.f32 %v3319, %v3273
          %v3321 = vadd.f32 %v3320, %v3274
          %v3322 = vadd.f32 %v3321, %v3275
          %v3323 = vadd.f32 %v3322, %v3276
          %v3324 = vadd.f32 %v3323, %v3277
          %v3325 = vadd.f32 %v3324, %v3278
          %v3326 = vadd.f32 %v3325, %v3279
          %v3327 = vadd.f32 %v3326, %v3280
          %v3328 = vadd.f32 %v3327, %v3281
          %v3329 = vadd.f32 %v3328, %v3282
          %v3330 = vadd.f32 %v3329, %v3283
          %v3331 = vadd.f32 %v3330, %v3284
          %v3332 = vadd.f32 %v3331, %v3285
          %v3333 = vadd.f32 %v3332, %v3286
          %v3334 = vadd.f32 %v3333, %v3287
          %v3335 = vadd.f32 %v3334, %v3288
          %v3336 = vadd.f32 %v3335, %v3289
          %v3337 = vadd.f32 %v3336, %v3290
          %v3338 = vadd.f32 %v3337, %v3291
          %v3339 = vadd.f32 %v3338, %v3292
          %v3340 = vadd.f32 %v3339, %v3293
          %v3341 = vadd.f32 %v3340, %v3294
          %v3342 = vadd.f32 %v3341, %v3295
          %v3343 = vadd.f32 %v3342, %v3296
          %v3344 = vadd.f32 %v3343, %v3297
          %v3345 = vadd.f32 %v3344, %v3298
          %v3346 = vrot.slane %v3345, 4
          %v3347 = vadd.f32 %v3345, %v3346
          %v3348 = vrot.slane %v3347, 2
          %v3349 = vadd.f32 %v3347, %v3348
          %v3350 = vrot.slane %v3349, 1
          %v3351 = vadd.f32 %v3349, %v3350
          %v3352 = vmul.f32 %v3351, 0.0033333334
          %v3353 = vmul.f32 %v3251, %v3251
          %v3354 = vmul.f32 %v3252, %v3252
          %v3355 = vmul.f32 %v3253, %v3253
          %v3356 = vmul.f32 %v3254, %v3254
          %v3357 = vmul.f32 %v3255, %v3255
          %v3358 = vmul.f32 %v3256, %v3256
          %v3359 = vmul.f32 %v3257, %v3257
          %v3360 = vmul.f32 %v3258, %v3258
          %v3361 = vmul.f32 %v3259, %v3259
          %v3362 = vmul.f32 %v3260, %v3260
          %v3363 = vmul.f32 %v3261, %v3261
          %v3364 = vmul.f32 %v3262, %v3262
          %v3365 = vmul.f32 %v3263, %v3263
          %v3366 = vmul.f32 %v3264, %v3264
          %v3367 = vmul.f32 %v3265, %v3265
          %v3368 = vmul.f32 %v3266, %v3266
          %v3369 = vmul.f32 %v3267, %v3267
          %v3370 = vmul.f32 %v3268, %v3268
          %v3371 = vmul.f32 %v3269, %v3269
          %v3372 = vmul.f32 %v3270, %v3270
          %v3373 = vmul.f32 %v3271, %v3271
          %v3374 = vmul.f32 %v3272, %v3272
          %v3375 = vmul.f32 %v3273, %v3273
          %v3376 = vmul.f32 %v3274, %v3274
          %v3377 = vmul.f32 %v3275, %v3275
          %v3378 = vmul.f32 %v3276, %v3276
          %v3379 = vmul.f32 %v3277, %v3277
          %v3380 = vmul.f32 %v3278, %v3278
          %v3381 = vmul.f32 %v3279, %v3279
          %v3382 = vmul.f32 %v3280, %v3280
          %v3383 = vmul.f32 %v3281, %v3281
          %v3384 = vmul.f32 %v3282, %v3282
          %v3385 = vmul.f32 %v3283, %v3283
          %v3386 = vmul.f32 %v3284, %v3284
          %v3387 = vmul.f32 %v3285, %v3285
          %v3388 = vmul.f32 %v3286, %v3286
          %v3389 = vmul.f32 %v3287, %v3287
          %v3390 = vmul.f32 %v3288, %v3288
          %v3391 = vmul.f32 %v3289, %v3289
          %v3392 = vmul.f32 %v3290, %v3290
          %v3393 = vmul.f32 %v3291, %v3291
          %v3394 = vmul.f32 %v3292, %v3292
          %v3395 = vmul.f32 %v3293, %v3293
          %v3396 = vmul.f32 %v3294, %v3294
          %v3397 = vmul.f32 %v3295, %v3295
          %v3398 = vmul.f32 %v3296, %v3296
          %v3399 = vmul.f32 %v3297, %v3297
          %v3400 = vmul.f32 %v3298, %v3298
          %v3401 = vadd.f32 %v3353, %v3354
          %v3402 = vadd.f32 %v3401, %v3355
          %v3403 = vadd.f32 %v3402, %v3356
          %v3404 = vadd.f32 %v3403, %v3357
          %v3405 = vadd.f32 %v3404, %v3358
          %v3406 = vadd.f32 %v3405, %v3359
          %v3407 = vadd.f32 %v3406, %v3360
          %v3408 = vadd.f32 %v3407, %v3361
          %v3409 = vadd.f32 %v3408, %v3362
          %v3410 = vadd.f32 %v3409, %v3363
          %v3411 = vadd.f32 %v3410, %v3364
          %v3412 = vadd.f32 %v3411, %v3365
          %v3413 = vadd.f32 %v3412, %v3366
          %v3414 = vadd.f32 %v3413, %v3367
          %v3415 = vadd.f32 %v3414, %v3368
          %v3416 = vadd.f32 %v3415, %v3369
          %v3417 = vadd.f32 %v3416, %v3370
          %v3418 = vadd.f32 %v3417, %v3371
          %v3419 = vadd.f32 %v3418, %v3372
          %v3420 = vadd.f32 %v3419, %v3373
          %v3421 = vadd.f32 %v3420, %v3374
          %v3422 = vadd.f32 %v3421, %v3375
          %v3423 = vadd.f32 %v3422, %v3376
          %v3424 = vadd.f32 %v3423, %v3377
          %v3425 = vadd.f32 %v3424, %v3378
          %v3426 = vadd.f32 %v3425, %v3379
          %v3427 = vadd.f32 %v3426, %v3380
          %v3428 = vadd.f32 %v3427, %v3381
          %v3429 = vadd.f32 %v3428, %v3382
          %v3430 = vadd.f32 %v3429, %v3383
          %v3431 = vadd.f32 %v3430, %v3384
          %v3432 = vadd.f32 %v3431, %v3385
          %v3433 = vadd.f32 %v3432, %v3386
          %v3434 = vadd.f32 %v3433, %v3387
          %v3435 = vadd.f32 %v3434, %v3388
          %v3436 = vadd.f32 %v3435, %v3389
          %v3437 = vadd.f32 %v3436, %v3390
          %v3438 = vadd.f32 %v3437, %v3391
          %v3439 = vadd.f32 %v3438, %v3392
          %v3440 = vadd.f32 %v3439, %v3393
          %v3441 = vadd.f32 %v3440, %v3394
          %v3442 = vadd.f32 %v3441, %v3395
          %v3443 = vadd.f32 %v3442, %v3396
          %v3444 = vadd.f32 %v3443, %v3397
          %v3445 = vadd.f32 %v3444, %v3398
          %v3446 = vadd.f32 %v3445, %v3399
          %v3447 = vadd.f32 %v3446, %v3400
          %v3448 = vrot.slane %v3447, 4
          %v3449 = vadd.f32 %v3447, %v3448
          %v3450 = vrot.slane %v3449, 2
          %v3451 = vadd.f32 %v3449, %v3450
          %v3452 = vrot.slane %v3451, 1
          %v3453 = vadd.f32 %v3451, %v3452
          %v3454 = vmul.f32 %v3453, 0.0033333334
          %v3455 = vmul.f32 %v3352, %v3352
          %v3456 = vsub.f32 %v3454, %v3455
          %v3457 = vmax.f32 %v3456, 0.0
          %v3458 = vsub.f32 %v3201, %v3352
          %v3459 = vsub.f32 %v3202, %v3352
          %v3460 = vsub.f32 %v3203, %v3352
          %v3461 = vsub.f32 %v3204, %v3352
          %v3462 = vsub.f32 %v3205, %v3352
          %v3463 = vsub.f32 %v3206, %v3352
          %v3464 = vsub.f32 %v3207, %v3352
          %v3465 = vsub.f32 %v3208, %v3352
          %v3466 = vsub.f32 %v3209, %v3352
          %v3467 = vsub.f32 %v3210, %v3352
          %v3468 = vsub.f32 %v3211, %v3352
          %v3469 = vsub.f32 %v3212, %v3352
          %v3470 = vsub.f32 %v3213, %v3352
          %v3471 = vsub.f32 %v3214, %v3352
          %v3472 = vsub.f32 %v3215, %v3352
          %v3473 = vsub.f32 %v3216, %v3352
          %v3474 = vsub.f32 %v3217, %v3352
          %v3475 = vsub.f32 %v3218, %v3352
          %v3476 = vsub.f32 %v3219, %v3352
          %v3477 = vsub.f32 %v3220, %v3352
          %v3478 = vsub.f32 %v3221, %v3352
          %v3479 = vsub.f32 %v3222, %v3352
          %v3480 = vsub.f32 %v3223, %v3352
          %v3481 = vsub.f32 %v3224, %v3352
          %v3482 = vsub.f32 %v3225, %v3352
          %v3483 = vsub.f32 %v3226, %v3352
          %v3484 = vsub.f32 %v3227, %v3352
          %v3485 = vsub.f32 %v3228, %v3352
          %v3486 = vsub.f32 %v3229, %v3352
          %v3487 = vsub.f32 %v3230, %v3352
          %v3488 = vsub.f32 %v3231, %v3352
          %v3489 = vsub.f32 %v3232, %v3352
          %v3490 = vsub.f32 %v3233, %v3352
          %v3491 = vsub.f32 %v3234, %v3352
          %v3492 = vsub.f32 %v3235, %v3352
          %v3493 = vsub.f32 %v3236, %v3352
          %v3494 = vsub.f32 %v3237, %v3352
          %v3495 = vsub.f32 %v3238, %v3352
          %v3496 = vsub.f32 %v3239, %v3352
          %v3497 = vsub.f32 %v3240, %v3352
          %v3498 = vsub.f32 %v3241, %v3352
          %v3499 = vsub.f32 %v3242, %v3352
          %v3500 = vsub.f32 %v3243, %v3352
          %v3501 = vsub.f32 %v3244, %v3352
          %v3502 = vsub.f32 %v3245, %v3352
          %v3503 = vsub.f32 %v3246, %v3352
          %v3504 = vsub.f32 %v3247, %v3352
          %v3505 = vsub.f32 %v3248, %v3352
          %v3506 = vadd.f32 %v3457, 1e-05
          %v3507 = vrsqrt.pop %v3506
          %v3508 = vmul.f32 %v3458, %v3507
          %v3509 = vmul.f32 %v3459, %v3507
          %v3510 = vmul.f32 %v3460, %v3507
          %v3511 = vmul.f32 %v3461, %v3507
          %v3512 = vmul.f32 %v3462, %v3507
          %v3513 = vmul.f32 %v3463, %v3507
          %v3514 = vmul.f32 %v3464, %v3507
          %v3515 = vmul.f32 %v3465, %v3507
          %v3516 = vmul.f32 %v3466, %v3507
          %v3517 = vmul.f32 %v3467, %v3507
          %v3518 = vmul.f32 %v3468, %v3507
          %v3519 = vmul.f32 %v3469, %v3507
          %v3520 = vmul.f32 %v3470, %v3507
          %v3521 = vmul.f32 %v3471, %v3507
          %v3522 = vmul.f32 %v3472, %v3507
          %v3523 = vmul.f32 %v3473, %v3507
          %v3524 = vmul.f32 %v3474, %v3507
          %v3525 = vmul.f32 %v3475, %v3507
          %v3526 = vmul.f32 %v3476, %v3507
          %v3527 = vmul.f32 %v3477, %v3507
          %v3528 = vmul.f32 %v3478, %v3507
          %v3529 = vmul.f32 %v3479, %v3507
          %v3530 = vmul.f32 %v3480, %v3507
          %v3531 = vmul.f32 %v3481, %v3507
          %v3532 = vmul.f32 %v3482, %v3507
          %v3533 = vmul.f32 %v3483, %v3507
          %v3534 = vmul.f32 %v3484, %v3507
          %v3535 = vmul.f32 %v3485, %v3507
          %v3536 = vmul.f32 %v3486, %v3507
          %v3537 = vmul.f32 %v3487, %v3507
          %v3538 = vmul.f32 %v3488, %v3507
          %v3539 = vmul.f32 %v3489, %v3507
          %v3540 = vmul.f32 %v3490, %v3507
          %v3541 = vmul.f32 %v3491, %v3507
          %v3542 = vmul.f32 %v3492, %v3507
          %v3543 = vmul.f32 %v3493, %v3507
          %v3544 = vmul.f32 %v3494, %v3507
          %v3545 = vmul.f32 %v3495, %v3507
          %v3546 = vmul.f32 %v3496, %v3507
          %v3547 = vmul.f32 %v3497, %v3507
          %v3548 = vmul.f32 %v3498, %v3507
          %v3549 = vmul.f32 %v3499, %v3507
          %v3550 = vmul.f32 %v3500, %v3507
          %v3551 = vmul.f32 %v3501, %v3507
          %v3552 = vmul.f32 %v3502, %v3507
          %v3553 = vmul.f32 %v3503, %v3507
          %v3554 = vmul.f32 %v3504, %v3507
          %v3555 = vmul.f32 %v3505, %v3507
          %v3557 = vlaneseq
          %v3558 = vshrl.u32 %v3557, 7
          %v3559 = vsub.s32 0, %v3558
          %v3560 = vrot.slane %v3249, %v3559
          %v3562 = vmul.f32 %v3508, %v3560
          %v3563 = vmul.f32 %v3509, %v3560
          %v3564 = vmul.f32 %v3510, %v3560
          %v3565 = vmul.f32 %v3511, %v3560
          %v3566 = vmul.f32 %v3512, %v3560
          %v3567 = vmul.f32 %v3513, %v3560
          %v3568 = vmul.f32 %v3514, %v3560
          %v3569 = vmul.f32 %v3515, %v3560
          %v3570 = vmul.f32 %v3516, %v3560
          %v3571 = vmul.f32 %v3517, %v3560
          %v3572 = vmul.f32 %v3518, %v3560
          %v3573 = vmul.f32 %v3519, %v3560
          %v3574 = vmul.f32 %v3520, %v3560
          %v3575 = vmul.f32 %v3521, %v3560
          %v3576 = vmul.f32 %v3522, %v3560
          %v3577 = vmul.f32 %v3523, %v3560
          %v3578 = vmul.f32 %v3524, %v3560
          %v3579 = vmul.f32 %v3525, %v3560
          %v3580 = vmul.f32 %v3526, %v3560
          %v3581 = vmul.f32 %v3527, %v3560
          %v3582 = vmul.f32 %v3528, %v3560
          %v3583 = vmul.f32 %v3529, %v3560
          %v3584 = vmul.f32 %v3530, %v3560
          %v3585 = vmul.f32 %v3531, %v3560
          %v3586 = vmul.f32 %v3532, %v3560
          %v3587 = vmul.f32 %v3533, %v3560
          %v3588 = vmul.f32 %v3534, %v3560
          %v3589 = vmul.f32 %v3535, %v3560
          %v3590 = vmul.f32 %v3536, %v3560
          %v3591 = vmul.f32 %v3537, %v3560
          %v3592 = vmul.f32 %v3538, %v3560
          %v3593 = vmul.f32 %v3539, %v3560
          %v3594 = vmul.f32 %v3540, %v3560
          %v3595 = vmul.f32 %v3541, %v3560
          %v3596 = vmul.f32 %v3542, %v3560
          %v3597 = vmul.f32 %v3543, %v3560
          %v3598 = vmul.f32 %v3544, %v3560
          %v3599 = vmul.f32 %v3545, %v3560
          %v3600 = vmul.f32 %v3546, %v3560
          %v3601 = vmul.f32 %v3547, %v3560
          %v3602 = vmul.f32 %v3548, %v3560
          %v3603 = vmul.f32 %v3549, %v3560
          %v3604 = vmul.f32 %v3550, %v3560
          %v3605 = vmul.f32 %v3551, %v3560
          %v3606 = vmul.f32 %v3552, %v3560
          %v3607 = vmul.f32 %v3553, %v3560
          %v3608 = vmul.f32 %v3554, %v3560
          %v3609 = vmul.f32 %v3555, %v3560
          %v3611 = vlaneseq
          %v3612 = vshrl.u32 %v3611, 7
          %v3613 = vsub.s32 0, %v3612
          %v3614 = vrot.slane %v3250, %v3613
          %v3616 = vadd.f32 %v3562, %v3614
          %v3617 = vadd.f32 %v3563, %v3614
          %v3618 = vadd.f32 %v3564, %v3614
          %v3619 = vadd.f32 %v3565, %v3614
          %v3620 = vadd.f32 %v3566, %v3614
          %v3621 = vadd.f32 %v3567, %v3614
          %v3622 = vadd.f32 %v3568, %v3614
          %v3623 = vadd.f32 %v3569, %v3614
          %v3624 = vadd.f32 %v3570, %v3614
          %v3625 = vadd.f32 %v3571, %v3614
          %v3626 = vadd.f32 %v3572, %v3614
          %v3627 = vadd.f32 %v3573, %v3614
          %v3628 = vadd.f32 %v3574, %v3614
          %v3629 = vadd.f32 %v3575, %v3614
          %v3630 = vadd.f32 %v3576, %v3614
          %v3631 = vadd.f32 %v3577, %v3614
          %v3632 = vadd.f32 %v3578, %v3614
          %v3633 = vadd.f32 %v3579, %v3614
          %v3634 = vadd.f32 %v3580, %v3614
          %v3635 = vadd.f32 %v3581, %v3614
          %v3636 = vadd.f32 %v3582, %v3614
          %v3637 = vadd.f32 %v3583, %v3614
          %v3638 = vadd.f32 %v3584, %v3614
          %v3639 = vadd.f32 %v3585, %v3614
          %v3640 = vadd.f32 %v3586, %v3614
          %v3641 = vadd.f32 %v3587, %v3614
          %v3642 = vadd.f32 %v3588, %v3614
          %v3643 = vadd.f32 %v3589, %v3614
          %v3644 = vadd.f32 %v3590, %v3614
          %v3645 = vadd.f32 %v3591, %v3614
          %v3646 = vadd.f32 %v3592, %v3614
          %v3647 = vadd.f32 %v3593, %v3614
          %v3648 = vadd.f32 %v3594, %v3614
          %v3649 = vadd.f32 %v3595, %v3614
          %v3650 = vadd.f32 %v3596, %v3614
          %v3651 = vadd.f32 %v3597, %v3614
          %v3652 = vadd.f32 %v3598, %v3614
          %v3653 = vadd.f32 %v3599, %v3614
          %v3654 = vadd.f32 %v3600, %v3614
          %v3655 = vadd.f32 %v3601, %v3614
          %v3656 = vadd.f32 %v3602, %v3614
          %v3657 = vadd.f32 %v3603, %v3614
          %v3658 = vadd.f32 %v3604, %v3614
          %v3659 = vadd.f32 %v3605, %v3614
          %v3660 = vadd.f32 %v3606, %v3614
          %v3661 = vadd.f32 %v3607, %v3614
          %v3662 = vadd.f32 %v3608, %v3614
          %v3663 = vadd.f32 %v3609, %v3614
          %v3664 = vmax.f32 %v3616, 0.0
          %v3665 = vmax.f32 %v3617, 0.0
          %v3666 = vmax.f32 %v3618, 0.0
          %v3667 = vmax.f32 %v3619, 0.0
          %v3668 = vmax.f32 %v3620, 0.0
          %v3669 = vmax.f32 %v3621, 0.0
          %v3670 = vmax.f32 %v3622, 0.0
          %v3671 = vmax.f32 %v3623, 0.0
          %v3672 = vmax.f32 %v3624, 0.0
          %v3673 = vmax.f32 %v3625, 0.0
          %v3674 = vmax.f32 %v3626, 0.0
          %v3675 = vmax.f32 %v3627, 0.0
          %v3676 = vmax.f32 %v3628, 0.0
          %v3677 = vmax.f32 %v3629, 0.0
          %v3678 = vmax.f32 %v3630, 0.0
          %v3679 = vmax.f32 %v3631, 0.0
          %v3680 = vmax.f32 %v3632, 0.0
          %v3681 = vmax.f32 %v3633, 0.0
          %v3682 = vmax.f32 %v3634, 0.0
          %v3683 = vmax.f32 %v3635, 0.0
          %v3684 = vmax.f32 %v3636, 0.0
          %v3685 = vmax.f32 %v3637, 0.0
          %v3686 = vmax.f32 %v3638, 0.0
          %v3687 = vmax.f32 %v3639, 0.0
          %v3688 = vmax.f32 %v3640, 0.0
          %v3689 = vmax.f32 %v3641, 0.0
          %v3690 = vmax.f32 %v3642, 0.0
          %v3691 = vmax.f32 %v3643, 0.0
          %v3692 = vmax.f32 %v3644, 0.0
          %v3693 = vmax.f32 %v3645, 0.0
          %v3694 = vmax.f32 %v3646, 0.0
          %v3695 = vmax.f32 %v3647, 0.0
          %v3696 = vmax.f32 %v3648, 0.0
          %v3697 = vmax.f32 %v3649, 0.0
          %v3698 = vmax.f32 %v3650, 0.0
          %v3699 = vmax.f32 %v3651, 0.0
          %v3700 = vmax.f32 %v3652, 0.0
          %v3701 = vmax.f32 %v3653, 0.0
          %v3702 = vmax.f32 %v3654, 0.0
          %v3703 = vmax.f32 %v3655, 0.0
          %v3704 = vmax.f32 %v3656, 0.0
          %v3705 = vmax.f32 %v3657, 0.0
          %v3706 = vmax.f32 %v3658, 0.0
          %v3707 = vmax.f32 %v3659, 0.0
          %v3708 = vmax.f32 %v3660, 0.0
          %v3709 = vmax.f32 %v3661, 0.0
          %v3710 = vmax.f32 %v3662, 0.0
          %v3711 = vmax.f32 %v3663, 0.0
          %3712 = vst [vmem:[%s609] sm:$0xff] %v3664
          %3713 = vst [vmem:[%s609 + $0x8] sm:$0xff] %v3665
          %3714 = vst [vmem:[%s609 + $0x10] sm:$0xff] %v3666
          %3715 = vst [vmem:[%s609 + $0x18] sm:$0xff] %v3667
          %3716 = vst [vmem:[%s609 + $0x20] sm:$0xff] %v3668
          %3717 = vst [vmem:[%s609 + $0x28] sm:$0xff] %v3669
          %3718 = vst [vmem:[%s609 + $0x30] sm:$0xff] %v3670
          %3719 = vst [vmem:[%s609 + $0x38] sm:$0xff] %v3671
          %3720 = vst [vmem:[%s609 + $0x40] sm:$0xff] %v3672
          %3721 = vst [vmem:[%s609 + $0x48] sm:$0xff] %v3673
          %3722 = vst [vmem:[%s609 + $0x50] sm:$0xff] %v3674
          %3723 = vst [vmem:[%s609 + $0x58] sm:$0xff] %v3675
          %3724 = vst [vmem:[%s609 + $0x60] sm:$0xff] %v3676
          %3725 = vst [vmem:[%s609 + $0x68] sm:$0xff] %v3677
          %3726 = vst [vmem:[%s609 + $0x70] sm:$0xff] %v3678
          %3727 = vst [vmem:[%s609 + $0x78] sm:$0xff] %v3679
          %3728 = vst [vmem:[%s609 + $0x80] sm:$0xff] %v3680
          %3729 = vst [vmem:[%s609 + $0x88] sm:$0xff] %v3681
          %3730 = vst [vmem:[%s609 + $0x90] sm:$0xff] %v3682
          %3731 = vst [vmem:[%s609 + $0x98] sm:$0xff] %v3683
          %3732 = vst [vmem:[%s609 + $0xa0] sm:$0xff] %v3684
          %3733 = vst [vmem:[%s609 + $0xa8] sm:$0xff] %v3685
          %3734 = vst [vmem:[%s609 + $0xb0] sm:$0xff] %v3686
          %3735 = vst [vmem:[%s609 + $0xb8] sm:$0xff] %v3687
          %3736 = vst [vmem:[%s609 + $0xc0] sm:$0xff] %v3688
          %3737 = vst [vmem:[%s609 + $0xc8] sm:$0xff] %v3689
          %3738 = vst [vmem:[%s609 + $0xd0] sm:$0xff] %v3690
          %3739 = vst [vmem:[%s609 + $0xd8] sm:$0xff] %v3691
          %3740 = vst [vmem:[%s609 + $0xe0] sm:$0xff] %v3692
          %3741 = vst [vmem:[%s609 + $0xe8] sm:$0xff] %v3693
          %3742 = vst [vmem:[%s609 + $0xf0] sm:$0xff] %v3694
          %3743 = vst [vmem:[%s609 + $0xf8] sm:$0xff] %v3695
          %3744 = vst [vmem:[%s609 + $0x100] sm:$0xff] %v3696
          %3745 = vst [vmem:[%s609 + $0x108] sm:$0xff] %v3697
          %3746 = vst [vmem:[%s609 + $0x110] sm:$0xff] %v3698
          %3747 = vst [vmem:[%s609 + $0x118] sm:$0xff] %v3699
          %3748 = vst [vmem:[%s609 + $0x120] sm:$0xff] %v3700
          %3749 = vst [vmem:[%s609 + $0x128] sm:$0xff] %v3701
          %3750 = vst [vmem:[%s609 + $0x130] sm:$0xff] %v3702
          %3751 = vst [vmem:[%s609 + $0x138] sm:$0xff] %v3703
          %3752 = vst [vmem:[%s609 + $0x140] sm:$0xff] %v3704
          %3753 = vst [vmem:[%s609 + $0x148] sm:$0xff] %v3705
          %3754 = vst [vmem:[%s609 + $0x150] sm:$0xff] %v3706
          %3755 = vst [vmem:[%s609 + $0x158] sm:$0xff] %v3707
          %3756 = vst [vmem:[%s609 + $0x160] sm:$0xff] %v3708
          %3757 = vst [vmem:[%s609 + $0x168] sm:$0xff] %v3709
          %3758 = vst [vmem:[%s609 + $0x170] sm:$0xff] %v3710
          %3759 = vst [vmem:[%s609 + $0x178] sm:$0xff] %v3711
          %3760 = vst [vmem:[#allocation2] sm:$0xff] %v3664
          %3761 = vst [vmem:[#allocation2 + $0x8] sm:$0xff] %v3665
          %3762 = vst [vmem:[#allocation2 + $0x10] sm:$0xff] %v3666
          %3763 = vst [vmem:[#allocation2 + $0x18] sm:$0xff] %v3667
          %3764 = vst [vmem:[#allocation2 + $0x20] sm:$0xff] %v3668
          %3765 = vst [vmem:[#allocation2 + $0x28] sm:$0xff] %v3669
          %3766 = vst [vmem:[#allocation2 + $0x30] sm:$0xff] %v3670
          %3767 = vst [vmem:[#allocation2 + $0x38] sm:$0xff] %v3671
          %3768 = vst [vmem:[#allocation2 + $0x40] sm:$0xff] %v3672
          %3769 = vst [vmem:[#allocation2 + $0x48] sm:$0xff] %v3673
          %3770 = vst [vmem:[#allocation2 + $0x50] sm:$0xff] %v3674
          %3771 = vst [vmem:[#allocation2 + $0x58] sm:$0xff] %v3675
          %3772 = vst [vmem:[#allocation2 + $0x60] sm:$0xff] %v3676
          %3773 = vst [vmem:[#allocation2 + $0x68] sm:$0xff] %v3677
          %3774 = vst [vmem:[#allocation2 + $0x70] sm:$0xff] %v3678
          %3775 = vst [vmem:[#allocation2 + $0x78] sm:$0xff] %v3679
          %3776 = vst [vmem:[#allocation2 + $0x80] sm:$0xff] %v3680
          %3777 = vst [vmem:[#allocation2 + $0x88] sm:$0xff] %v3681
          %3778 = vst [vmem:[#allocation2 + $0x90] sm:$0xff] %v3682
          %3779 = vst [vmem:[#allocation2 + $0x98] sm:$0xff] %v3683
          %3780 = vst [vmem:[#allocation2 + $0xa0] sm:$0xff] %v3684
          %3781 = vst [vmem:[#allocation2 + $0xa8] sm:$0xff] %v3685
          %3782 = vst [vmem:[#allocation2 + $0xb0] sm:$0xff] %v3686
          %3783 = vst [vmem:[#allocation2 + $0xb8] sm:$0xff] %v3687
          %3784 = vst [vmem:[#allocation2 + $0xc0] sm:$0xff] %v3688
          %3785 = vst [vmem:[#allocation2 + $0xc8] sm:$0xff] %v3689
          %3786 = vst [vmem:[#allocation2 + $0xd0] sm:$0xff] %v3690
          %3787 = vst [vmem:[#allocation2 + $0xd8] sm:$0xff] %v3691
          %3788 = vst [vmem:[#allocation2 + $0xe0] sm:$0xff] %v3692
          %3789 = vst [vmem:[#allocation2 + $0xe8] sm:$0xff] %v3693
          %3790 = vst [vmem:[#allocation2 + $0xf0] sm:$0xff] %v3694
          %3791 = vst [vmem:[#allocation2 + $0xf8] sm:$0xff] %v3695
          %3792 = vst [vmem:[#allocation2 + $0x100] sm:$0xff] %v3696
          %3793 = vst [vmem:[#allocation2 + $0x108] sm:$0xff] %v3697
          %3794 = vst [vmem:[#allocation2 + $0x110] sm:$0xff] %v3698
          %3795 = vst [vmem:[#allocation2 + $0x118] sm:$0xff] %v3699
          %3796 = vst [vmem:[#allocation2 + $0x120] sm:$0xff] %v3700
          %3797 = vst [vmem:[#allocation2 + $0x128] sm:$0xff] %v3701
          %3798 = vst [vmem:[#allocation2 + $0x130] sm:$0xff] %v3702
          %3799 = vst [vmem:[#allocation2 + $0x138] sm:$0xff] %v3703
          %3800 = vst [vmem:[#allocation2 + $0x140] sm:$0xff] %v3704
          %3801 = vst [vmem:[#allocation2 + $0x148] sm:$0xff] %v3705
          %3802 = vst [vmem:[#allocation2 + $0x150] sm:$0xff] %v3706
          %3803 = vst [vmem:[#allocation2 + $0x158] sm:$0xff] %v3707
          %3804 = vst [vmem:[#allocation2 + $0x160] sm:$0xff] %v3708
          %3805 = vst [vmem:[#allocation2 + $0x168] sm:$0xff] %v3709
          %3806 = vst [vmem:[#allocation2 + $0x170] sm:$0xff] %v3710
          %3807 = vst [vmem:[#allocation2 + $0x178] sm:$0xff] %v3711
        $region92: #{tpu_custom_call.1} parent=63 // pred_fallthru
          _
        %s3808 = sand.u32 %s340, 1
        %s3809 = scalar_lea.sflag [#allocation6], %s3808
        %s3810 = sand.u32 %s340, 1
        %s3811 = smul.addr %s3810, 384
        %s3812 = scalar_lea.vmem [#allocation12], %s3811
        // Predicated region
        $region93: #{tpu_custom_call.1} parent=63 // pred_check
          %p3813 = pneg %p350
        $region94: #{tpu_custom_call.1} parent=63 // pred_check_branch
          %3815 = sbr.rel (%p3813) target = $region96
        $region95: #{tpu_custom_call.1} parent=63 // pred_region
          %s3817 = ssub.s32 6144, 6144
          %3818 = vsyncadd %s3809, %s3817
          %s3819 = smul.addr %s38, 48
          %s3820 = smul.addr %s3819, 128
          %s3821 = scalar_lea.hbm %s11, %s3820
          %s3822 = sshll.u32 %s3812, 4
          %s3823 = int_to_ptr.vmem [resolvable:$true] %s3822
          %3828 = dma.vmem_to_hbm [thread:$0]  %s3823, 6144, %s3821, %s3809, 128, 128, 8
        $region96: #{tpu_custom_call.1} parent=63 // pred_fallthru
          _
      $region64: #{tpu_custom_call.1} parent=5 // pred_fallthru
        _
      %p3829 = scmp.le.s32.totalorder 2, %s29
      // Predicated region
      $region97: #{tpu_custom_call.1} parent=5 // pred_check
        %p3830 = pneg %p3829
      $region98: #{tpu_custom_call.1} parent=5 // pred_check_branch
        %3832 = sbr.rel (%p3830) target = $region100
      $region99: #{tpu_custom_call.1} parent=5 // pred_region
        %s3833 = ssub.s32 %s29, 2
        // Predicated region
        $region101: #{tpu_custom_call.1} parent=99 // pred_check
          %p3834 = pneg %p356
        $region102: #{tpu_custom_call.1} parent=99 // pred_check_branch
          %3836 = sbr.rel (%p3834) target = $region104
        $region103: #{tpu_custom_call.1} parent=99 // pred_region
          %s3837 = sand.u32 %s341, 1
          %s3838 = scalar_lea.sflag [#allocation6], %s3837
          %s3839 = sand.u32 %s341, 1
          %s3840 = smul.addr %s3839, 384
          %s3841 = scalar_lea.vmem [#allocation12], %s3840
          %3842 = dma.done %s3838, 6144
        $region104: #{tpu_custom_call.1} parent=99 // pred_fallthru
          _
      $region100: #{tpu_custom_call.1} parent=5 // pred_fallthru
        _
    $region6: #{tpu_custom_call.1} parent=1 // loop_footer
      %s33 = sadd.s32 1, %s29
    $region7: #{tpu_custom_call.1} parent=1 // loop_footer_branch
      %28 = sbr.rel target = $region3
    $region8: #{tpu_custom_call.1} parent=1 // loop_exit
      _
    %3843 = vsyncpa [#allocation5], 1
    %s3844 = scalar_lea.sflag [#allocation5], 1
    %3845 = vsyncpa %s3844, 1
    %3846 = vsyncpa [#allocation8], 1
    %s3847 = scalar_lea.sflag [#allocation8], 1
    %3848 = vsyncpa %s3847, 1
    %3849 = vsyncpa [#allocation11], 1
    %s3850 = scalar_lea.sflag [#allocation11], 1
    %3851 = vsyncpa %s3850, 1
    %3852 = vsyncpa [#allocation6], 1
    %s3853 = scalar_lea.sflag [#allocation6], 1
    %3854 = vsyncpa %s3853, 1

</llo_original>
